<compile_context>
chip_gen: v7x
topology: tpu7x:2x2x1
jax: 0.10.0
libtpu: 0.0.40
codegen_flags: <defaults>
</compile_context>

<pallas_src>
import math

import jax
import jax.numpy as jnp
from jax.experimental import pallas as pl
from jax.experimental.pallas import tpu as pltpu

D_MODEL = 64
NHEAD = 2
DIM_FF = 512
NUM_LAYERS = 2
HEAD_DIM = D_MODEL // NHEAD
LN_EPS = 1e-5


def _decoder_kernel(x_ref, mask_ref,
                    sa_wqkv_ref, sa_bqkv_ref, sa_wo_ref, sa_bo_ref,
                    ca_wq_ref, ca_bq_ref, ca_wkv_ref, ca_bkv_ref,
                    ca_wo_ref, ca_bo_ref,
                    ffn_w1_ref, ffn_b1_ref, ffn_w2_ref, ffn_b2_ref,
                    ln_g_ref, ln_b_ref,
                    out_ref):
    """Processes the whole (B, S, D) batch in one grid step (batch folded
    into the matmul M dimension)."""
    B, S, D = x_ref.shape
    M = B * S

    x = x_ref[...].astype(jnp.float32)            # (B, S, D)
    mem_f = x.reshape(M, D)                       # memory == original x, flat rows
    mem_bf = mem_f.astype(jnp.bfloat16)           # hoisted MXU operand (both layers)

    # Hoisted additive-mask broadcasts (1, Sq, Sk) — broadcast over B*NHEAD.
    mask_f = mask_ref[...].astype(jnp.float32)    # (S, S)
    mask_full = mask_f[None, :, :]                # (1, S, S)
    mask_last = mask_f[None, S - 1:S, :]          # (1, 1, S)

    def layer_norm(h, g, b):
        mu = jnp.mean(h, axis=-1, keepdims=True)
        var = jnp.mean(jnp.square(h - mu), axis=-1, keepdims=True)
        return (h - mu) * jax.lax.rsqrt(var + LN_EPS) * g[None, :] + b[None, :]

    def split_heads(t3):
        # t3: (B, Sx, D) with columns [head0 | head1]; heads stacked on the
        # batch axis -> (B*NHEAD, Sx, HEAD_DIM).
        return jnp.concatenate(
            [t3[:, :, h * HEAD_DIM:(h + 1) * HEAD_DIM] for h in range(NHEAD)],
            axis=0)

    def merge_heads(o3):
        # o3: (B*NHEAD, Sq, HEAD_DIM) head-major on dim 0 -> (B*Sq, D).
        parts = [o3[h * B:(h + 1) * B] for h in range(NHEAD)]
        merged = jnp.concatenate(parts, axis=-1)            # (B, Sq, D)
        return merged.reshape(B * o3.shape[1], D)

    def attend(q3, k3, v3, add_mask):
        # q3: (B*H, Sq, Hd); k3, v3: (B*H, Sk, Hd).  Scale is pre-folded into
        # the Q projection weights.
        s = jnp.einsum('bqd,bkd->bqk', q3, k3,
                       preferred_element_type=jnp.float32)
        if add_mask is not None:
            s = s + add_mask
        m = jnp.max(s, axis=-1, keepdims=True)
        e = jnp.exp(s - m)
        p = e * pl.reciprocal(jnp.sum(e, axis=-1, keepdims=True), approx=True)
        return jnp.einsum('bqk,bkd->bqd', p, v3,
                          preferred_element_type=jnp.float32)

    tgt_f = mem_f          # (M, D): evolving target, all rows
    tgt_last = None        # (B, D): evolving target, last row only (last layer)

    for l in range(NUM_LAYERS):
        last = (l == NUM_LAYERS - 1)

        # ---------------- self-attention block (post-norm) ----------------
        # Fused QKV: one (M, 64) @ (64, 192) bf16 matmul, f32 accumulation.
        qkv = jnp.dot(tgt_f.astype(jnp.bfloat16), sa_wqkv_ref[l],
                      preferred_element_type=jnp.float32) + sa_bqkv_ref[l][None, :]
        k3 = split_heads(qkv[:, 1 * D:2 * D].reshape(B, S, D))
        v3 = split_heads(qkv[:, 2 * D:3 * D].reshape(B, S, D))

        if not last:
            q3 = split_heads(qkv[:, 0:D].reshape(B, S, D))
            sa = merge_heads(attend(q3, k3, v3, mask_full))          # (M, D)
            sa = jnp.dot(sa.astype(jnp.bfloat16), sa_wo_ref[l],
                         preferred_element_type=jnp.float32) + sa_bo_ref[l][None, :]
            tgt_f = layer_norm(tgt_f + sa, ln_g_ref[l, 0], ln_b_ref[l, 0])
        else:
            # Last layer: only row S-1 feeds the output -> prune the queries.
            q3 = split_heads(qkv[:, 0:D].reshape(B, S, D)[:, S - 1:S, :])
            sa = merge_heads(attend(q3, k3, v3, mask_last))          # (B, D)
            sa = jnp.dot(sa.astype(jnp.bfloat16), sa_wo_ref[l],
                         preferred_element_type=jnp.float32) + sa_bo_ref[l][None, :]
            res = tgt_f.reshape(B, S, D)[:, S - 1:S, :].reshape(B, D)
            tgt_last = layer_norm(res + sa, ln_g_ref[l, 0], ln_b_ref[l, 0])

        # ------------- cross-attention on memory (no mask) -----------------
        # Fused K/V projection of the memory: one (M, 64) @ (64, 128) matmul.
        kv_m = jnp.dot(mem_bf, ca_wkv_ref[l],
                       preferred_element_type=jnp.float32) + ca_bkv_ref[l][None, :]
        k3m = split_heads(kv_m[:, 0:D].reshape(B, S, D))
        v3m = split_heads(kv_m[:, D:2 * D].reshape(B, S, D))

        if not last:
            q_c = (jnp.dot(tgt_f.astype(jnp.bfloat16), ca_wq_ref[l],
                           preferred_element_type=jnp.float32)
                   + ca_bq_ref[l][None, :])
            q3c = split_heads(q_c.reshape(B, S, D))
            ca = merge_heads(attend(q3c, k3m, v3m, None))            # (M, D)
            ca = jnp.dot(ca.astype(jnp.bfloat16), ca_wo_ref[l],
                         preferred_element_type=jnp.float32) + ca_bo_ref[l][None, :]
            tgt_f = layer_norm(tgt_f + ca, ln_g_ref[l, 1], ln_b_ref[l, 1])
        else:
            q_c = (jnp.dot(tgt_last.astype(jnp.bfloat16), ca_wq_ref[l],
                           preferred_element_type=jnp.float32)
                   + ca_bq_ref[l][None, :])
            q3c = split_heads(q_c.reshape(B, 1, D))
            ca = merge_heads(attend(q3c, k3m, v3m, None))            # (B, D)
            ca = jnp.dot(ca.astype(jnp.bfloat16), ca_wo_ref[l],
                         preferred_element_type=jnp.float32) + ca_bo_ref[l][None, :]
            tgt_last = layer_norm(tgt_last + ca, ln_g_ref[l, 1], ln_b_ref[l, 1])

        # -------------- feed-forward: linear2(relu(linear1(x))) ------------
        # bf16 MXU operands, f32 accumulation; elementwise math stays f32.
        src = tgt_f if not last else tgt_last
        h = jnp.dot(src.astype(jnp.bfloat16), ffn_w1_ref[l],
                    preferred_element_type=jnp.float32) + ffn_b1_ref[l][None, :]
        h = jnp.maximum(h, 0.0)
        ff = jnp.dot(h.astype(jnp.bfloat16), ffn_w2_ref[l],
                     preferred_element_type=jnp.float32) + ffn_b2_ref[l][None, :]
        if not last:
            tgt_f = layer_norm(tgt_f + ff, ln_g_ref[l, 2], ln_b_ref[l, 2])
        else:
            tgt_last = layer_norm(tgt_last + ff, ln_g_ref[l, 2], ln_b_ref[l, 2])

    # output = x[:, -1, :], written as one (B, 1, D) slab.
    out_ref[...] = tgt_last.reshape(B, 1, D).astype(out_ref.dtype)


def _full_spec(shape):
    """Whole-array block, resident (same block) for every grid step."""
    return pl.BlockSpec(shape, lambda i, _n=len(shape): (0,) * _n)


def decoder_block_forward(x, mask, padding_mask, params):
    """Equivalent of DecoderBlock.forward(x, mask, padding_mask).

    padding_mask is accepted but unused (the PyTorch module passes
    tgt_key_padding_mask=None).
    """
    del padding_mask
    B, S, D = x.shape
    assert D == D_MODEL
    M = B * S

    param_list = [
        params["sa_wqkv"], params["sa_bqkv"], params["sa_wo"], params["sa_bo"],
        params["ca_wq"], params["ca_bq"], params["ca_wkv"], params["ca_bkv"],
        params["ca_wo"], params["ca_bo"],
        params["ffn_w1"], params["ffn_b1"], params["ffn_w2"], params["ffn_b2"],
        params["ln_g"], params["ln_b"],
    ]

    in_specs = [
        pl.BlockSpec((B, S, D), lambda i: (0, 0, 0)),    # x
        pl.BlockSpec((S, S), lambda i: (0, 0)),          # additive mask
    ] + [_full_spec(p.shape) for p in param_list]

    # Advisory cost estimate so XLA schedules surrounding ops around this
    # tiny latency-bound call.
    proj_flops = 2 * M * D * (3 * D + 2 * D + D + D + D)        # qkv, kv, q, 2x out-proj
    ffn_flops = 2 * 2 * M * D * DIM_FF
    attn_flops = 2 * (2 * 2 * B * NHEAD * S * S * HEAD_DIM)     # sa + ca, scores + P@V
    flops = NUM_LAYERS * (proj_flops + ffn_flops + attn_flops)
    transcendentals = NUM_LAYERS * 2 * B * NHEAD * S * S        # softmax exps
    bytes_accessed = int(x.size * 4 + mask.size * 4 + B * D * 4
                         + sum(int(p.size) * p.dtype.itemsize for p in param_list))
    cost = pl.CostEstimate(flops=int(flops),
                           transcendentals=int(transcendentals),
                           bytes_accessed=bytes_accessed)

    out = pl.pallas_call(
        _decoder_kernel,
        out_shape=jax.ShapeDtypeStruct((B, 1, D), jnp.float32),
        grid=(1,),
        in_specs=in_specs,
        out_specs=pl.BlockSpec((B, 1, D), lambda i: (0, 0, 0)),
        compiler_params=pltpu.CompilerParams(dimension_semantics=("arbitrary",)),
        cost_estimate=cost,
    )(x, mask, *param_list)

    # x[:, -1, :] is already (B, D); .squeeze(1) on (B, 64) is a no-op.
    return out[:, 0, :]


def init_params(key):
    """Deterministic synthetic parameters (shapes from the PyTorch module).

    Mapping to PyTorch (all matrices pre-transposed to (in, out)):
      sa_wqkv  = self_attn.in_proj_weight.T   reordered as [Wq.T | Wk.T | Wv.T]
      ca_wq    = multihead_attn Wq.T ; ca_wkv = [Wk.T | Wv.T]
      ffn_w1/2 = linear1.weight.T / linear2.weight.T
      ln_g/b   = (norm1, norm2, norm3) weight / bias per layer
    The 1/sqrt(HEAD_DIM) attention scale is folded into the Q weights/biases.
    Matmul weights are stored bf16 (f32 accumulation in-kernel); biases and
    LayerNorm params stay f32.
    """
    L, D, F = NUM_LAYERS, D_MODEL, DIM_FF
    scale = 1.0 / math.sqrt(HEAD_DIM)
    ks = jax.random.split(key, 8)
    w = lambda k, shape: 0.02 * jax.random.normal(k, shape, jnp.float32)

    sa_wqkv = w(ks[0], (L, D, 3 * D)).at[:, :, 0:D].multiply(scale)
    sa_bqkv = jnp.zeros((L, 3 * D), jnp.float32).at[:, 0:D].multiply(scale)
    ca_wq = w(ks[2], (L, D, D)) * scale
    ca_bq = jnp.zeros((L, D), jnp.float32) * scale

    return {
        # self-attention: fused QKV (D, 3D), scale folded into Q columns
        "sa_wqkv": sa_wqkv.astype(jnp.bfloat16),
        "sa_bqkv": sa_bqkv,
        "sa_wo":   w(ks[1], (L, D, D)).astype(jnp.bfloat16),
        "sa_bo":   jnp.zeros((L, D), jnp.float32),
        # cross-attention (multihead_attn): Q separate (scale folded), K/V fused
        "ca_wq":   ca_wq.astype(jnp.bfloat16),
        "ca_bq":   ca_bq,
        "ca_wkv":  w(ks[3], (L, D, 2 * D)).astype(jnp.bfloat16),
        "ca_bkv":  jnp.zeros((L, 2 * D), jnp.float32),
        "ca_wo":   w(ks[4], (L, D, D)).astype(jnp.bfloat16),
        "ca_bo":   jnp.zeros((L, D), jnp.float32),
        # feed-forward
        "ffn_w1":  w(ks[5], (L, D, F)).astype(jnp.bfloat16),
        "ffn_b1":  jnp.zeros((L, F), jnp.float32),
        "ffn_w2":  w(ks[6], (L, F, D)).astype(jnp.bfloat16),
        "ffn_b2":  jnp.zeros((L, D), jnp.float32),
        # norm1 / norm2 / norm3 per layer
        "ln_g":    jnp.ones((L, 3, D), jnp.float32),
        "ln_b":    jnp.zeros((L, 3, D), jnp.float32),
    }


if __name__ == "__main__":
    B, S = 2, 8
    key = jax.random.PRNGKey(0)
    k_x, k_p = jax.random.split(key)

    x = jax.random.normal(k_x, (B, S, D_MODEL), jnp.float32)
    # Causal additive mask (PyTorch generate_square_subsequent_mask semantics).
    mask = jnp.where(jnp.triu(jnp.ones((S, S), jnp.bool_), k=1),
                     -1e9, 0.0).astype(jnp.float32)
    padding_mask = jnp.zeros((B, S), jnp.bool_)  # ignored by the module

    params = init_params(k_p)

    # TODO(synk): train-mode dropout (p=0.2) has no deterministic Pallas
    # equivalent here; the kernel implements eval-mode (identity) dropout.
    out = decoder_block_forward(x, mask, padding_mask, params)
    out = jax.block_until_ready(out)
    assert out.shape == (B, D_MODEL), out.shape
    assert bool(jnp.all(jnp.isfinite(out)))
    print("KERNEL_OK")
</pallas_src>

<mosaic_0001>
module attributes {stable_mosaic.version = 11 : i64} {
  func.func @_decoder_kernel(%arg0: i32, %arg1: memref<2x8x64xf32, #tpu.memory_space<vmem>>, %arg2: memref<8x8xf32, #tpu.memory_space<vmem>>, %arg3: memref<2x64x192xbf16, #tpu.memory_space<vmem>>, %arg4: memref<2x192xf32, #tpu.memory_space<vmem>>, %arg5: memref<2x64x64xbf16, #tpu.memory_space<vmem>>, %arg6: memref<2x64xf32, #tpu.memory_space<vmem>>, %arg7: memref<2x64x64xbf16, #tpu.memory_space<vmem>>, %arg8: memref<2x64xf32, #tpu.memory_space<vmem>>, %arg9: memref<2x64x128xbf16, #tpu.memory_space<vmem>>, %arg10: memref<2x128xf32, #tpu.memory_space<vmem>>, %arg11: memref<2x64x64xbf16, #tpu.memory_space<vmem>>, %arg12: memref<2x64xf32, #tpu.memory_space<vmem>>, %arg13: memref<2x64x512xbf16, #tpu.memory_space<vmem>>, %arg14: memref<2x512xf32, #tpu.memory_space<vmem>>, %arg15: memref<2x512x64xbf16, #tpu.memory_space<vmem>>, %arg16: memref<2x64xf32, #tpu.memory_space<vmem>>, %arg17: memref<2x3x64xf32, #tpu.memory_space<vmem>>, %arg18: memref<2x3x64xf32, #tpu.memory_space<vmem>>, %arg19: memref<2x1x64xf32, #tpu.memory_space<vmem>>) attributes {dimension_semantics = [#tpu.dimension_semantics<arbitrary>], iteration_bounds = array<i64: 1>, scalar_prefetch = 0 : i64, scratch_operands = 0 : i64, tpu.core_type = #tpu.core_type<tc>, window_params = [{pipeline_mode = #tpu.pipeline_mode<synchronous>, transform_indices = @transform_0, window_bounds = array<i64: 2, 8, 64>}, {pipeline_mode = #tpu.pipeline_mode<synchronous>, transform_indices = @transform_1, window_bounds = array<i64: 8, 8>}, {pipeline_mode = #tpu.pipeline_mode<synchronous>, transform_indices = @transform_2, window_bounds = array<i64: 2, 64, 192>}, {pipeline_mode = #tpu.pipeline_mode<synchronous>, transform_indices = @transform_3, window_bounds = array<i64: 2, 192>}, {pipeline_mode = #tpu.pipeline_mode<synchronous>, transform_indices = @transform_4, window_bounds = array<i64: 2, 64, 64>}, {pipeline_mode = #tpu.pipeline_mode<synchronous>, transform_indices = @transform_5, window_bounds = array<i64: 2, 64>}, {pipeline_mode = #tpu.pipeline_mode<synchronous>, transform_indices = @transform_6, window_bounds = array<i64: 2, 64, 64>}, {pipeline_mode = #tpu.pipeline_mode<synchronous>, transform_indices = @transform_7, window_bounds = array<i64: 2, 64>}, {pipeline_mode = #tpu.pipeline_mode<synchronous>, transform_indices = @transform_8, window_bounds = array<i64: 2, 64, 128>}, {pipeline_mode = #tpu.pipeline_mode<synchronous>, transform_indices = @transform_9, window_bounds = array<i64: 2, 128>}, {pipeline_mode = #tpu.pipeline_mode<synchronous>, transform_indices = @transform_10, window_bounds = array<i64: 2, 64, 64>}, {pipeline_mode = #tpu.pipeline_mode<synchronous>, transform_indices = @transform_11, window_bounds = array<i64: 2, 64>}, {pipeline_mode = #tpu.pipeline_mode<synchronous>, transform_indices = @transform_12, window_bounds = array<i64: 2, 64, 512>}, {pipeline_mode = #tpu.pipeline_mode<synchronous>, transform_indices = @transform_13, window_bounds = array<i64: 2, 512>}, {pipeline_mode = #tpu.pipeline_mode<synchronous>, transform_indices = @transform_14, window_bounds = array<i64: 2, 512, 64>}, {pipeline_mode = #tpu.pipeline_mode<synchronous>, transform_indices = @transform_15, window_bounds = array<i64: 2, 64>}, {pipeline_mode = #tpu.pipeline_mode<synchronous>, transform_indices = @transform_16, window_bounds = array<i64: 2, 3, 64>}, {pipeline_mode = #tpu.pipeline_mode<synchronous>, transform_indices = @transform_17, window_bounds = array<i64: 2, 3, 64>}, {pipeline_mode = #tpu.pipeline_mode<synchronous>, transform_indices = @transform_18, window_bounds = array<i64: 2, 1, 64>}]} {
    %c0 = arith.constant 0 : index
    %c0_0 = arith.constant 0 : index
    %c0_1 = arith.constant 0 : index
    %0 = vector.load %arg1[%c0, %c0_0, %c0_1] : memref<2x8x64xf32, #tpu.memory_space<vmem>>, vector<2x8x64xf32>
    %1 = vector.shape_cast %0 : vector<2x8x64xf32> to vector<16x64xf32>
    %2 = arith.truncf %1 : vector<16x64xf32> to vector<16x64xbf16>
    %c0_2 = arith.constant 0 : index
    %c0_3 = arith.constant 0 : index
    %3 = vector.load %arg2[%c0_2, %c0_3] : memref<8x8xf32, #tpu.memory_space<vmem>>, vector<8x8xf32>
    %4 = vector.shape_cast %3 : vector<8x8xf32> to vector<1x8x8xf32>
    %5 = vector.extract_strided_slice %3 {offsets = [7, 0], sizes = [1, 8], strides = [1, 1]} : vector<8x8xf32> to vector<1x8xf32>
    %6 = vector.shape_cast %5 : vector<1x8xf32> to vector<1x1x8xf32>
    %7 = arith.truncf %1 : vector<16x64xf32> to vector<16x64xbf16>
    %c0_4 = arith.constant 0 : index
    %c0_5 = arith.constant 0 : index
    %c0_6 = arith.constant 0 : index
    %8 = vector.load %arg3[%c0_4, %c0_5, %c0_6] : memref<2x64x192xbf16, #tpu.memory_space<vmem>>, vector<1x64x192xbf16>
    %9 = vector.shape_cast %8 : vector<1x64x192xbf16> to vector<64x192xbf16>
    %cst = arith.constant dense<0.000000e+00> : vector<16x192xf32>
    %10 = tpu.matmul %7, %9, %cst {dimension_numbers = #tpu.dot_dimension_numbers<[1], [0], [0], [1], [0, 0, 1, 1], [], []>} : vector<16x64xbf16>, vector<64x192xbf16>, vector<16x192xf32> -> vector<16x192xf32>
    %c0_7 = arith.constant 0 : index
    %c0_8 = arith.constant 0 : index
    %11 = vector.load %arg4[%c0_7, %c0_8] : memref<2x192xf32, #tpu.memory_space<vmem>>, vector<1x192xf32>
    %12 = vector.shape_cast %11 : vector<1x192xf32> to vector<192xf32>
    %13 = vector.shape_cast %12 : vector<192xf32> to vector<1x192xf32>
    %14 = vector.broadcast %13 : vector<1x192xf32> to vector<16x192xf32>
    %15 = arith.addf %10, %14 : vector<16x192xf32>
    %16 = vector.extract_strided_slice %15 {offsets = [0, 64], sizes = [16, 64], strides = [1, 1]} : vector<16x192xf32> to vector<16x64xf32>
    %17 = vector.shape_cast %16 : vector<16x64xf32> to vector<2x8x64xf32>
    %18 = vector.extract_strided_slice %17 {offsets = [0, 0, 0], sizes = [2, 8, 32], strides = [1, 1, 1]} : vector<2x8x64xf32> to vector<2x8x32xf32>
    %19 = vector.extract_strided_slice %17 {offsets = [0, 0, 32], sizes = [2, 8, 32], strides = [1, 1, 1]} : vector<2x8x64xf32> to vector<2x8x32xf32>
    %20 = tpu.concatenate %18, %19 in 0 : vector<2x8x32xf32>, vector<2x8x32xf32> -> vector<4x8x32xf32>
    %21 = vector.extract_strided_slice %15 {offsets = [0, 128], sizes = [16, 64], strides = [1, 1]} : vector<16x192xf32> to vector<16x64xf32>
    %22 = vector.shape_cast %21 : vector<16x64xf32> to vector<2x8x64xf32>
    %23 = vector.extract_strided_slice %22 {offsets = [0, 0, 0], sizes = [2, 8, 32], strides = [1, 1, 1]} : vector<2x8x64xf32> to vector<2x8x32xf32>
    %24 = vector.extract_strided_slice %22 {offsets = [0, 0, 32], sizes = [2, 8, 32], strides = [1, 1, 1]} : vector<2x8x64xf32> to vector<2x8x32xf32>
    %25 = tpu.concatenate %23, %24 in 0 : vector<2x8x32xf32>, vector<2x8x32xf32> -> vector<4x8x32xf32>
    %26 = vector.extract_strided_slice %15 {offsets = [0, 0], sizes = [16, 64], strides = [1, 1]} : vector<16x192xf32> to vector<16x64xf32>
    %27 = vector.shape_cast %26 : vector<16x64xf32> to vector<2x8x64xf32>
    %28 = vector.extract_strided_slice %27 {offsets = [0, 0, 0], sizes = [2, 8, 32], strides = [1, 1, 1]} : vector<2x8x64xf32> to vector<2x8x32xf32>
    %29 = vector.extract_strided_slice %27 {offsets = [0, 0, 32], sizes = [2, 8, 32], strides = [1, 1, 1]} : vector<2x8x64xf32> to vector<2x8x32xf32>
    %30 = tpu.concatenate %28, %29 in 0 : vector<2x8x32xf32>, vector<2x8x32xf32> -> vector<4x8x32xf32>
    "tpu.trace_start"() <{level = 10 : i32, message = "bqd,bkd->bqk"}> : () -> ()
    %cst_9 = arith.constant dense<0.000000e+00> : vector<4x8x8xf32>
    %31 = tpu.matmul %30, %20, %cst_9 {dimension_numbers = #tpu.dot_dimension_numbers<[2], [2], [1], [1], [0, 0, 0, 1, 1, 1], [0], [0]>} : vector<4x8x32xf32>, vector<4x8x32xf32>, vector<4x8x8xf32> -> vector<4x8x8xf32>
    "tpu.trace_stop"() : () -> ()
    %32 = vector.broadcast %4 : vector<1x8x8xf32> to vector<4x8x8xf32>
    %33 = arith.addf %31, %32 : vector<4x8x8xf32>
    %cst_10 = arith.constant dense<0xFF800000> : vector<4x8xf32>
    %34 = vector.multi_reduction <maximumf>, %33, %cst_10 [2] : vector<4x8x8xf32> to vector<4x8xf32>
    %35 = vector.shape_cast %34 : vector<4x8xf32> to vector<4x8x1xf32>
    %36 = vector.broadcast %35 : vector<4x8x1xf32> to vector<4x8x8xf32>
    %37 = arith.subf %33, %36 : vector<4x8x8xf32>
    %38 = math.exp %37 : vector<4x8x8xf32>
    %cst_11 = arith.constant dense<0.000000e+00> : vector<4x8xf32>
    %39 = vector.multi_reduction <add>, %38, %cst_11 [2] : vector<4x8x8xf32> to vector<4x8xf32>
    %40 = vector.shape_cast %39 : vector<4x8xf32> to vector<4x8x1xf32>
    %41 = tpu.reciprocal %40 {approx = true} : vector<4x8x1xf32> -> vector<4x8x1xf32>
    %42 = vector.broadcast %41 : vector<4x8x1xf32> to vector<4x8x8xf32>
    %43 = arith.mulf %38, %42 : vector<4x8x8xf32>
    "tpu.trace_start"() <{level = 10 : i32, message = "bqk,bkd->bqd"}> : () -> ()
    %cst_12 = arith.constant dense<0.000000e+00> : vector<4x8x32xf32>
    %44 = tpu.matmul %43, %25, %cst_12 {dimension_numbers = #tpu.dot_dimension_numbers<[2], [1], [1], [2], [0, 0, 0, 1, 1, 2], [0], [0]>} : vector<4x8x8xf32>, vector<4x8x32xf32>, vector<4x8x32xf32> -> vector<4x8x32xf32>
    "tpu.trace_stop"() : () -> ()
    %45 = vector.extract_strided_slice %44 {offsets = [0, 0, 0], sizes = [2, 8, 32], strides = [1, 1, 1]} : vector<4x8x32xf32> to vector<2x8x32xf32>
    %46 = vector.extract_strided_slice %44 {offsets = [2, 0, 0], sizes = [2, 8, 32], strides = [1, 1, 1]} : vector<4x8x32xf32> to vector<2x8x32xf32>
    %47 = tpu.concatenate %45, %46 in 2 : vector<2x8x32xf32>, vector<2x8x32xf32> -> vector<2x8x64xf32>
    %48 = vector.shape_cast %47 : vector<2x8x64xf32> to vector<16x64xf32>
    %49 = arith.truncf %48 : vector<16x64xf32> to vector<16x64xbf16>
    %c0_13 = arith.constant 0 : index
    %c0_14 = arith.constant 0 : index
    %c0_15 = arith.constant 0 : index
    %50 = vector.load %arg5[%c0_13, %c0_14, %c0_15] : memref<2x64x64xbf16, #tpu.memory_space<vmem>>, vector<1x64x64xbf16>
    %51 = vector.shape_cast %50 : vector<1x64x64xbf16> to vector<64x64xbf16>
    %cst_16 = arith.constant dense<0.000000e+00> : vector<16x64xf32>
    %52 = tpu.matmul %49, %51, %cst_16 {dimension_numbers = #tpu.dot_dimension_numbers<[1], [0], [0], [1], [0, 0, 1, 1], [], []>} : vector<16x64xbf16>, vector<64x64xbf16>, vector<16x64xf32> -> vector<16x64xf32>
    %c0_17 = arith.constant 0 : index
    %c0_18 = arith.constant 0 : index
    %53 = vector.load %arg6[%c0_17, %c0_18] : memref<2x64xf32, #tpu.memory_space<vmem>>, vector<1x64xf32>
    %54 = vector.shape_cast %53 : vector<1x64xf32> to vector<64xf32>
    %55 = vector.shape_cast %54 : vector<64xf32> to vector<1x64xf32>
    %56 = vector.broadcast %55 : vector<1x64xf32> to vector<16x64xf32>
    %57 = arith.addf %52, %56 : vector<16x64xf32>
    %58 = arith.addf %1, %57 : vector<16x64xf32>
    %c0_19 = arith.constant 0 : index
    %c0_20 = arith.constant 0 : index
    %c0_21 = arith.constant 0 : index
    %59 = vector.load %arg17[%c0_19, %c0_20, %c0_21] : memref<2x3x64xf32, #tpu.memory_space<vmem>>, vector<1x1x64xf32>
    %60 = vector.shape_cast %59 : vector<1x1x64xf32> to vector<64xf32>
    %c0_22 = arith.constant 0 : index
    %c0_23 = arith.constant 0 : index
    %c0_24 = arith.constant 0 : index
    %61 = vector.load %arg18[%c0_22, %c0_23, %c0_24] : memref<2x3x64xf32, #tpu.memory_space<vmem>>, vector<1x1x64xf32>
    %62 = vector.shape_cast %61 : vector<1x1x64xf32> to vector<64xf32>
    %cst_25 = arith.constant dense<0.000000e+00> : vector<16xf32>
    %63 = vector.multi_reduction <add>, %58, %cst_25 [1] : vector<16x64xf32> to vector<16xf32>
    %64 = vector.shape_cast %63 : vector<16xf32> to vector<16x1xf32>
    %cst_26 = arith.constant 6.400000e+01 : f32
    %65 = vector.broadcast %cst_26 : f32 to vector<16x1xf32>
    %66 = arith.divf %64, %65 : vector<16x1xf32>
    %67 = vector.broadcast %66 : vector<16x1xf32> to vector<16x64xf32>
    %68 = arith.subf %58, %67 : vector<16x64xf32>
    %69 = arith.mulf %68, %68 : vector<16x64xf32>
    %cst_27 = arith.constant dense<0.000000e+00> : vector<16xf32>
    %70 = vector.multi_reduction <add>, %69, %cst_27 [1] : vector<16x64xf32> to vector<16xf32>
    %71 = vector.shape_cast %70 : vector<16xf32> to vector<16x1xf32>
    %cst_28 = arith.constant 6.400000e+01 : f32
    %72 = vector.broadcast %cst_28 : f32 to vector<16x1xf32>
    %73 = arith.divf %71, %72 : vector<16x1xf32>
    %74 = vector.broadcast %66 : vector<16x1xf32> to vector<16x64xf32>
    %75 = arith.subf %58, %74 : vector<16x64xf32>
    %cst_29 = arith.constant 9.99999974E-6 : f32
    %76 = vector.broadcast %cst_29 : f32 to vector<16x1xf32>
    %77 = arith.addf %73, %76 : vector<16x1xf32>
    %78 = math.rsqrt %77 : vector<16x1xf32>
    %79 = vector.broadcast %78 : vector<16x1xf32> to vector<16x64xf32>
    %80 = arith.mulf %75, %79 : vector<16x64xf32>
    %81 = vector.shape_cast %60 : vector<64xf32> to vector<1x64xf32>
    %82 = vector.broadcast %81 : vector<1x64xf32> to vector<16x64xf32>
    %83 = arith.mulf %80, %82 : vector<16x64xf32>
    %84 = vector.shape_cast %62 : vector<64xf32> to vector<1x64xf32>
    %85 = vector.broadcast %84 : vector<1x64xf32> to vector<16x64xf32>
    %86 = arith.addf %83, %85 : vector<16x64xf32>
    %c0_30 = arith.constant 0 : index
    %c0_31 = arith.constant 0 : index
    %c0_32 = arith.constant 0 : index
    %87 = vector.load %arg9[%c0_30, %c0_31, %c0_32] : memref<2x64x128xbf16, #tpu.memory_space<vmem>>, vector<1x64x128xbf16>
    %88 = vector.shape_cast %87 : vector<1x64x128xbf16> to vector<64x128xbf16>
    %cst_33 = arith.constant dense<0.000000e+00> : vector<16x128xf32>
    %89 = tpu.matmul %2, %88, %cst_33 {dimension_numbers = #tpu.dot_dimension_numbers<[1], [0], [0], [1], [0, 0, 1, 1], [], []>} : vector<16x64xbf16>, vector<64x128xbf16>, vector<16x128xf32> -> vector<16x128xf32>
    %c0_34 = arith.constant 0 : index
    %c0_35 = arith.constant 0 : index
    %90 = vector.load %arg10[%c0_34, %c0_35] : memref<2x128xf32, #tpu.memory_space<vmem>>, vector<1x128xf32>
    %91 = vector.shape_cast %90 : vector<1x128xf32> to vector<128xf32>
    %92 = vector.shape_cast %91 : vector<128xf32> to vector<1x128xf32>
    %93 = vector.broadcast %92 : vector<1x128xf32> to vector<16x128xf32>
    %94 = arith.addf %89, %93 : vector<16x128xf32>
    %95 = vector.extract_strided_slice %94 {offsets = [0, 0], sizes = [16, 64], strides = [1, 1]} : vector<16x128xf32> to vector<16x64xf32>
    %96 = vector.shape_cast %95 : vector<16x64xf32> to vector<2x8x64xf32>
    %97 = vector.extract_strided_slice %96 {offsets = [0, 0, 0], sizes = [2, 8, 32], strides = [1, 1, 1]} : vector<2x8x64xf32> to vector<2x8x32xf32>
    %98 = vector.extract_strided_slice %96 {offsets = [0, 0, 32], sizes = [2, 8, 32], strides = [1, 1, 1]} : vector<2x8x64xf32> to vector<2x8x32xf32>
    %99 = tpu.concatenate %97, %98 in 0 : vector<2x8x32xf32>, vector<2x8x32xf32> -> vector<4x8x32xf32>
    %100 = vector.extract_strided_slice %94 {offsets = [0, 64], sizes = [16, 64], strides = [1, 1]} : vector<16x128xf32> to vector<16x64xf32>
    %101 = vector.shape_cast %100 : vector<16x64xf32> to vector<2x8x64xf32>
    %102 = vector.extract_strided_slice %101 {offsets = [0, 0, 0], sizes = [2, 8, 32], strides = [1, 1, 1]} : vector<2x8x64xf32> to vector<2x8x32xf32>
    %103 = vector.extract_strided_slice %101 {offsets = [0, 0, 32], sizes = [2, 8, 32], strides = [1, 1, 1]} : vector<2x8x64xf32> to vector<2x8x32xf32>
    %104 = tpu.concatenate %102, %103 in 0 : vector<2x8x32xf32>, vector<2x8x32xf32> -> vector<4x8x32xf32>
    %105 = arith.truncf %86 : vector<16x64xf32> to vector<16x64xbf16>
    %c0_36 = arith.constant 0 : index
    %c0_37 = arith.constant 0 : index
    %c0_38 = arith.constant 0 : index
    %106 = vector.load %arg7[%c0_36, %c0_37, %c0_38] : memref<2x64x64xbf16, #tpu.memory_space<vmem>>, vector<1x64x64xbf16>
    %107 = vector.shape_cast %106 : vector<1x64x64xbf16> to vector<64x64xbf16>
    %cst_39 = arith.constant dense<0.000000e+00> : vector<16x64xf32>
    %108 = tpu.matmul %105, %107, %cst_39 {dimension_numbers = #tpu.dot_dimension_numbers<[1], [0], [0], [1], [0, 0, 1, 1], [], []>} : vector<16x64xbf16>, vector<64x64xbf16>, vector<16x64xf32> -> vector<16x64xf32>
    %c0_40 = arith.constant 0 : index
    %c0_41 = arith.constant 0 : index
    %109 = vector.load %arg8[%c0_40, %c0_41] : memref<2x64xf32, #tpu.memory_space<vmem>>, vector<1x64xf32>
    %110 = vector.shape_cast %109 : vector<1x64xf32> to vector<64xf32>
    %111 = vector.shape_cast %110 : vector<64xf32> to vector<1x64xf32>
    %112 = vector.broadcast %111 : vector<1x64xf32> to vector<16x64xf32>
    %113 = arith.addf %108, %112 : vector<16x64xf32>
    %114 = vector.shape_cast %113 : vector<16x64xf32> to vector<2x8x64xf32>
    %115 = vector.extract_strided_slice %114 {offsets = [0, 0, 0], sizes = [2, 8, 32], strides = [1, 1, 1]} : vector<2x8x64xf32> to vector<2x8x32xf32>
    %116 = vector.extract_strided_slice %114 {offsets = [0, 0, 32], sizes = [2, 8, 32], strides = [1, 1, 1]} : vector<2x8x64xf32> to vector<2x8x32xf32>
    %117 = tpu.concatenate %115, %116 in 0 : vector<2x8x32xf32>, vector<2x8x32xf32> -> vector<4x8x32xf32>
    "tpu.trace_start"() <{level = 10 : i32, message = "bqd,bkd->bqk"}> : () -> ()
    %cst_42 = arith.constant dense<0.000000e+00> : vector<4x8x8xf32>
    %118 = tpu.matmul %117, %99, %cst_42 {dimension_numbers = #tpu.dot_dimension_numbers<[2], [2], [1], [1], [0, 0, 0, 1, 1, 1], [0], [0]>} : vector<4x8x32xf32>, vector<4x8x32xf32>, vector<4x8x8xf32> -> vector<4x8x8xf32>
    "tpu.trace_stop"() : () -> ()
    %cst_43 = arith.constant dense<0xFF800000> : vector<4x8xf32>
    %119 = vector.multi_reduction <maximumf>, %118, %cst_43 [2] : vector<4x8x8xf32> to vector<4x8xf32>
    %120 = vector.shape_cast %119 : vector<4x8xf32> to vector<4x8x1xf32>
    %121 = vector.broadcast %120 : vector<4x8x1xf32> to vector<4x8x8xf32>
    %122 = arith.subf %118, %121 : vector<4x8x8xf32>
    %123 = math.exp %122 : vector<4x8x8xf32>
    %cst_44 = arith.constant dense<0.000000e+00> : vector<4x8xf32>
    %124 = vector.multi_reduction <add>, %123, %cst_44 [2] : vector<4x8x8xf32> to vector<4x8xf32>
    %125 = vector.shape_cast %124 : vector<4x8xf32> to vector<4x8x1xf32>
    %126 = tpu.reciprocal %125 {approx = true} : vector<4x8x1xf32> -> vector<4x8x1xf32>
    %127 = vector.broadcast %126 : vector<4x8x1xf32> to vector<4x8x8xf32>
    %128 = arith.mulf %123, %127 : vector<4x8x8xf32>
    "tpu.trace_start"() <{level = 10 : i32, message = "bqk,bkd->bqd"}> : () -> ()
    %cst_45 = arith.constant dense<0.000000e+00> : vector<4x8x32xf32>
    %129 = tpu.matmul %128, %104, %cst_45 {dimension_numbers = #tpu.dot_dimension_numbers<[2], [1], [1], [2], [0, 0, 0, 1, 1, 2], [0], [0]>} : vector<4x8x8xf32>, vector<4x8x32xf32>, vector<4x8x32xf32> -> vector<4x8x32xf32>
    "tpu.trace_stop"() : () -> ()
    %130 = vector.extract_strided_slice %129 {offsets = [0, 0, 0], sizes = [2, 8, 32], strides = [1, 1, 1]} : vector<4x8x32xf32> to vector<2x8x32xf32>
    %131 = vector.extract_strided_slice %129 {offsets = [2, 0, 0], sizes = [2, 8, 32], strides = [1, 1, 1]} : vector<4x8x32xf32> to vector<2x8x32xf32>
    %132 = tpu.concatenate %130, %131 in 2 : vector<2x8x32xf32>, vector<2x8x32xf32> -> vector<2x8x64xf32>
    %133 = vector.shape_cast %132 : vector<2x8x64xf32> to vector<16x64xf32>
    %134 = arith.truncf %133 : vector<16x64xf32> to vector<16x64xbf16>
    %c0_46 = arith.constant 0 : index
    %c0_47 = arith.constant 0 : index
    %c0_48 = arith.constant 0 : index
    %135 = vector.load %arg11[%c0_46, %c0_47, %c0_48] : memref<2x64x64xbf16, #tpu.memory_space<vmem>>, vector<1x64x64xbf16>
    %136 = vector.shape_cast %135 : vector<1x64x64xbf16> to vector<64x64xbf16>
    %cst_49 = arith.constant dense<0.000000e+00> : vector<16x64xf32>
    %137 = tpu.matmul %134, %136, %cst_49 {dimension_numbers = #tpu.dot_dimension_numbers<[1], [0], [0], [1], [0, 0, 1, 1], [], []>} : vector<16x64xbf16>, vector<64x64xbf16>, vector<16x64xf32> -> vector<16x64xf32>
    %c0_50 = arith.constant 0 : index
    %c0_51 = arith.constant 0 : index
    %138 = vector.load %arg12[%c0_50, %c0_51] : memref<2x64xf32, #tpu.memory_space<vmem>>, vector<1x64xf32>
    %139 = vector.shape_cast %138 : vector<1x64xf32> to vector<64xf32>
    %140 = vector.shape_cast %139 : vector<64xf32> to vector<1x64xf32>
    %141 = vector.broadcast %140 : vector<1x64xf32> to vector<16x64xf32>
    %142 = arith.addf %137, %141 : vector<16x64xf32>
    %143 = arith.addf %86, %142 : vector<16x64xf32>
    %c0_52 = arith.constant 0 : index
    %c1 = arith.constant 1 : index
    %c0_53 = arith.constant 0 : index
    %144 = vector.load %arg17[%c0_52, %c1, %c0_53] : memref<2x3x64xf32, #tpu.memory_space<vmem>>, vector<1x1x64xf32>
    %145 = vector.shape_cast %144 : vector<1x1x64xf32> to vector<64xf32>
    %c0_54 = arith.constant 0 : index
    %c1_55 = arith.constant 1 : index
    %c0_56 = arith.constant 0 : index
    %146 = vector.load %arg18[%c0_54, %c1_55, %c0_56] : memref<2x3x64xf32, #tpu.memory_space<vmem>>, vector<1x1x64xf32>
    %147 = vector.shape_cast %146 : vector<1x1x64xf32> to vector<64xf32>
    %cst_57 = arith.constant dense<0.000000e+00> : vector<16xf32>
    %148 = vector.multi_reduction <add>, %143, %cst_57 [1] : vector<16x64xf32> to vector<16xf32>
    %149 = vector.shape_cast %148 : vector<16xf32> to vector<16x1xf32>
    %cst_58 = arith.constant 6.400000e+01 : f32
    %150 = vector.broadcast %cst_58 : f32 to vector<16x1xf32>
    %151 = arith.divf %149, %150 : vector<16x1xf32>
    %152 = vector.broadcast %151 : vector<16x1xf32> to vector<16x64xf32>
    %153 = arith.subf %143, %152 : vector<16x64xf32>
    %154 = arith.mulf %153, %153 : vector<16x64xf32>
    %cst_59 = arith.constant dense<0.000000e+00> : vector<16xf32>
    %155 = vector.multi_reduction <add>, %154, %cst_59 [1] : vector<16x64xf32> to vector<16xf32>
    %156 = vector.shape_cast %155 : vector<16xf32> to vector<16x1xf32>
    %cst_60 = arith.constant 6.400000e+01 : f32
    %157 = vector.broadcast %cst_60 : f32 to vector<16x1xf32>
    %158 = arith.divf %156, %157 : vector<16x1xf32>
    %159 = vector.broadcast %151 : vector<16x1xf32> to vector<16x64xf32>
    %160 = arith.subf %143, %159 : vector<16x64xf32>
    %cst_61 = arith.constant 9.99999974E-6 : f32
    %161 = vector.broadcast %cst_61 : f32 to vector<16x1xf32>
    %162 = arith.addf %158, %161 : vector<16x1xf32>
    %163 = math.rsqrt %162 : vector<16x1xf32>
    %164 = vector.broadcast %163 : vector<16x1xf32> to vector<16x64xf32>
    %165 = arith.mulf %160, %164 : vector<16x64xf32>
    %166 = vector.shape_cast %145 : vector<64xf32> to vector<1x64xf32>
    %167 = vector.broadcast %166 : vector<1x64xf32> to vector<16x64xf32>
    %168 = arith.mulf %165, %167 : vector<16x64xf32>
    %169 = vector.shape_cast %147 : vector<64xf32> to vector<1x64xf32>
    %170 = vector.broadcast %169 : vector<1x64xf32> to vector<16x64xf32>
    %171 = arith.addf %168, %170 : vector<16x64xf32>
    %172 = arith.truncf %171 : vector<16x64xf32> to vector<16x64xbf16>
    %c0_62 = arith.constant 0 : index
    %c0_63 = arith.constant 0 : index
    %c0_64 = arith.constant 0 : index
    %173 = vector.load %arg13[%c0_62, %c0_63, %c0_64] : memref<2x64x512xbf16, #tpu.memory_space<vmem>>, vector<1x64x512xbf16>
    %174 = vector.shape_cast %173 : vector<1x64x512xbf16> to vector<64x512xbf16>
    %cst_65 = arith.constant dense<0.000000e+00> : vector<16x512xf32>
    %175 = tpu.matmul %172, %174, %cst_65 {dimension_numbers = #tpu.dot_dimension_numbers<[1], [0], [0], [1], [0, 0, 1, 1], [], []>} : vector<16x64xbf16>, vector<64x512xbf16>, vector<16x512xf32> -> vector<16x512xf32>
    %c0_66 = arith.constant 0 : index
    %c0_67 = arith.constant 0 : index
    %176 = vector.load %arg14[%c0_66, %c0_67] : memref<2x512xf32, #tpu.memory_space<vmem>>, vector<1x512xf32>
    %177 = vector.shape_cast %176 : vector<1x512xf32> to vector<512xf32>
    %178 = vector.shape_cast %177 : vector<512xf32> to vector<1x512xf32>
    %179 = vector.broadcast %178 : vector<1x512xf32> to vector<16x512xf32>
    %180 = arith.addf %175, %179 : vector<16x512xf32>
    %cst_68 = arith.constant 0.000000e+00 : f32
    %181 = vector.broadcast %cst_68 : f32 to vector<16x512xf32>
    %182 = arith.maximumf %180, %181 : vector<16x512xf32>
    %183 = arith.truncf %182 : vector<16x512xf32> to vector<16x512xbf16>
    %c0_69 = arith.constant 0 : index
    %c0_70 = arith.constant 0 : index
    %c0_71 = arith.constant 0 : index
    %184 = vector.load %arg15[%c0_69, %c0_70, %c0_71] : memref<2x512x64xbf16, #tpu.memory_space<vmem>>, vector<1x512x64xbf16>
    %185 = vector.shape_cast %184 : vector<1x512x64xbf16> to vector<512x64xbf16>
    %cst_72 = arith.constant dense<0.000000e+00> : vector<16x64xf32>
    %186 = tpu.matmul %183, %185, %cst_72 {dimension_numbers = #tpu.dot_dimension_numbers<[1], [0], [0], [1], [0, 0, 1, 1], [], []>} : vector<16x512xbf16>, vector<512x64xbf16>, vector<16x64xf32> -> vector<16x64xf32>
    %c0_73 = arith.constant 0 : index
    %c0_74 = arith.constant 0 : index
    %187 = vector.load %arg16[%c0_73, %c0_74] : memref<2x64xf32, #tpu.memory_space<vmem>>, vector<1x64xf32>
    %188 = vector.shape_cast %187 : vector<1x64xf32> to vector<64xf32>
    %189 = vector.shape_cast %188 : vector<64xf32> to vector<1x64xf32>
    %190 = vector.broadcast %189 : vector<1x64xf32> to vector<16x64xf32>
    %191 = arith.addf %186, %190 : vector<16x64xf32>
    %192 = arith.addf %171, %191 : vector<16x64xf32>
    %c0_75 = arith.constant 0 : index
    %c2 = arith.constant 2 : index
    %c0_76 = arith.constant 0 : index
    %193 = vector.load %arg17[%c0_75, %c2, %c0_76] : memref<2x3x64xf32, #tpu.memory_space<vmem>>, vector<1x1x64xf32>
    %194 = vector.shape_cast %193 : vector<1x1x64xf32> to vector<64xf32>
    %c0_77 = arith.constant 0 : index
    %c2_78 = arith.constant 2 : index
    %c0_79 = arith.constant 0 : index
    %195 = vector.load %arg18[%c0_77, %c2_78, %c0_79] : memref<2x3x64xf32, #tpu.memory_space<vmem>>, vector<1x1x64xf32>
    %196 = vector.shape_cast %195 : vector<1x1x64xf32> to vector<64xf32>
    %cst_80 = arith.constant dense<0.000000e+00> : vector<16xf32>
    %197 = vector.multi_reduction <add>, %192, %cst_80 [1] : vector<16x64xf32> to vector<16xf32>
    %198 = vector.shape_cast %197 : vector<16xf32> to vector<16x1xf32>
    %cst_81 = arith.constant 6.400000e+01 : f32
    %199 = vector.broadcast %cst_81 : f32 to vector<16x1xf32>
    %200 = arith.divf %198, %199 : vector<16x1xf32>
    %201 = vector.broadcast %200 : vector<16x1xf32> to vector<16x64xf32>
    %202 = arith.subf %192, %201 : vector<16x64xf32>
    %203 = arith.mulf %202, %202 : vector<16x64xf32>
    %cst_82 = arith.constant dense<0.000000e+00> : vector<16xf32>
    %204 = vector.multi_reduction <add>, %203, %cst_82 [1] : vector<16x64xf32> to vector<16xf32>
    %205 = vector.shape_cast %204 : vector<16xf32> to vector<16x1xf32>
    %cst_83 = arith.constant 6.400000e+01 : f32
    %206 = vector.broadcast %cst_83 : f32 to vector<16x1xf32>
    %207 = arith.divf %205, %206 : vector<16x1xf32>
    %208 = vector.broadcast %200 : vector<16x1xf32> to vector<16x64xf32>
    %209 = arith.subf %192, %208 : vector<16x64xf32>
    %cst_84 = arith.constant 9.99999974E-6 : f32
    %210 = vector.broadcast %cst_84 : f32 to vector<16x1xf32>
    %211 = arith.addf %207, %210 : vector<16x1xf32>
    %212 = math.rsqrt %211 : vector<16x1xf32>
    %213 = vector.broadcast %212 : vector<16x1xf32> to vector<16x64xf32>
    %214 = arith.mulf %209, %213 : vector<16x64xf32>
    %215 = vector.shape_cast %194 : vector<64xf32> to vector<1x64xf32>
    %216 = vector.broadcast %215 : vector<1x64xf32> to vector<16x64xf32>
    %217 = arith.mulf %214, %216 : vector<16x64xf32>
    %218 = vector.shape_cast %196 : vector<64xf32> to vector<1x64xf32>
    %219 = vector.broadcast %218 : vector<1x64xf32> to vector<16x64xf32>
    %220 = arith.addf %217, %219 : vector<16x64xf32>
    %221 = arith.truncf %220 : vector<16x64xf32> to vector<16x64xbf16>
    %c1_85 = arith.constant 1 : index
    %c0_86 = arith.constant 0 : index
    %c0_87 = arith.constant 0 : index
    %222 = vector.load %arg3[%c1_85, %c0_86, %c0_87] : memref<2x64x192xbf16, #tpu.memory_space<vmem>>, vector<1x64x192xbf16>
    %223 = vector.shape_cast %222 : vector<1x64x192xbf16> to vector<64x192xbf16>
    %cst_88 = arith.constant dense<0.000000e+00> : vector<16x192xf32>
    %224 = tpu.matmul %221, %223, %cst_88 {dimension_numbers = #tpu.dot_dimension_numbers<[1], [0], [0], [1], [0, 0, 1, 1], [], []>} : vector<16x64xbf16>, vector<64x192xbf16>, vector<16x192xf32> -> vector<16x192xf32>
    %c1_89 = arith.constant 1 : index
    %c0_90 = arith.constant 0 : index
    %225 = vector.load %arg4[%c1_89, %c0_90] : memref<2x192xf32, #tpu.memory_space<vmem>>, vector<1x192xf32>
    %226 = vector.shape_cast %225 : vector<1x192xf32> to vector<192xf32>
    %227 = vector.shape_cast %226 : vector<192xf32> to vector<1x192xf32>
    %228 = vector.broadcast %227 : vector<1x192xf32> to vector<16x192xf32>
    %229 = arith.addf %224, %228 : vector<16x192xf32>
    %230 = vector.extract_strided_slice %229 {offsets = [0, 64], sizes = [16, 64], strides = [1, 1]} : vector<16x192xf32> to vector<16x64xf32>
    %231 = vector.shape_cast %230 : vector<16x64xf32> to vector<2x8x64xf32>
    %232 = vector.extract_strided_slice %231 {offsets = [0, 0, 0], sizes = [2, 8, 32], strides = [1, 1, 1]} : vector<2x8x64xf32> to vector<2x8x32xf32>
    %233 = vector.extract_strided_slice %231 {offsets = [0, 0, 32], sizes = [2, 8, 32], strides = [1, 1, 1]} : vector<2x8x64xf32> to vector<2x8x32xf32>
    %234 = tpu.concatenate %232, %233 in 0 : vector<2x8x32xf32>, vector<2x8x32xf32> -> vector<4x8x32xf32>
    %235 = vector.extract_strided_slice %229 {offsets = [0, 128], sizes = [16, 64], strides = [1, 1]} : vector<16x192xf32> to vector<16x64xf32>
    %236 = vector.shape_cast %235 : vector<16x64xf32> to vector<2x8x64xf32>
    %237 = vector.extract_strided_slice %236 {offsets = [0, 0, 0], sizes = [2, 8, 32], strides = [1, 1, 1]} : vector<2x8x64xf32> to vector<2x8x32xf32>
    %238 = vector.extract_strided_slice %236 {offsets = [0, 0, 32], sizes = [2, 8, 32], strides = [1, 1, 1]} : vector<2x8x64xf32> to vector<2x8x32xf32>
    %239 = tpu.concatenate %237, %238 in 0 : vector<2x8x32xf32>, vector<2x8x32xf32> -> vector<4x8x32xf32>
    %240 = vector.extract_strided_slice %229 {offsets = [0, 0], sizes = [16, 64], strides = [1, 1]} : vector<16x192xf32> to vector<16x64xf32>
    %241 = vector.shape_cast %240 : vector<16x64xf32> to vector<2x8x64xf32>
    %242 = vector.extract_strided_slice %241 {offsets = [0, 7, 0], sizes = [2, 1, 64], strides = [1, 1, 1]} : vector<2x8x64xf32> to vector<2x1x64xf32>
    %243 = vector.extract_strided_slice %242 {offsets = [0, 0, 0], sizes = [2, 1, 32], strides = [1, 1, 1]} : vector<2x1x64xf32> to vector<2x1x32xf32>
    %244 = vector.extract_strided_slice %242 {offsets = [0, 0, 32], sizes = [2, 1, 32], strides = [1, 1, 1]} : vector<2x1x64xf32> to vector<2x1x32xf32>
    %245 = tpu.concatenate %243, %244 in 0 : vector<2x1x32xf32>, vector<2x1x32xf32> -> vector<4x1x32xf32>
    "tpu.trace_start"() <{level = 10 : i32, message = "bqd,bkd->bqk"}> : () -> ()
    %cst_91 = arith.constant dense<0.000000e+00> : vector<4x1x8xf32>
    %246 = tpu.matmul %245, %234, %cst_91 {dimension_numbers = #tpu.dot_dimension_numbers<[2], [2], [1], [1], [0, 0, 0, 1, 1, 1], [0], [0]>} : vector<4x1x32xf32>, vector<4x8x32xf32>, vector<4x1x8xf32> -> vector<4x1x8xf32>
    "tpu.trace_stop"() : () -> ()
    %247 = vector.broadcast %6 : vector<1x1x8xf32> to vector<4x1x8xf32>
    %248 = arith.addf %246, %247 : vector<4x1x8xf32>
    %cst_92 = arith.constant dense<0xFF800000> : vector<4x1xf32>
    %249 = vector.multi_reduction <maximumf>, %248, %cst_92 [2] : vector<4x1x8xf32> to vector<4x1xf32>
    %250 = vector.shape_cast %249 : vector<4x1xf32> to vector<4x1x1xf32>
    %251 = vector.broadcast %250 : vector<4x1x1xf32> to vector<4x1x8xf32>
    %252 = arith.subf %248, %251 : vector<4x1x8xf32>
    %253 = math.exp %252 : vector<4x1x8xf32>
    %cst_93 = arith.constant dense<0.000000e+00> : vector<4x1xf32>
    %254 = vector.multi_reduction <add>, %253, %cst_93 [2] : vector<4x1x8xf32> to vector<4x1xf32>
    %255 = vector.shape_cast %254 : vector<4x1xf32> to vector<4x1x1xf32>
    %256 = tpu.reciprocal %255 {approx = true} : vector<4x1x1xf32> -> vector<4x1x1xf32>
    %257 = vector.broadcast %256 : vector<4x1x1xf32> to vector<4x1x8xf32>
    %258 = arith.mulf %253, %257 : vector<4x1x8xf32>
    "tpu.trace_start"() <{level = 10 : i32, message = "bqk,bkd->bqd"}> : () -> ()
    %cst_94 = arith.constant dense<0.000000e+00> : vector<4x1x32xf32>
    %259 = tpu.matmul %258, %239, %cst_94 {dimension_numbers = #tpu.dot_dimension_numbers<[2], [1], [1], [2], [0, 0, 0, 1, 1, 2], [0], [0]>} : vector<4x1x8xf32>, vector<4x8x32xf32>, vector<4x1x32xf32> -> vector<4x1x32xf32>
    "tpu.trace_stop"() : () -> ()
    %260 = vector.extract_strided_slice %259 {offsets = [0, 0, 0], sizes = [2, 1, 32], strides = [1, 1, 1]} : vector<4x1x32xf32> to vector<2x1x32xf32>
    %261 = vector.extract_strided_slice %259 {offsets = [2, 0, 0], sizes = [2, 1, 32], strides = [1, 1, 1]} : vector<4x1x32xf32> to vector<2x1x32xf32>
    %262 = tpu.concatenate %260, %261 in 2 : vector<2x1x32xf32>, vector<2x1x32xf32> -> vector<2x1x64xf32>
    %263 = vector.shape_cast %262 : vector<2x1x64xf32> to vector<2x64xf32>
    %264 = arith.truncf %263 : vector<2x64xf32> to vector<2x64xbf16>
    %c1_95 = arith.constant 1 : index
    %c0_96 = arith.constant 0 : index
    %c0_97 = arith.constant 0 : index
    %265 = vector.load %arg5[%c1_95, %c0_96, %c0_97] : memref<2x64x64xbf16, #tpu.memory_space<vmem>>, vector<1x64x64xbf16>
    %266 = vector.shape_cast %265 : vector<1x64x64xbf16> to vector<64x64xbf16>
    %cst_98 = arith.constant dense<0.000000e+00> : vector<2x64xf32>
    %267 = tpu.matmul %264, %266, %cst_98 {dimension_numbers = #tpu.dot_dimension_numbers<[1], [0], [0], [1], [0, 0, 1, 1], [], []>} : vector<2x64xbf16>, vector<64x64xbf16>, vector<2x64xf32> -> vector<2x64xf32>
    %c1_99 = arith.constant 1 : index
    %c0_100 = arith.constant 0 : index
    %268 = vector.load %arg6[%c1_99, %c0_100] : memref<2x64xf32, #tpu.memory_space<vmem>>, vector<1x64xf32>
    %269 = vector.shape_cast %268 : vector<1x64xf32> to vector<64xf32>
    %270 = vector.shape_cast %269 : vector<64xf32> to vector<1x64xf32>
    %271 = vector.broadcast %270 : vector<1x64xf32> to vector<2x64xf32>
    %272 = arith.addf %267, %271 : vector<2x64xf32>
    %273 = vector.shape_cast %220 : vector<16x64xf32> to vector<2x8x64xf32>
    %274 = vector.extract_strided_slice %273 {offsets = [0, 7, 0], sizes = [2, 1, 64], strides = [1, 1, 1]} : vector<2x8x64xf32> to vector<2x1x64xf32>
    %275 = vector.shape_cast %274 : vector<2x1x64xf32> to vector<2x64xf32>
    %276 = arith.addf %275, %272 : vector<2x64xf32>
    %c1_101 = arith.constant 1 : index
    %c0_102 = arith.constant 0 : index
    %c0_103 = arith.constant 0 : index
    %277 = vector.load %arg17[%c1_101, %c0_102, %c0_103] : memref<2x3x64xf32, #tpu.memory_space<vmem>>, vector<1x1x64xf32>
    %278 = vector.shape_cast %277 : vector<1x1x64xf32> to vector<64xf32>
    %c1_104 = arith.constant 1 : index
    %c0_105 = arith.constant 0 : index
    %c0_106 = arith.constant 0 : index
    %279 = vector.load %arg18[%c1_104, %c0_105, %c0_106] : memref<2x3x64xf32, #tpu.memory_space<vmem>>, vector<1x1x64xf32>
    %280 = vector.shape_cast %279 : vector<1x1x64xf32> to vector<64xf32>
    %cst_107 = arith.constant dense<0.000000e+00> : vector<2xf32>
    %281 = vector.multi_reduction <add>, %276, %cst_107 [1] : vector<2x64xf32> to vector<2xf32>
    %282 = vector.shape_cast %281 : vector<2xf32> to vector<2x1xf32>
    %cst_108 = arith.constant 6.400000e+01 : f32
    %283 = vector.broadcast %cst_108 : f32 to vector<2x1xf32>
    %284 = arith.divf %282, %283 : vector<2x1xf32>
    %285 = vector.broadcast %284 : vector<2x1xf32> to vector<2x64xf32>
    %286 = arith.subf %276, %285 : vector<2x64xf32>
    %287 = arith.mulf %286, %286 : vector<2x64xf32>
    %cst_109 = arith.constant dense<0.000000e+00> : vector<2xf32>
    %288 = vector.multi_reduction <add>, %287, %cst_109 [1] : vector<2x64xf32> to vector<2xf32>
    %289 = vector.shape_cast %288 : vector<2xf32> to vector<2x1xf32>
    %cst_110 = arith.constant 6.400000e+01 : f32
    %290 = vector.broadcast %cst_110 : f32 to vector<2x1xf32>
    %291 = arith.divf %289, %290 : vector<2x1xf32>
    %292 = vector.broadcast %284 : vector<2x1xf32> to vector<2x64xf32>
    %293 = arith.subf %276, %292 : vector<2x64xf32>
    %cst_111 = arith.constant 9.99999974E-6 : f32
    %294 = vector.broadcast %cst_111 : f32 to vector<2x1xf32>
    %295 = arith.addf %291, %294 : vector<2x1xf32>
    %296 = math.rsqrt %295 : vector<2x1xf32>
    %297 = vector.broadcast %296 : vector<2x1xf32> to vector<2x64xf32>
    %298 = arith.mulf %293, %297 : vector<2x64xf32>
    %299 = vector.shape_cast %278 : vector<64xf32> to vector<1x64xf32>
    %300 = vector.broadcast %299 : vector<1x64xf32> to vector<2x64xf32>
    %301 = arith.mulf %298, %300 : vector<2x64xf32>
    %302 = vector.shape_cast %280 : vector<64xf32> to vector<1x64xf32>
    %303 = vector.broadcast %302 : vector<1x64xf32> to vector<2x64xf32>
    %304 = arith.addf %301, %303 : vector<2x64xf32>
    %c1_112 = arith.constant 1 : index
    %c0_113 = arith.constant 0 : index
    %c0_114 = arith.constant 0 : index
    %305 = vector.load %arg9[%c1_112, %c0_113, %c0_114] : memref<2x64x128xbf16, #tpu.memory_space<vmem>>, vector<1x64x128xbf16>
    %306 = vector.shape_cast %305 : vector<1x64x128xbf16> to vector<64x128xbf16>
    %cst_115 = arith.constant dense<0.000000e+00> : vector<16x128xf32>
    %307 = tpu.matmul %2, %306, %cst_115 {dimension_numbers = #tpu.dot_dimension_numbers<[1], [0], [0], [1], [0, 0, 1, 1], [], []>} : vector<16x64xbf16>, vector<64x128xbf16>, vector<16x128xf32> -> vector<16x128xf32>
    %c1_116 = arith.constant 1 : index
    %c0_117 = arith.constant 0 : index
    %308 = vector.load %arg10[%c1_116, %c0_117] : memref<2x128xf32, #tpu.memory_space<vmem>>, vector<1x128xf32>
    %309 = vector.shape_cast %308 : vector<1x128xf32> to vector<128xf32>
    %310 = vector.shape_cast %309 : vector<128xf32> to vector<1x128xf32>
    %311 = vector.broadcast %310 : vector<1x128xf32> to vector<16x128xf32>
    %312 = arith.addf %307, %311 : vector<16x128xf32>
    %313 = vector.extract_strided_slice %312 {offsets = [0, 0], sizes = [16, 64], strides = [1, 1]} : vector<16x128xf32> to vector<16x64xf32>
    %314 = vector.shape_cast %313 : vector<16x64xf32> to vector<2x8x64xf32>
    %315 = vector.extract_strided_slice %314 {offsets = [0, 0, 0], sizes = [2, 8, 32], strides = [1, 1, 1]} : vector<2x8x64xf32> to vector<2x8x32xf32>
    %316 = vector.extract_strided_slice %314 {offsets = [0, 0, 32], sizes = [2, 8, 32], strides = [1, 1, 1]} : vector<2x8x64xf32> to vector<2x8x32xf32>
    %317 = tpu.concatenate %315, %316 in 0 : vector<2x8x32xf32>, vector<2x8x32xf32> -> vector<4x8x32xf32>
    %318 = vector.extract_strided_slice %312 {offsets = [0, 64], sizes = [16, 64], strides = [1, 1]} : vector<16x128xf32> to vector<16x64xf32>
    %319 = vector.shape_cast %318 : vector<16x64xf32> to vector<2x8x64xf32>
    %320 = vector.extract_strided_slice %319 {offsets = [0, 0, 0], sizes = [2, 8, 32], strides = [1, 1, 1]} : vector<2x8x64xf32> to vector<2x8x32xf32>
    %321 = vector.extract_strided_slice %319 {offsets = [0, 0, 32], sizes = [2, 8, 32], strides = [1, 1, 1]} : vector<2x8x64xf32> to vector<2x8x32xf32>
    %322 = tpu.concatenate %320, %321 in 0 : vector<2x8x32xf32>, vector<2x8x32xf32> -> vector<4x8x32xf32>
    %323 = arith.truncf %304 : vector<2x64xf32> to vector<2x64xbf16>
    %c1_118 = arith.constant 1 : index
    %c0_119 = arith.constant 0 : index
    %c0_120 = arith.constant 0 : index
    %324 = vector.load %arg7[%c1_118, %c0_119, %c0_120] : memref<2x64x64xbf16, #tpu.memory_space<vmem>>, vector<1x64x64xbf16>
    %325 = vector.shape_cast %324 : vector<1x64x64xbf16> to vector<64x64xbf16>
    %cst_121 = arith.constant dense<0.000000e+00> : vector<2x64xf32>
    %326 = tpu.matmul %323, %325, %cst_121 {dimension_numbers = #tpu.dot_dimension_numbers<[1], [0], [0], [1], [0, 0, 1, 1], [], []>} : vector<2x64xbf16>, vector<64x64xbf16>, vector<2x64xf32> -> vector<2x64xf32>
    %c1_122 = arith.constant 1 : index
    %c0_123 = arith.constant 0 : index
    %327 = vector.load %arg8[%c1_122, %c0_123] : memref<2x64xf32, #tpu.memory_space<vmem>>, vector<1x64xf32>
    %328 = vector.shape_cast %327 : vector<1x64xf32> to vector<64xf32>
    %329 = vector.shape_cast %328 : vector<64xf32> to vector<1x64xf32>
    %330 = vector.broadcast %329 : vector<1x64xf32> to vector<2x64xf32>
    %331 = arith.addf %326, %330 : vector<2x64xf32>
    %332 = vector.shape_cast %331 : vector<2x64xf32> to vector<2x1x64xf32>
    %333 = vector.extract_strided_slice %332 {offsets = [0, 0, 0], sizes = [2, 1, 32], strides = [1, 1, 1]} : vector<2x1x64xf32> to vector<2x1x32xf32>
    %334 = vector.extract_strided_slice %332 {offsets = [0, 0, 32], sizes = [2, 1, 32], strides = [1, 1, 1]} : vector<2x1x64xf32> to vector<2x1x32xf32>
    %335 = tpu.concatenate %333, %334 in 0 : vector<2x1x32xf32>, vector<2x1x32xf32> -> vector<4x1x32xf32>
    "tpu.trace_start"() <{level = 10 : i32, message = "bqd,bkd->bqk"}> : () -> ()
    %cst_124 = arith.constant dense<0.000000e+00> : vector<4x1x8xf32>
    %336 = tpu.matmul %335, %317, %cst_124 {dimension_numbers = #tpu.dot_dimension_numbers<[2], [2], [1], [1], [0, 0, 0, 1, 1, 1], [0], [0]>} : vector<4x1x32xf32>, vector<4x8x32xf32>, vector<4x1x8xf32> -> vector<4x1x8xf32>
    "tpu.trace_stop"() : () -> ()
    %cst_125 = arith.constant dense<0xFF800000> : vector<4x1xf32>
    %337 = vector.multi_reduction <maximumf>, %336, %cst_125 [2] : vector<4x1x8xf32> to vector<4x1xf32>
    %338 = vector.shape_cast %337 : vector<4x1xf32> to vector<4x1x1xf32>
    %339 = vector.broadcast %338 : vector<4x1x1xf32> to vector<4x1x8xf32>
    %340 = arith.subf %336, %339 : vector<4x1x8xf32>
    %341 = math.exp %340 : vector<4x1x8xf32>
    %cst_126 = arith.constant dense<0.000000e+00> : vector<4x1xf32>
    %342 = vector.multi_reduction <add>, %341, %cst_126 [2] : vector<4x1x8xf32> to vector<4x1xf32>
    %343 = vector.shape_cast %342 : vector<4x1xf32> to vector<4x1x1xf32>
    %344 = tpu.reciprocal %343 {approx = true} : vector<4x1x1xf32> -> vector<4x1x1xf32>
    %345 = vector.broadcast %344 : vector<4x1x1xf32> to vector<4x1x8xf32>
    %346 = arith.mulf %341, %345 : vector<4x1x8xf32>
    "tpu.trace_start"() <{level = 10 : i32, message = "bqk,bkd->bqd"}> : () -> ()
    %cst_127 = arith.constant dense<0.000000e+00> : vector<4x1x32xf32>
    %347 = tpu.matmul %346, %322, %cst_127 {dimension_numbers = #tpu.dot_dimension_numbers<[2], [1], [1], [2], [0, 0, 0, 1, 1, 2], [0], [0]>} : vector<4x1x8xf32>, vector<4x8x32xf32>, vector<4x1x32xf32> -> vector<4x1x32xf32>
    "tpu.trace_stop"() : () -> ()
    %348 = vector.extract_strided_slice %347 {offsets = [0, 0, 0], sizes = [2, 1, 32], strides = [1, 1, 1]} : vector<4x1x32xf32> to vector<2x1x32xf32>
    %349 = vector.extract_strided_slice %347 {offsets = [2, 0, 0], sizes = [2, 1, 32], strides = [1, 1, 1]} : vector<4x1x32xf32> to vector<2x1x32xf32>
    %350 = tpu.concatenate %348, %349 in 2 : vector<2x1x32xf32>, vector<2x1x32xf32> -> vector<2x1x64xf32>
    %351 = vector.shape_cast %350 : vector<2x1x64xf32> to vector<2x64xf32>
    %352 = arith.truncf %351 : vector<2x64xf32> to vector<2x64xbf16>
    %c1_128 = arith.constant 1 : index
    %c0_129 = arith.constant 0 : index
    %c0_130 = arith.constant 0 : index
    %353 = vector.load %arg11[%c1_128, %c0_129, %c0_130] : memref<2x64x64xbf16, #tpu.memory_space<vmem>>, vector<1x64x64xbf16>
    %354 = vector.shape_cast %353 : vector<1x64x64xbf16> to vector<64x64xbf16>
    %cst_131 = arith.constant dense<0.000000e+00> : vector<2x64xf32>
    %355 = tpu.matmul %352, %354, %cst_131 {dimension_numbers = #tpu.dot_dimension_numbers<[1], [0], [0], [1], [0, 0, 1, 1], [], []>} : vector<2x64xbf16>, vector<64x64xbf16>, vector<2x64xf32> -> vector<2x64xf32>
    %c1_132 = arith.constant 1 : index
    %c0_133 = arith.constant 0 : index
    %356 = vector.load %arg12[%c1_132, %c0_133] : memref<2x64xf32, #tpu.memory_space<vmem>>, vector<1x64xf32>
    %357 = vector.shape_cast %356 : vector<1x64xf32> to vector<64xf32>
    %358 = vector.shape_cast %357 : vector<64xf32> to vector<1x64xf32>
    %359 = vector.broadcast %358 : vector<1x64xf32> to vector<2x64xf32>
    %360 = arith.addf %355, %359 : vector<2x64xf32>
    %361 = arith.addf %304, %360 : vector<2x64xf32>
    %c1_134 = arith.constant 1 : index
    %c1_135 = arith.constant 1 : index
    %c0_136 = arith.constant 0 : index
    %362 = vector.load %arg17[%c1_134, %c1_135, %c0_136] : memref<2x3x64xf32, #tpu.memory_space<vmem>>, vector<1x1x64xf32>
    %363 = vector.shape_cast %362 : vector<1x1x64xf32> to vector<64xf32>
    %c1_137 = arith.constant 1 : index
    %c1_138 = arith.constant 1 : index
    %c0_139 = arith.constant 0 : index
    %364 = vector.load %arg18[%c1_137, %c1_138, %c0_139] : memref<2x3x64xf32, #tpu.memory_space<vmem>>, vector<1x1x64xf32>
    %365 = vector.shape_cast %364 : vector<1x1x64xf32> to vector<64xf32>
    %cst_140 = arith.constant dense<0.000000e+00> : vector<2xf32>
    %366 = vector.multi_reduction <add>, %361, %cst_140 [1] : vector<2x64xf32> to vector<2xf32>
    %367 = vector.shape_cast %366 : vector<2xf32> to vector<2x1xf32>
    %cst_141 = arith.constant 6.400000e+01 : f32
    %368 = vector.broadcast %cst_141 : f32 to vector<2x1xf32>
    %369 = arith.divf %367, %368 : vector<2x1xf32>
    %370 = vector.broadcast %369 : vector<2x1xf32> to vector<2x64xf32>
    %371 = arith.subf %361, %370 : vector<2x64xf32>
    %372 = arith.mulf %371, %371 : vector<2x64xf32>
    %cst_142 = arith.constant dense<0.000000e+00> : vector<2xf32>
    %373 = vector.multi_reduction <add>, %372, %cst_142 [1] : vector<2x64xf32> to vector<2xf32>
    %374 = vector.shape_cast %373 : vector<2xf32> to vector<2x1xf32>
    %cst_143 = arith.constant 6.400000e+01 : f32
    %375 = vector.broadcast %cst_143 : f32 to vector<2x1xf32>
    %376 = arith.divf %374, %375 : vector<2x1xf32>
    %377 = vector.broadcast %369 : vector<2x1xf32> to vector<2x64xf32>
    %378 = arith.subf %361, %377 : vector<2x64xf32>
    %cst_144 = arith.constant 9.99999974E-6 : f32
    %379 = vector.broadcast %cst_144 : f32 to vector<2x1xf32>
    %380 = arith.addf %376, %379 : vector<2x1xf32>
    %381 = math.rsqrt %380 : vector<2x1xf32>
    %382 = vector.broadcast %381 : vector<2x1xf32> to vector<2x64xf32>
    %383 = arith.mulf %378, %382 : vector<2x64xf32>
    %384 = vector.shape_cast %363 : vector<64xf32> to vector<1x64xf32>
    %385 = vector.broadcast %384 : vector<1x64xf32> to vector<2x64xf32>
    %386 = arith.mulf %383, %385 : vector<2x64xf32>
    %387 = vector.shape_cast %365 : vector<64xf32> to vector<1x64xf32>
    %388 = vector.broadcast %387 : vector<1x64xf32> to vector<2x64xf32>
    %389 = arith.addf %386, %388 : vector<2x64xf32>
    %390 = arith.truncf %389 : vector<2x64xf32> to vector<2x64xbf16>
    %c1_145 = arith.constant 1 : index
    %c0_146 = arith.constant 0 : index
    %c0_147 = arith.constant 0 : index
    %391 = vector.load %arg13[%c1_145, %c0_146, %c0_147] : memref<2x64x512xbf16, #tpu.memory_space<vmem>>, vector<1x64x512xbf16>
    %392 = vector.shape_cast %391 : vector<1x64x512xbf16> to vector<64x512xbf16>
    %cst_148 = arith.constant dense<0.000000e+00> : vector<2x512xf32>
    %393 = tpu.matmul %390, %392, %cst_148 {dimension_numbers = #tpu.dot_dimension_numbers<[1], [0], [0], [1], [0, 0, 1, 1], [], []>} : vector<2x64xbf16>, vector<64x512xbf16>, vector<2x512xf32> -> vector<2x512xf32>
    %c1_149 = arith.constant 1 : index
    %c0_150 = arith.constant 0 : index
    %394 = vector.load %arg14[%c1_149, %c0_150] : memref<2x512xf32, #tpu.memory_space<vmem>>, vector<1x512xf32>
    %395 = vector.shape_cast %394 : vector<1x512xf32> to vector<512xf32>
    %396 = vector.shape_cast %395 : vector<512xf32> to vector<1x512xf32>
    %397 = vector.broadcast %396 : vector<1x512xf32> to vector<2x512xf32>
    %398 = arith.addf %393, %397 : vector<2x512xf32>
    %cst_151 = arith.constant 0.000000e+00 : f32
    %399 = vector.broadcast %cst_151 : f32 to vector<2x512xf32>
    %400 = arith.maximumf %398, %399 : vector<2x512xf32>
    %401 = arith.truncf %400 : vector<2x512xf32> to vector<2x512xbf16>
    %c1_152 = arith.constant 1 : index
    %c0_153 = arith.constant 0 : index
    %c0_154 = arith.constant 0 : index
    %402 = vector.load %arg15[%c1_152, %c0_153, %c0_154] : memref<2x512x64xbf16, #tpu.memory_space<vmem>>, vector<1x512x64xbf16>
    %403 = vector.shape_cast %402 : vector<1x512x64xbf16> to vector<512x64xbf16>
    %cst_155 = arith.constant dense<0.000000e+00> : vector<2x64xf32>
    %404 = tpu.matmul %401, %403, %cst_155 {dimension_numbers = #tpu.dot_dimension_numbers<[1], [0], [0], [1], [0, 0, 1, 1], [], []>} : vector<2x512xbf16>, vector<512x64xbf16>, vector<2x64xf32> -> vector<2x64xf32>
    %c1_156 = arith.constant 1 : index
    %c0_157 = arith.constant 0 : index
    %405 = vector.load %arg16[%c1_156, %c0_157] : memref<2x64xf32, #tpu.memory_space<vmem>>, vector<1x64xf32>
    %406 = vector.shape_cast %405 : vector<1x64xf32> to vector<64xf32>
    %407 = vector.shape_cast %406 : vector<64xf32> to vector<1x64xf32>
    %408 = vector.broadcast %407 : vector<1x64xf32> to vector<2x64xf32>
    %409 = arith.addf %404, %408 : vector<2x64xf32>
    %410 = arith.addf %389, %409 : vector<2x64xf32>
    %c1_158 = arith.constant 1 : index
    %c2_159 = arith.constant 2 : index
    %c0_160 = arith.constant 0 : index
    %411 = vector.load %arg17[%c1_158, %c2_159, %c0_160] : memref<2x3x64xf32, #tpu.memory_space<vmem>>, vector<1x1x64xf32>
    %412 = vector.shape_cast %411 : vector<1x1x64xf32> to vector<64xf32>
    %c1_161 = arith.constant 1 : index
    %c2_162 = arith.constant 2 : index
    %c0_163 = arith.constant 0 : index
    %413 = vector.load %arg18[%c1_161, %c2_162, %c0_163] : memref<2x3x64xf32, #tpu.memory_space<vmem>>, vector<1x1x64xf32>
    %414 = vector.shape_cast %413 : vector<1x1x64xf32> to vector<64xf32>
    %cst_164 = arith.constant dense<0.000000e+00> : vector<2xf32>
    %415 = vector.multi_reduction <add>, %410, %cst_164 [1] : vector<2x64xf32> to vector<2xf32>
    %416 = vector.shape_cast %415 : vector<2xf32> to vector<2x1xf32>
    %cst_165 = arith.constant 6.400000e+01 : f32
    %417 = vector.broadcast %cst_165 : f32 to vector<2x1xf32>
    %418 = arith.divf %416, %417 : vector<2x1xf32>
    %419 = vector.broadcast %418 : vector<2x1xf32> to vector<2x64xf32>
    %420 = arith.subf %410, %419 : vector<2x64xf32>
    %421 = arith.mulf %420, %420 : vector<2x64xf32>
    %cst_166 = arith.constant dense<0.000000e+00> : vector<2xf32>
    %422 = vector.multi_reduction <add>, %421, %cst_166 [1] : vector<2x64xf32> to vector<2xf32>
    %423 = vector.shape_cast %422 : vector<2xf32> to vector<2x1xf32>
    %cst_167 = arith.constant 6.400000e+01 : f32
    %424 = vector.broadcast %cst_167 : f32 to vector<2x1xf32>
    %425 = arith.divf %423, %424 : vector<2x1xf32>
    %426 = vector.broadcast %418 : vector<2x1xf32> to vector<2x64xf32>
    %427 = arith.subf %410, %426 : vector<2x64xf32>
    %cst_168 = arith.constant 9.99999974E-6 : f32
    %428 = vector.broadcast %cst_168 : f32 to vector<2x1xf32>
    %429 = arith.addf %425, %428 : vector<2x1xf32>
    %430 = math.rsqrt %429 : vector<2x1xf32>
    %431 = vector.broadcast %430 : vector<2x1xf32> to vector<2x64xf32>
    %432 = arith.mulf %427, %431 : vector<2x64xf32>
    %433 = vector.shape_cast %412 : vector<64xf32> to vector<1x64xf32>
    %434 = vector.broadcast %433 : vector<1x64xf32> to vector<2x64xf32>
    %435 = arith.mulf %432, %434 : vector<2x64xf32>
    %436 = vector.shape_cast %414 : vector<64xf32> to vector<1x64xf32>
    %437 = vector.broadcast %436 : vector<1x64xf32> to vector<2x64xf32>
    %438 = arith.addf %435, %437 : vector<2x64xf32>
    %439 = vector.shape_cast %438 : vector<2x64xf32> to vector<2x1x64xf32>
    %c0_169 = arith.constant 0 : index
    %c0_170 = arith.constant 0 : index
    %c0_171 = arith.constant 0 : index
    %440 = vector.load %arg19[%c0_169, %c0_170, %c0_171] : memref<2x1x64xf32, #tpu.memory_space<vmem>>, vector<2x1x64xf32>
    tpu.vector_store %arg19[%c0_169, %c0_170, %c0_171], %439 {strides = array<i32>} : memref<2x1x64xf32, #tpu.memory_space<vmem>>, vector<2x1x64xf32>,
    return
  }
  func.func @transform_0(%arg0: i32) -> (i32, i32, i32) {
    %c0_i32 = arith.constant 0 : i32
    %c0_i32_0 = arith.constant 0 : i32
    %c0_i32_1 = arith.constant 0 : i32
    %c0_i32_2 = arith.constant 0 : i32
    return %c0_i32, %c0_i32_0, %c0_i32_1 : i32, i32, i32
  }
  func.func @transform_1(%arg0: i32) -> (i32, i32) {
    %c0_i32 = arith.constant 0 : i32
    %c0_i32_0 = arith.constant 0 : i32
    %c0_i32_1 = arith.constant 0 : i32
    return %c0_i32, %c0_i32_0 : i32, i32
  }
  func.func @transform_2(%arg0: i32) -> (i32, i32, i32) {
    %c0_i32 = arith.constant 0 : i32
    %c0_i32_0 = arith.constant 0 : i32
    %c0_i32_1 = arith.constant 0 : i32
    %c0_i32_2 = arith.constant 0 : i32
    return %c0_i32, %c0_i32_0, %c0_i32_1 : i32, i32, i32
  }
  func.func @transform_3(%arg0: i32) -> (i32, i32) {
    %c0_i32 = arith.constant 0 : i32
    %c0_i32_0 = arith.constant 0 : i32
    %c0_i32_1 = arith.constant 0 : i32
    return %c0_i32, %c0_i32_0 : i32, i32
  }
  func.func @transform_4(%arg0: i32) -> (i32, i32, i32) {
    %c0_i32 = arith.constant 0 : i32
    %c0_i32_0 = arith.constant 0 : i32
    %c0_i32_1 = arith.constant 0 : i32
    %c0_i32_2 = arith.constant 0 : i32
    return %c0_i32, %c0_i32_0, %c0_i32_1 : i32, i32, i32
  }
  func.func @transform_5(%arg0: i32) -> (i32, i32) {
    %c0_i32 = arith.constant 0 : i32
    %c0_i32_0 = arith.constant 0 : i32
    %c0_i32_1 = arith.constant 0 : i32
    return %c0_i32, %c0_i32_0 : i32, i32
  }
  func.func @transform_6(%arg0: i32) -> (i32, i32, i32) {
    %c0_i32 = arith.constant 0 : i32
    %c0_i32_0 = arith.constant 0 : i32
    %c0_i32_1 = arith.constant 0 : i32
    %c0_i32_2 = arith.constant 0 : i32
    return %c0_i32, %c0_i32_0, %c0_i32_1 : i32, i32, i32
  }
  func.func @transform_7(%arg0: i32) -> (i32, i32) {
    %c0_i32 = arith.constant 0 : i32
    %c0_i32_0 = arith.constant 0 : i32
    %c0_i32_1 = arith.constant 0 : i32
    return %c0_i32, %c0_i32_0 : i32, i32
  }
  func.func @transform_8(%arg0: i32) -> (i32, i32, i32) {
    %c0_i32 = arith.constant 0 : i32
    %c0_i32_0 = arith.constant 0 : i32
    %c0_i32_1 = arith.constant 0 : i32
    %c0_i32_2 = arith.constant 0 : i32
    return %c0_i32, %c0_i32_0, %c0_i32_1 : i32, i32, i32
  }
  func.func @transform_9(%arg0: i32) -> (i32, i32) {
    %c0_i32 = arith.constant 0 : i32
    %c0_i32_0 = arith.constant 0 : i32
    %c0_i32_1 = arith.constant 0 : i32
    return %c0_i32, %c0_i32_0 : i32, i32
  }
  func.func @transform_10(%arg0: i32) -> (i32, i32, i32) {
    %c0_i32 = arith.constant 0 : i32
    %c0_i32_0 = arith.constant 0 : i32
    %c0_i32_1 = arith.constant 0 : i32
    %c0_i32_2 = arith.constant 0 : i32
    return %c0_i32, %c0_i32_0, %c0_i32_1 : i32, i32, i32
  }
  func.func @transform_11(%arg0: i32) -> (i32, i32) {
    %c0_i32 = arith.constant 0 : i32
    %c0_i32_0 = arith.constant 0 : i32
    %c0_i32_1 = arith.constant 0 : i32
    return %c0_i32, %c0_i32_0 : i32, i32
  }
  func.func @transform_12(%arg0: i32) -> (i32, i32, i32) {
    %c0_i32 = arith.constant 0 : i32
    %c0_i32_0 = arith.constant 0 : i32
    %c0_i32_1 = arith.constant 0 : i32
    %c0_i32_2 = arith.constant 0 : i32
    return %c0_i32, %c0_i32_0, %c0_i32_1 : i32, i32, i32
  }
  func.func @transform_13(%arg0: i32) -> (i32, i32) {
    %c0_i32 = arith.constant 0 : i32
    %c0_i32_0 = arith.constant 0 : i32
    %c0_i32_1 = arith.constant 0 : i32
    return %c0_i32, %c0_i32_0 : i32, i32
  }
  func.func @transform_14(%arg0: i32) -> (i32, i32, i32) {
    %c0_i32 = arith.constant 0 : i32
    %c0_i32_0 = arith.constant 0 : i32
    %c0_i32_1 = arith.constant 0 : i32
    %c0_i32_2 = arith.constant 0 : i32
    return %c0_i32, %c0_i32_0, %c0_i32_1 : i32, i32, i32
  }
  func.func @transform_15(%arg0: i32) -> (i32, i32) {
    %c0_i32 = arith.constant 0 : i32
    %c0_i32_0 = arith.constant 0 : i32
    %c0_i32_1 = arith.constant 0 : i32
    return %c0_i32, %c0_i32_0 : i32, i32
  }
  func.func @transform_16(%arg0: i32) -> (i32, i32, i32) {
    %c0_i32 = arith.constant 0 : i32
    %c0_i32_0 = arith.constant 0 : i32
    %c0_i32_1 = arith.constant 0 : i32
    %c0_i32_2 = arith.constant 0 : i32
    return %c0_i32, %c0_i32_0, %c0_i32_1 : i32, i32, i32
  }
  func.func @transform_17(%arg0: i32) -> (i32, i32, i32) {
    %c0_i32 = arith.constant 0 : i32
    %c0_i32_0 = arith.constant 0 : i32
    %c0_i32_1 = arith.constant 0 : i32
    %c0_i32_2 = arith.constant 0 : i32
    return %c0_i32, %c0_i32_0, %c0_i32_1 : i32, i32, i32
  }
  func.func @transform_18(%arg0: i32) -> (i32, i32, i32) {
    %c0_i32 = arith.constant 0 : i32
    %c0_i32_0 = arith.constant 0 : i32
    %c0_i32_1 = arith.constant 0 : i32
    %c0_i32_2 = arith.constant 0 : i32
    return %c0_i32, %c0_i32_0, %c0_i32_1 : i32, i32, i32
  }
}

</mosaic_0001>

<llo_original>
// kernel: tpu_custom_call.1
$region0: #{tpu_custom_call.1}
  #allocation0 [shape = 'u32[]', space=smem, size = 0x4, offset = 0x4, fixed_abs, tag = 'smem constant byte address 0x4 - core index']
  #allocation1 [shape = 'u32[144,128]{1,0:T(1,128)}', space=vmem, size = 0x12000, scoped, tag = 'internal scratch']
  %s0 = inlined_call_operand.vmem [shape: f32[2,8,64], index: 0, kind: input, shape index: {}]
  %s1 = inlined_call_operand.vmem [shape: f32[8,8], index: 1, kind: input, shape index: {}]
  %s2 = inlined_call_operand.vmem [shape: bf16[2,64,192], index: 2, kind: input, shape index: {}]
  %s3 = inlined_call_operand.vmem [shape: f32[2,192], index: 3, kind: input, shape index: {}]
  %s4 = inlined_call_operand.vmem [shape: bf16[2,64,64], index: 4, kind: input, shape index: {}]
  %s5 = inlined_call_operand.vmem [shape: f32[2,64], index: 5, kind: input, shape index: {}]
  %s6 = inlined_call_operand.vmem [shape: bf16[2,64,64], index: 6, kind: input, shape index: {}]
  %s7 = inlined_call_operand.vmem [shape: f32[2,64], index: 7, kind: input, shape index: {}]
  %s8 = inlined_call_operand.vmem [shape: bf16[2,64,128], index: 8, kind: input, shape index: {}]
  %s9 = inlined_call_operand.vmem [shape: f32[2,128], index: 9, kind: input, shape index: {}]
  %s10 = inlined_call_operand.vmem [shape: bf16[2,64,64], index: 10, kind: input, shape index: {}]
  %s11 = inlined_call_operand.vmem [shape: f32[2,64], index: 11, kind: input, shape index: {}]
  %s12 = inlined_call_operand.vmem [shape: bf16[2,64,512], index: 12, kind: input, shape index: {}]
  %s13 = inlined_call_operand.vmem [shape: f32[2,512], index: 13, kind: input, shape index: {}]
  %s14 = inlined_call_operand.vmem [shape: bf16[2,512,64], index: 14, kind: input, shape index: {}]
  %s15 = inlined_call_operand.vmem [shape: f32[2,64], index: 15, kind: input, shape index: {}]
  %s16 = inlined_call_operand.vmem [shape: f32[2,3,64], index: 16, kind: input, shape index: {}]
  %s17 = inlined_call_operand.vmem [shape: f32[2,3,64], index: 17, kind: input, shape index: {}]
  %s18 = inlined_call_operand.hbm [shape: f32[2,1,64], index: 18, kind: output, shape index: {}]
  %s19 = sld [smem:[#allocation0]]
  $region82: #{tpu_custom_call.1} parent=0
    _
  %s21 = ssub.s32 1, %s19
  %s22 = scalar_select 0, %s21, %s19
  $region1: #{tpu_custom_call.1} parent=0
    #allocation2 [shape = 'u8[1024]{0}', space=vmem, size = 0x400, scoped, tag = 'output window, operand 0, single buffered']
    #allocation3 [shape = 's32[1]{0}', space=sflag, size = 0x4, scoped, tag = 'scoped memory for tpu_custom_call.1']
    %23 = vsyncpa [#allocation3], 0
    // Predicated region
    $region2: #{tpu_custom_call.1} parent=1 // pred_check
      _
    $region3: #{tpu_custom_call.1} parent=1 // pred_check_branch
      %25 = sbr.rel (0) target = $region5
    $region4: #{tpu_custom_call.1} parent=1 // pred_region
      _
    $region5: #{tpu_custom_call.1} parent=1 // pred_fallthru
      _
    // Predicated region
    $region6: #{tpu_custom_call.1} parent=1 // pred_check
      _
    $region7: #{tpu_custom_call.1} parent=1 // pred_check_branch
      %27 = sbr.rel (0) target = $region9
    $region8: #{tpu_custom_call.1} parent=1 // pred_region
      _
    $region9: #{tpu_custom_call.1} parent=1 // pred_fallthru
      _
    // Predicated region
    $region10: #{tpu_custom_call.1} parent=1 // pred_check
      _
    $region11: #{tpu_custom_call.1} parent=1 // pred_check_branch
      %29 = sbr.rel (0) target = $region13
    $region12: #{tpu_custom_call.1} parent=1 // pred_region
      _
    $region13: #{tpu_custom_call.1} parent=1 // pred_fallthru
      _
    // Predicated region
    $region14: #{tpu_custom_call.1} parent=1 // pred_check
      _
    $region15: #{tpu_custom_call.1} parent=1 // pred_check_branch
      %31 = sbr.rel (0) target = $region17
    $region16: #{tpu_custom_call.1} parent=1 // pred_region
      _
    $region17: #{tpu_custom_call.1} parent=1 // pred_fallthru
      _
    // Predicated region
    $region18: #{tpu_custom_call.1} parent=1 // pred_check
      _
    $region19: #{tpu_custom_call.1} parent=1 // pred_check_branch
      %33 = sbr.rel (0) target = $region21
    $region20: #{tpu_custom_call.1} parent=1 // pred_region
      _
    $region21: #{tpu_custom_call.1} parent=1 // pred_fallthru
      _
    // Predicated region
    $region22: #{tpu_custom_call.1} parent=1 // pred_check
      _
    $region23: #{tpu_custom_call.1} parent=1 // pred_check_branch
      %35 = sbr.rel (0) target = $region25
    $region24: #{tpu_custom_call.1} parent=1 // pred_region
      _
    $region25: #{tpu_custom_call.1} parent=1 // pred_fallthru
      _
    // Predicated region
    $region26: #{tpu_custom_call.1} parent=1 // pred_check
      _
    $region27: #{tpu_custom_call.1} parent=1 // pred_check_branch
      %37 = sbr.rel (0) target = $region29
    $region28: #{tpu_custom_call.1} parent=1 // pred_region
      _
    $region29: #{tpu_custom_call.1} parent=1 // pred_fallthru
      _
    // Predicated region
    $region30: #{tpu_custom_call.1} parent=1 // pred_check
      _
    $region31: #{tpu_custom_call.1} parent=1 // pred_check_branch
      %39 = sbr.rel (0) target = $region33
    $region32: #{tpu_custom_call.1} parent=1 // pred_region
      _
    $region33: #{tpu_custom_call.1} parent=1 // pred_fallthru
      _
    // Predicated region
    $region34: #{tpu_custom_call.1} parent=1 // pred_check
      _
    $region35: #{tpu_custom_call.1} parent=1 // pred_check_branch
      %41 = sbr.rel (0) target = $region37
    $region36: #{tpu_custom_call.1} parent=1 // pred_region
      _
    $region37: #{tpu_custom_call.1} parent=1 // pred_fallthru
      _
    // Predicated region
    $region38: #{tpu_custom_call.1} parent=1 // pred_check
      _
    $region39: #{tpu_custom_call.1} parent=1 // pred_check_branch
      %43 = sbr.rel (0) target = $region41
    $region40: #{tpu_custom_call.1} parent=1 // pred_region
      _
    $region41: #{tpu_custom_call.1} parent=1 // pred_fallthru
      _
    // Predicated region
    $region42: #{tpu_custom_call.1} parent=1 // pred_check
      _
    $region43: #{tpu_custom_call.1} parent=1 // pred_check_branch
      %45 = sbr.rel (0) target = $region45
    $region44: #{tpu_custom_call.1} parent=1 // pred_region
      _
    $region45: #{tpu_custom_call.1} parent=1 // pred_fallthru
      _
    // Predicated region
    $region46: #{tpu_custom_call.1} parent=1 // pred_check
      _
    $region47: #{tpu_custom_call.1} parent=1 // pred_check_branch
      %47 = sbr.rel (0) target = $region49
    $region48: #{tpu_custom_call.1} parent=1 // pred_region
      _
    $region49: #{tpu_custom_call.1} parent=1 // pred_fallthru
      _
    // Predicated region
    $region50: #{tpu_custom_call.1} parent=1 // pred_check
      _
    $region51: #{tpu_custom_call.1} parent=1 // pred_check_branch
      %49 = sbr.rel (0) target = $region53
    $region52: #{tpu_custom_call.1} parent=1 // pred_region
      _
    $region53: #{tpu_custom_call.1} parent=1 // pred_fallthru
      _
    // Predicated region
    $region54: #{tpu_custom_call.1} parent=1 // pred_check
      _
    $region55: #{tpu_custom_call.1} parent=1 // pred_check_branch
      %51 = sbr.rel (0) target = $region57
    $region56: #{tpu_custom_call.1} parent=1 // pred_region
      _
    $region57: #{tpu_custom_call.1} parent=1 // pred_fallthru
      _
    // Predicated region
    $region58: #{tpu_custom_call.1} parent=1 // pred_check
      _
    $region59: #{tpu_custom_call.1} parent=1 // pred_check_branch
      %53 = sbr.rel (0) target = $region61
    $region60: #{tpu_custom_call.1} parent=1 // pred_region
      _
    $region61: #{tpu_custom_call.1} parent=1 // pred_fallthru
      _
    // Predicated region
    $region62: #{tpu_custom_call.1} parent=1 // pred_check
      _
    $region63: #{tpu_custom_call.1} parent=1 // pred_check_branch
      %55 = sbr.rel (0) target = $region65
    $region64: #{tpu_custom_call.1} parent=1 // pred_region
      _
    $region65: #{tpu_custom_call.1} parent=1 // pred_fallthru
      _
    // Predicated region
    $region66: #{tpu_custom_call.1} parent=1 // pred_check
      _
    $region67: #{tpu_custom_call.1} parent=1 // pred_check_branch
      %57 = sbr.rel (0) target = $region69
    $region68: #{tpu_custom_call.1} parent=1 // pred_region
      _
    $region69: #{tpu_custom_call.1} parent=1 // pred_fallthru
      _
    // Predicated region
    $region70: #{tpu_custom_call.1} parent=1 // pred_check
      _
    $region71: #{tpu_custom_call.1} parent=1 // pred_check_branch
      %59 = sbr.rel (0) target = $region73
    $region72: #{tpu_custom_call.1} parent=1 // pred_region
      _
    $region73: #{tpu_custom_call.1} parent=1 // pred_fallthru
      _
    %v61 = vld [vmem:[%s0] sm:$0xff]
    %v62 = vld [vmem:[%s0 + $0x8] sm:$0xff]
    %v63 = vpack.c.bf16 %v62, %v61
    %v64 = vld [vmem:[%s1] sm:$0xff]
    %v65 = vld [vmem:[%s2] sm:$0xff]
    %v66 = vld [vmem:[%s2 + $0x8] sm:$0xff]
    %v67 = vld [vmem:[%s2 + $0x10] sm:$0xff]
    %v68 = vld [vmem:[%s2 + $0x18] sm:$0xff]
    %v69 = vld [vmem:[%s2 + $0x20] sm:$0xff]
    %v70 = vld [vmem:[%s2 + $0x28] sm:$0xff]
    %v71 = vld [vmem:[%s2 + $0x30] sm:$0xff]
    %v72 = vld [vmem:[%s2 + $0x38] sm:$0xff]
    %v73 = vld [vmem:[%s3] ss:$2 sm:$0x3]
    %v75 = vlaneseq
    %v76 = vshrl.u32 %v75, 7
    %v77 = vsub.s32 0, %v76
    %v78 = vrot.slane %v73, %v77
    %v79 = vlaneseq
    %v80 = vshrl.u32 %v79, 7
    %v81 = vsub.s32 1, %v80
    %v82 = vrot.slane %v73, %v81
    %v93 = vunpack.c.l.b16 %v65
    %v94 = vunpack.c.h.b16 %v65
    %v95 = vunpack.c.l.b16 %v66
    %v96 = vunpack.c.h.b16 %v66
    %v97 = vunpack.c.l.b16 %v67
    %v98 = vunpack.c.h.b16 %v67
    %v99 = vunpack.c.l.b16 %v68
    %v100 = vunpack.c.h.b16 %v68
    %v101 = vunpack.c.l.b16 %v69
    %v102 = vunpack.c.h.b16 %v69
    %v103 = vunpack.c.l.b16 %v70
    %v104 = vunpack.c.h.b16 %v70
    %v105 = vunpack.c.l.b16 %v71
    %v106 = vunpack.c.h.b16 %v71
    %v107 = vunpack.c.l.b16 %v72
    %v108 = vunpack.c.h.b16 %v72
    %v109 = vpack.c.b16 %v95, %v93
    %v110 = vpack.c.b16 %v96, %v94
    %v111 = vpack.c.b16 %v99, %v97
    %v112 = vpack.c.b16 %v100, %v98
    %v113 = vpack.c.b16 %v103, %v101
    %v114 = vpack.c.b16 %v104, %v102
    %v115 = vpack.c.b16 %v107, %v105
    %v116 = vpack.c.b16 %v108, %v106
    %vm125 = vcmask 523264
    %v127 = vsel %vm125, %v63, 0
    %129 = vmatprep.subr.bf16.mxu0 %v110
    %130 = vmatpush1.bf16.msra.mxu0 %v109
    %131 = vmatprep.subr.bf16.mxu0 %v112
    %132 = vmatpush1.bf16.msra.mxu0 %v111
    %133 = vmatprep.subr.bf16.mxu0 %v114
    %134 = vmatpush1.bf16.msra.mxu0 %v113
    %135 = vmatprep.subr.bf16.mxu0 %v116
    %136 = vmatpush1.bf16.msra.mxu0 %v115
    %137 = vmatprep.subr.bf16.mxu0 0
    %138 = vmatpush1.bf16.msra.mxu0 0
    %139 = vmatprep.subr.bf16.mxu0 0
    %140 = vmatpush1.bf16.msra.mxu0 0
    %141 = vmatprep.subr.bf16.mxu0 0
    %142 = vmatpush1.bf16.msra.mxu0 0
    %143 = vmatprep.subr.bf16.mxu0 0
    %144 = vmatpush1.bf16.msra.mxu0 0
    %145 = vmatprep.subr.bf16.mxu0 0
    %146 = vmatpush1.bf16.msra.mxu0 0
    %147 = vmatprep.subr.bf16.mxu0 0
    %148 = vmatpush1.bf16.msra.mxu0 0
    %149 = vmatprep.subr.bf16.mxu0 0
    %150 = vmatpush1.bf16.msra.mxu0 0
    %151 = vmatprep.subr.bf16.mxu0 0
    %152 = vmatpush1.bf16.msra.mxu0 0
    %153 = vmatprep.subr.bf16.mxu0 0
    %154 = vmatpush1.bf16.msra.mxu0 0
    %155 = vmatprep.subr.bf16.mxu0 0
    %156 = vmatpush1.bf16.msra.mxu0 0
    %157 = vmatprep.subr.bf16.mxu0 0
    %158 = vmatpush1.bf16.msra.mxu0 0
    %159 = vmatprep.subr.bf16.mxu0 0
    %160 = vmatpush1.bf16.msra.mxu0 0
    %161 = vmatprep.mubr.bf16.mxu0 0
    %162 = vmatmul.mubr.bf16.gmra.mrb[0].mxu0 %v127
    %v163 = vpop.f32.mrb[0].mxu0
    %v164 = vadd.f32 %v78, %v163
    %v165 = vpop.f32.mrb[0].mxu0
    %v166 = vadd.f32 %v82, %v165
    %v167 = vpop.f32.mrb[0].mxu0
    %v168 = vadd.f32 %v78, %v167
    %v169 = vpop.f32.mrb[0].mxu0
    %v170 = vadd.f32 %v82, %v169
    %171 = vdwg.mxu0
    %174 = vrot.lane.b32.xlu0 %v164, 96
    %v175 = vpop.permute.xlu0 %174
    %176 = vrot.lane.b32.xlu0 %v168, 96
    %v177 = vpop.permute.xlu0 %176
    %180 = vrot.lane.b32.xlu0 %v166, 96
    %v181 = vpop.permute.xlu0 %180
    %182 = vrot.lane.b32.xlu0 %v170, 96
    %v183 = vpop.permute.xlu0 %182
    %186 = vrot.lane.b32.xlu0 %v164, 64
    %v187 = vpop.permute.xlu0 %186
    %vm188 = vcmask 261120
    %v189 = vsel %vm188, %v164, 0
    %v191 = vsel %vm188, %v187, 0
    %193 = vmatprep.subr.mxu0 0.0
    %194 = vmatpush1.xpose.msra.mxu0 %v191
    %195 = vmatprep.subr.mxu0 0.0
    %196 = vmatpush1.xpose.msra.mxu0 0.0
    %197 = vmatprep.subr.mxu0 0.0
    %198 = vmatpush1.xpose.msra.mxu0 0.0
    %199 = vmatprep.subr.mxu0 0.0
    %200 = vmatpush1.xpose.msra.mxu0 0.0
    %201 = vmatprep.subr.mxu0 0.0
    %202 = vmatpush1.xpose.msra.mxu0 0.0
    %203 = vmatprep.subr.mxu0 0.0
    %204 = vmatpush1.xpose.msra.mxu0 0.0
    %205 = vmatprep.subr.mxu0 0.0
    %206 = vmatpush1.xpose.msra.mxu0 0.0
    %207 = vmatprep.subr.mxu0 0.0
    %208 = vmatpush1.xpose.msra.mxu0 0.0
    %209 = vmatprep.subr.mxu0 0.0
    %210 = vmatpush1.xpose.msra.mxu0 0.0
    %211 = vmatprep.subr.mxu0 0.0
    %212 = vmatpush1.xpose.msra.mxu0 0.0
    %213 = vmatprep.subr.mxu0 0.0
    %214 = vmatpush1.xpose.msra.mxu0 0.0
    %215 = vmatprep.subr.mxu0 0.0
    %216 = vmatpush1.xpose.msra.mxu0 0.0
    %217 = vmatprep.subr.mxu0 0.0
    %218 = vmatpush1.xpose.msra.mxu0 0.0
    %219 = vmatprep.subr.mxu0 0.0
    %220 = vmatpush1.xpose.msra.mxu0 0.0
    %221 = vmatprep.subr.mxu0 0.0
    %222 = vmatpush1.xpose.msra.mxu0 0.0
    %223 = vmatprep.subr.mxu0 0.0
    %224 = vmatpush1.xpose.msra.mxu0 0.0
    %225 = vmatprep.subr.mxu0 0.0
    %226 = vmatpush1.xpose.msra.mxu0 0.0
    %227 = vmatprep.subr.mxu0 0.0
    %228 = vmatpush1.xpose.msra.mxu0 0.0
    %229 = vmatprep.subr.mxu0 0.0
    %230 = vmatpush1.xpose.msra.mxu0 0.0
    %231 = vmatprep.subr.mxu0 0.0
    %232 = vmatpush1.xpose.msra.mxu0 0.0
    %233 = vmatprep.subr.mxu0 0.0
    %234 = vmatpush1.xpose.msra.mxu0 0.0
    %235 = vmatprep.subr.mxu0 0.0
    %236 = vmatpush1.xpose.msra.mxu0 0.0
    %237 = vmatprep.subr.mxu0 0.0
    %238 = vmatpush1.xpose.msra.mxu0 0.0
    %239 = vmatprep.subr.mxu0 0.0
    %240 = vmatpush1.xpose.msra.mxu0 0.0
    %241 = vmatprep.subr.mxu0 0.0
    %242 = vmatpush1.xpose.msra.mxu0 0.0
    %243 = vmatprep.subr.mxu0 0.0
    %244 = vmatpush1.xpose.msra.mxu0 0.0
    %245 = vmatprep.subr.mxu0 0.0
    %246 = vmatpush1.xpose.msra.mxu0 0.0
    %247 = vmatprep.subr.mxu0 0.0
    %248 = vmatpush1.xpose.msra.mxu0 0.0
    %249 = vmatprep.subr.mxu0 0.0
    %250 = vmatpush1.xpose.msra.mxu0 0.0
    %251 = vmatprep.subr.mxu0 0.0
    %252 = vmatpush1.xpose.msra.mxu0 0.0
    %253 = vmatprep.subr.mxu0 0.0
    %254 = vmatpush1.xpose.msra.mxu0 0.0
    %255 = vmatprep.subr.mxu0 0.0
    %256 = vmatpush1.xpose.msra.mxu0 0.0
    %257 = vmatprep.mubr.f32.mxu0 0.0
    %258 = vmatmul.mubr.f32.gmra.mrb[0].mxu0 %v189
    %v259 = vpop.f32.mrb[0].mxu0
    %v260 = vadd.f32 %v64, %v259
    %v261 = vpop.f32.mrb[0].mxu0
    %262 = vdwg.mxu0
    %263 = vrot.lane.b32.xlu0 %v168, 64
    %v264 = vpop.permute.xlu0 %263
    %v265 = vsel %vm188, %v168, 0
    %v267 = vsel %vm188, %v264, 0
    %269 = vmatprep.subr.mxu0 0.0
    %270 = vmatpush1.xpose.msra.mxu0 %v267
    %271 = vmatprep.subr.mxu0 0.0
    %272 = vmatpush1.xpose.msra.mxu0 0.0
    %273 = vmatprep.subr.mxu0 0.0
    %274 = vmatpush1.xpose.msra.mxu0 0.0
    %275 = vmatprep.subr.mxu0 0.0
    %276 = vmatpush1.xpose.msra.mxu0 0.0
    %277 = vmatprep.subr.mxu0 0.0
    %278 = vmatpush1.xpose.msra.mxu0 0.0
    %279 = vmatprep.subr.mxu0 0.0
    %280 = vmatpush1.xpose.msra.mxu0 0.0
    %281 = vmatprep.subr.mxu0 0.0
    %282 = vmatpush1.xpose.msra.mxu0 0.0
    %283 = vmatprep.subr.mxu0 0.0
    %284 = vmatpush1.xpose.msra.mxu0 0.0
    %285 = vmatprep.subr.mxu0 0.0
    %286 = vmatpush1.xpose.msra.mxu0 0.0
    %287 = vmatprep.subr.mxu0 0.0
    %288 = vmatpush1.xpose.msra.mxu0 0.0
    %289 = vmatprep.subr.mxu0 0.0
    %290 = vmatpush1.xpose.msra.mxu0 0.0
    %291 = vmatprep.subr.mxu0 0.0
    %292 = vmatpush1.xpose.msra.mxu0 0.0
    %293 = vmatprep.subr.mxu0 0.0
    %294 = vmatpush1.xpose.msra.mxu0 0.0
    %295 = vmatprep.subr.mxu0 0.0
    %296 = vmatpush1.xpose.msra.mxu0 0.0
    %297 = vmatprep.subr.mxu0 0.0
    %298 = vmatpush1.xpose.msra.mxu0 0.0
    %299 = vmatprep.subr.mxu0 0.0
    %300 = vmatpush1.xpose.msra.mxu0 0.0
    %301 = vmatprep.subr.mxu0 0.0
    %302 = vmatpush1.xpose.msra.mxu0 0.0
    %303 = vmatprep.subr.mxu0 0.0
    %304 = vmatpush1.xpose.msra.mxu0 0.0
    %305 = vmatprep.subr.mxu0 0.0
    %306 = vmatpush1.xpose.msra.mxu0 0.0
    %307 = vmatprep.subr.mxu0 0.0
    %308 = vmatpush1.xpose.msra.mxu0 0.0
    %309 = vmatprep.subr.mxu0 0.0
    %310 = vmatpush1.xpose.msra.mxu0 0.0
    %311 = vmatprep.subr.mxu0 0.0
    %312 = vmatpush1.xpose.msra.mxu0 0.0
    %313 = vmatprep.subr.mxu0 0.0
    %314 = vmatpush1.xpose.msra.mxu0 0.0
    %315 = vmatprep.subr.mxu0 0.0
    %316 = vmatpush1.xpose.msra.mxu0 0.0
    %317 = vmatprep.subr.mxu0 0.0
    %318 = vmatpush1.xpose.msra.mxu0 0.0
    %319 = vmatprep.subr.mxu0 0.0
    %320 = vmatpush1.xpose.msra.mxu0 0.0
    %321 = vmatprep.subr.mxu0 0.0
    %322 = vmatpush1.xpose.msra.mxu0 0.0
    %323 = vmatprep.subr.mxu0 0.0
    %324 = vmatpush1.xpose.msra.mxu0 0.0
    %325 = vmatprep.subr.mxu0 0.0
    %326 = vmatpush1.xpose.msra.mxu0 0.0
    %327 = vmatprep.subr.mxu0 0.0
    %328 = vmatpush1.xpose.msra.mxu0 0.0
    %329 = vmatprep.subr.mxu0 0.0
    %330 = vmatpush1.xpose.msra.mxu0 0.0
    %331 = vmatprep.subr.mxu0 0.0
    %332 = vmatpush1.xpose.msra.mxu0 0.0
    %333 = vmatprep.mubr.f32.mxu0 0.0
    %334 = vmatmul.mubr.f32.gmra.mrb[0].mxu0 %v265
    %v335 = vpop.f32.mrb[0].mxu0
    %v336 = vadd.f32 %v64, %v335
    %v337 = vpop.f32.mrb[0].mxu0
    %338 = vdwg.mxu0
    %339 = vrot.lane.b32.xlu0 %v175, 64
    %v340 = vpop.permute.xlu0 %339
    %v341 = vsel %vm188, %v175, 0
    %v343 = vsel %vm188, %v340, 0
    %345 = vmatprep.subr.mxu0 0.0
    %346 = vmatpush1.xpose.msra.mxu0 %v343
    %347 = vmatprep.subr.mxu0 0.0
    %348 = vmatpush1.xpose.msra.mxu0 0.0
    %349 = vmatprep.subr.mxu0 0.0
    %350 = vmatpush1.xpose.msra.mxu0 0.0
    %351 = vmatprep.subr.mxu0 0.0
    %352 = vmatpush1.xpose.msra.mxu0 0.0
    %353 = vmatprep.subr.mxu0 0.0
    %354 = vmatpush1.xpose.msra.mxu0 0.0
    %355 = vmatprep.subr.mxu0 0.0
    %356 = vmatpush1.xpose.msra.mxu0 0.0
    %357 = vmatprep.subr.mxu0 0.0
    %358 = vmatpush1.xpose.msra.mxu0 0.0
    %359 = vmatprep.subr.mxu0 0.0
    %360 = vmatpush1.xpose.msra.mxu0 0.0
    %361 = vmatprep.subr.mxu0 0.0
    %362 = vmatpush1.xpose.msra.mxu0 0.0
    %363 = vmatprep.subr.mxu0 0.0
    %364 = vmatpush1.xpose.msra.mxu0 0.0
    %365 = vmatprep.subr.mxu0 0.0
    %366 = vmatpush1.xpose.msra.mxu0 0.0
    %367 = vmatprep.subr.mxu0 0.0
    %368 = vmatpush1.xpose.msra.mxu0 0.0
    %369 = vmatprep.subr.mxu0 0.0
    %370 = vmatpush1.xpose.msra.mxu0 0.0
    %371 = vmatprep.subr.mxu0 0.0
    %372 = vmatpush1.xpose.msra.mxu0 0.0
    %373 = vmatprep.subr.mxu0 0.0
    %374 = vmatpush1.xpose.msra.mxu0 0.0
    %375 = vmatprep.subr.mxu0 0.0
    %376 = vmatpush1.xpose.msra.mxu0 0.0
    %377 = vmatprep.subr.mxu0 0.0
    %378 = vmatpush1.xpose.msra.mxu0 0.0
    %379 = vmatprep.subr.mxu0 0.0
    %380 = vmatpush1.xpose.msra.mxu0 0.0
    %381 = vmatprep.subr.mxu0 0.0
    %382 = vmatpush1.xpose.msra.mxu0 0.0
    %383 = vmatprep.subr.mxu0 0.0
    %384 = vmatpush1.xpose.msra.mxu0 0.0
    %385 = vmatprep.subr.mxu0 0.0
    %386 = vmatpush1.xpose.msra.mxu0 0.0
    %387 = vmatprep.subr.mxu0 0.0
    %388 = vmatpush1.xpose.msra.mxu0 0.0
    %389 = vmatprep.subr.mxu0 0.0
    %390 = vmatpush1.xpose.msra.mxu0 0.0
    %391 = vmatprep.subr.mxu0 0.0
    %392 = vmatpush1.xpose.msra.mxu0 0.0
    %393 = vmatprep.subr.mxu0 0.0
    %394 = vmatpush1.xpose.msra.mxu0 0.0
    %395 = vmatprep.subr.mxu0 0.0
    %396 = vmatpush1.xpose.msra.mxu0 0.0
    %397 = vmatprep.subr.mxu0 0.0
    %398 = vmatpush1.xpose.msra.mxu0 0.0
    %399 = vmatprep.subr.mxu0 0.0
    %400 = vmatpush1.xpose.msra.mxu0 0.0
    %401 = vmatprep.subr.mxu0 0.0
    %402 = vmatpush1.xpose.msra.mxu0 0.0
    %403 = vmatprep.subr.mxu0 0.0
    %404 = vmatpush1.xpose.msra.mxu0 0.0
    %405 = vmatprep.subr.mxu0 0.0
    %406 = vmatpush1.xpose.msra.mxu0 0.0
    %407 = vmatprep.subr.mxu0 0.0
    %408 = vmatpush1.xpose.msra.mxu0 0.0
    %409 = vmatprep.mubr.f32.mxu0 0.0
    %410 = vmatmul.mubr.f32.gmra.mrb[0].mxu0 %v341
    %v411 = vpop.f32.mrb[0].mxu0
    %v412 = vadd.f32 %v64, %v411
    %v413 = vpop.f32.mrb[0].mxu0
    %414 = vdwg.mxu0
    %415 = vrot.lane.b32.xlu0 %v177, 64
    %v416 = vpop.permute.xlu0 %415
    %v417 = vsel %vm188, %v177, 0
    %v419 = vsel %vm188, %v416, 0
    %421 = vmatprep.subr.mxu0 0.0
    %422 = vmatpush1.xpose.msra.mxu0 %v419
    %423 = vmatprep.subr.mxu0 0.0
    %424 = vmatpush1.xpose.msra.mxu0 0.0
    %425 = vmatprep.subr.mxu0 0.0
    %426 = vmatpush1.xpose.msra.mxu0 0.0
    %427 = vmatprep.subr.mxu0 0.0
    %428 = vmatpush1.xpose.msra.mxu0 0.0
    %429 = vmatprep.subr.mxu0 0.0
    %430 = vmatpush1.xpose.msra.mxu0 0.0
    %431 = vmatprep.subr.mxu0 0.0
    %432 = vmatpush1.xpose.msra.mxu0 0.0
    %433 = vmatprep.subr.mxu0 0.0
    %434 = vmatpush1.xpose.msra.mxu0 0.0
    %435 = vmatprep.subr.mxu0 0.0
    %436 = vmatpush1.xpose.msra.mxu0 0.0
    %437 = vmatprep.subr.mxu0 0.0
    %438 = vmatpush1.xpose.msra.mxu0 0.0
    %439 = vmatprep.subr.mxu0 0.0
    %440 = vmatpush1.xpose.msra.mxu0 0.0
    %441 = vmatprep.subr.mxu0 0.0
    %442 = vmatpush1.xpose.msra.mxu0 0.0
    %443 = vmatprep.subr.mxu0 0.0
    %444 = vmatpush1.xpose.msra.mxu0 0.0
    %445 = vmatprep.subr.mxu0 0.0
    %446 = vmatpush1.xpose.msra.mxu0 0.0
    %447 = vmatprep.subr.mxu0 0.0
    %448 = vmatpush1.xpose.msra.mxu0 0.0
    %449 = vmatprep.subr.mxu0 0.0
    %450 = vmatpush1.xpose.msra.mxu0 0.0
    %451 = vmatprep.subr.mxu0 0.0
    %452 = vmatpush1.xpose.msra.mxu0 0.0
    %453 = vmatprep.subr.mxu0 0.0
    %454 = vmatpush1.xpose.msra.mxu0 0.0
    %455 = vmatprep.subr.mxu0 0.0
    %456 = vmatpush1.xpose.msra.mxu0 0.0
    %457 = vmatprep.subr.mxu0 0.0
    %458 = vmatpush1.xpose.msra.mxu0 0.0
    %459 = vmatprep.subr.mxu0 0.0
    %460 = vmatpush1.xpose.msra.mxu0 0.0
    %461 = vmatprep.subr.mxu0 0.0
    %462 = vmatpush1.xpose.msra.mxu0 0.0
    %463 = vmatprep.subr.mxu0 0.0
    %464 = vmatpush1.xpose.msra.mxu0 0.0
    %465 = vmatprep.subr.mxu0 0.0
    %466 = vmatpush1.xpose.msra.mxu0 0.0
    %467 = vmatprep.subr.mxu0 0.0
    %468 = vmatpush1.xpose.msra.mxu0 0.0
    %469 = vmatprep.subr.mxu0 0.0
    %470 = vmatpush1.xpose.msra.mxu0 0.0
    %471 = vmatprep.subr.mxu0 0.0
    %472 = vmatpush1.xpose.msra.mxu0 0.0
    %473 = vmatprep.subr.mxu0 0.0
    %474 = vmatpush1.xpose.msra.mxu0 0.0
    %475 = vmatprep.subr.mxu0 0.0
    %476 = vmatpush1.xpose.msra.mxu0 0.0
    %477 = vmatprep.subr.mxu0 0.0
    %478 = vmatpush1.xpose.msra.mxu0 0.0
    %479 = vmatprep.subr.mxu0 0.0
    %480 = vmatpush1.xpose.msra.mxu0 0.0
    %481 = vmatprep.subr.mxu0 0.0
    %482 = vmatpush1.xpose.msra.mxu0 0.0
    %483 = vmatprep.subr.mxu0 0.0
    %484 = vmatpush1.xpose.msra.mxu0 0.0
    %485 = vmatprep.mubr.f32.mxu0 0.0
    %486 = vmatmul.mubr.f32.gmra.mrb[0].mxu0 %v417
    %v487 = vpop.f32.mrb[0].mxu0
    %v488 = vadd.f32 %v64, %v487
    %v489 = vpop.f32.mrb[0].mxu0
    %490 = vdwg.mxu0
    %vm491 = vcmask 64512
    %v492 = vsel %vm491, %v260, -inf
    %493 = vmax.xlane.f32.xlu0 %v492
    %v494 = vpop.xlane.xlu0 %493
    %v495 = vsel %vm491, %v336, -inf
    %496 = vmax.xlane.f32.xlu0 %v495
    %v497 = vpop.xlane.xlu0 %496
    %v498 = vsel %vm491, %v412, -inf
    %499 = vmax.xlane.f32.xlu0 %v498
    %v500 = vpop.xlane.xlu0 %499
    %v501 = vsel %vm491, %v488, -inf
    %502 = vmax.xlane.f32.xlu0 %v501
    %v503 = vpop.xlane.xlu0 %502
    %v504 = vsub.f32 %v260, %v494
    %v505 = vsub.f32 %v336, %v497
    %v506 = vsub.f32 %v412, %v500
    %v507 = vsub.f32 %v488, %v503
    %v508 = vmul.f32 %v504, 1.442695
    %v509 = vpow.pop %v508
    %v510 = vmul.f32 %v505, 1.442695
    %v511 = vpow.pop %v510
    %v512 = vmul.f32 %v506, 1.442695
    %v513 = vpow.pop %v512
    %v514 = vmul.f32 %v507, 1.442695
    %v515 = vpow.pop %v514
    %v516 = vsel %vm491, %v509, 0.0
    %517 = vadd.xlane.f32.xlu0 %v516
    %v518 = vpop.xlane.xlu0 %517
    %v519 = vsel %vm491, %v511, 0.0
    %520 = vadd.xlane.f32.xlu0 %v519
    %v521 = vpop.xlane.xlu0 %520
    %v522 = vsel %vm491, %v513, 0.0
    %523 = vadd.xlane.f32.xlu0 %v522
    %v524 = vpop.xlane.xlu0 %523
    %v525 = vsel %vm491, %v515, 0.0
    %526 = vadd.xlane.f32.xlu0 %v525
    %v527 = vpop.xlane.xlu0 %526
    %v528 = vrcp.pop %v518
    %v529 = vrcp.pop %v521
    %v530 = vrcp.pop %v524
    %v531 = vrcp.pop %v527
    %v532 = vmul.f32 %v509, %v528
    %v533 = vmul.f32 %v511, %v529
    %v534 = vmul.f32 %v513, %v530
    %v535 = vmul.f32 %v515, %v531
    %v537 = vsel %vm491, %v532, 0
    %539 = vmatprep.subr.mxu0 0.0
    %540 = vmatpush1.msra.mxu0 %v166
    %541 = vmatprep.subr.mxu0 0.0
    %542 = vmatpush1.msra.mxu0 0.0
    %543 = vmatprep.subr.mxu0 0.0
    %544 = vmatpush1.msra.mxu0 0.0
    %545 = vmatprep.subr.mxu0 0.0
    %546 = vmatpush1.msra.mxu0 0.0
    %547 = vmatprep.subr.mxu0 0.0
    %548 = vmatpush1.msra.mxu0 0.0
    %549 = vmatprep.subr.mxu0 0.0
    %550 = vmatpush1.msra.mxu0 0.0
    %551 = vmatprep.subr.mxu0 0.0
    %552 = vmatpush1.msra.mxu0 0.0
    %553 = vmatprep.subr.mxu0 0.0
    %554 = vmatpush1.msra.mxu0 0.0
    %555 = vmatprep.subr.mxu0 0.0
    %556 = vmatpush1.msra.mxu0 0.0
    %557 = vmatprep.subr.mxu0 0.0
    %558 = vmatpush1.msra.mxu0 0.0
    %559 = vmatprep.subr.mxu0 0.0
    %560 = vmatpush1.msra.mxu0 0.0
    %561 = vmatprep.subr.mxu0 0.0
    %562 = vmatpush1.msra.mxu0 0.0
    %563 = vmatprep.subr.mxu0 0.0
    %564 = vmatpush1.msra.mxu0 0.0
    %565 = vmatprep.subr.mxu0 0.0
    %566 = vmatpush1.msra.mxu0 0.0
    %567 = vmatprep.subr.mxu0 0.0
    %568 = vmatpush1.msra.mxu0 0.0
    %569 = vmatprep.subr.mxu0 0.0
    %570 = vmatpush1.msra.mxu0 0.0
    %571 = vmatprep.subr.mxu0 0.0
    %572 = vmatpush1.msra.mxu0 0.0
    %573 = vmatprep.subr.mxu0 0.0
    %574 = vmatpush1.msra.mxu0 0.0
    %575 = vmatprep.subr.mxu0 0.0
    %576 = vmatpush1.msra.mxu0 0.0
    %577 = vmatprep.subr.mxu0 0.0
    %578 = vmatpush1.msra.mxu0 0.0
    %579 = vmatprep.subr.mxu0 0.0
    %580 = vmatpush1.msra.mxu0 0.0
    %581 = vmatprep.subr.mxu0 0.0
    %582 = vmatpush1.msra.mxu0 0.0
    %583 = vmatprep.subr.mxu0 0.0
    %584 = vmatpush1.msra.mxu0 0.0
    %585 = vmatprep.subr.mxu0 0.0
    %586 = vmatpush1.msra.mxu0 0.0
    %587 = vmatprep.subr.mxu0 0.0
    %588 = vmatpush1.msra.mxu0 0.0
    %589 = vmatprep.subr.mxu0 0.0
    %590 = vmatpush1.msra.mxu0 0.0
    %591 = vmatprep.subr.mxu0 0.0
    %592 = vmatpush1.msra.mxu0 0.0
    %593 = vmatprep.subr.mxu0 0.0
    %594 = vmatpush1.msra.mxu0 0.0
    %595 = vmatprep.subr.mxu0 0.0
    %596 = vmatpush1.msra.mxu0 0.0
    %597 = vmatprep.subr.mxu0 0.0
    %598 = vmatpush1.msra.mxu0 0.0
    %599 = vmatprep.subr.mxu0 0.0
    %600 = vmatpush1.msra.mxu0 0.0
    %601 = vmatprep.subr.mxu0 0.0
    %602 = vmatpush1.msra.mxu0 0.0
    %603 = vmatprep.mubr.f32.mxu0 0.0
    %604 = vmatmul.mubr.f32.gmra.mrb[0].mxu0 %v537
    %v605 = vpop.f32.mrb[0].mxu0
    %v606 = vadd.f32 0.0, %v605
    %v607 = vpop.f32.mrb[0].mxu0
    %608 = vdwg.mxu0
    %v610 = vsel %vm491, %v533, 0
    %612 = vmatprep.subr.mxu0 0.0
    %613 = vmatpush1.msra.mxu0 %v170
    %614 = vmatprep.subr.mxu0 0.0
    %615 = vmatpush1.msra.mxu0 0.0
    %616 = vmatprep.subr.mxu0 0.0
    %617 = vmatpush1.msra.mxu0 0.0
    %618 = vmatprep.subr.mxu0 0.0
    %619 = vmatpush1.msra.mxu0 0.0
    %620 = vmatprep.subr.mxu0 0.0
    %621 = vmatpush1.msra.mxu0 0.0
    %622 = vmatprep.subr.mxu0 0.0
    %623 = vmatpush1.msra.mxu0 0.0
    %624 = vmatprep.subr.mxu0 0.0
    %625 = vmatpush1.msra.mxu0 0.0
    %626 = vmatprep.subr.mxu0 0.0
    %627 = vmatpush1.msra.mxu0 0.0
    %628 = vmatprep.subr.mxu0 0.0
    %629 = vmatpush1.msra.mxu0 0.0
    %630 = vmatprep.subr.mxu0 0.0
    %631 = vmatpush1.msra.mxu0 0.0
    %632 = vmatprep.subr.mxu0 0.0
    %633 = vmatpush1.msra.mxu0 0.0
    %634 = vmatprep.subr.mxu0 0.0
    %635 = vmatpush1.msra.mxu0 0.0
    %636 = vmatprep.subr.mxu0 0.0
    %637 = vmatpush1.msra.mxu0 0.0
    %638 = vmatprep.subr.mxu0 0.0
    %639 = vmatpush1.msra.mxu0 0.0
    %640 = vmatprep.subr.mxu0 0.0
    %641 = vmatpush1.msra.mxu0 0.0
    %642 = vmatprep.subr.mxu0 0.0
    %643 = vmatpush1.msra.mxu0 0.0
    %644 = vmatprep.subr.mxu0 0.0
    %645 = vmatpush1.msra.mxu0 0.0
    %646 = vmatprep.subr.mxu0 0.0
    %647 = vmatpush1.msra.mxu0 0.0
    %648 = vmatprep.subr.mxu0 0.0
    %649 = vmatpush1.msra.mxu0 0.0
    %650 = vmatprep.subr.mxu0 0.0
    %651 = vmatpush1.msra.mxu0 0.0
    %652 = vmatprep.subr.mxu0 0.0
    %653 = vmatpush1.msra.mxu0 0.0
    %654 = vmatprep.subr.mxu0 0.0
    %655 = vmatpush1.msra.mxu0 0.0
    %656 = vmatprep.subr.mxu0 0.0
    %657 = vmatpush1.msra.mxu0 0.0
    %658 = vmatprep.subr.mxu0 0.0
    %659 = vmatpush1.msra.mxu0 0.0
    %660 = vmatprep.subr.mxu0 0.0
    %661 = vmatpush1.msra.mxu0 0.0
    %662 = vmatprep.subr.mxu0 0.0
    %663 = vmatpush1.msra.mxu0 0.0
    %664 = vmatprep.subr.mxu0 0.0
    %665 = vmatpush1.msra.mxu0 0.0
    %666 = vmatprep.subr.mxu0 0.0
    %667 = vmatpush1.msra.mxu0 0.0
    %668 = vmatprep.subr.mxu0 0.0
    %669 = vmatpush1.msra.mxu0 0.0
    %670 = vmatprep.subr.mxu0 0.0
    %671 = vmatpush1.msra.mxu0 0.0
    %672 = vmatprep.subr.mxu0 0.0
    %673 = vmatpush1.msra.mxu0 0.0
    %674 = vmatprep.subr.mxu0 0.0
    %675 = vmatpush1.msra.mxu0 0.0
    %676 = vmatprep.mubr.f32.mxu0 0.0
    %677 = vmatmul.mubr.f32.gmra.mrb[0].mxu0 %v610
    %v678 = vpop.f32.mrb[0].mxu0
    %v679 = vadd.f32 0.0, %v678
    %v680 = vpop.f32.mrb[0].mxu0
    %681 = vdwg.mxu0
    %v683 = vsel %vm491, %v534, 0
    %685 = vmatprep.subr.mxu0 0.0
    %686 = vmatpush1.msra.mxu0 %v181
    %687 = vmatprep.subr.mxu0 0.0
    %688 = vmatpush1.msra.mxu0 0.0
    %689 = vmatprep.subr.mxu0 0.0
    %690 = vmatpush1.msra.mxu0 0.0
    %691 = vmatprep.subr.mxu0 0.0
    %692 = vmatpush1.msra.mxu0 0.0
    %693 = vmatprep.subr.mxu0 0.0
    %694 = vmatpush1.msra.mxu0 0.0
    %695 = vmatprep.subr.mxu0 0.0
    %696 = vmatpush1.msra.mxu0 0.0
    %697 = vmatprep.subr.mxu0 0.0
    %698 = vmatpush1.msra.mxu0 0.0
    %699 = vmatprep.subr.mxu0 0.0
    %700 = vmatpush1.msra.mxu0 0.0
    %701 = vmatprep.subr.mxu0 0.0
    %702 = vmatpush1.msra.mxu0 0.0
    %703 = vmatprep.subr.mxu0 0.0
    %704 = vmatpush1.msra.mxu0 0.0
    %705 = vmatprep.subr.mxu0 0.0
    %706 = vmatpush1.msra.mxu0 0.0
    %707 = vmatprep.subr.mxu0 0.0
    %708 = vmatpush1.msra.mxu0 0.0
    %709 = vmatprep.subr.mxu0 0.0
    %710 = vmatpush1.msra.mxu0 0.0
    %711 = vmatprep.subr.mxu0 0.0
    %712 = vmatpush1.msra.mxu0 0.0
    %713 = vmatprep.subr.mxu0 0.0
    %714 = vmatpush1.msra.mxu0 0.0
    %715 = vmatprep.subr.mxu0 0.0
    %716 = vmatpush1.msra.mxu0 0.0
    %717 = vmatprep.subr.mxu0 0.0
    %718 = vmatpush1.msra.mxu0 0.0
    %719 = vmatprep.subr.mxu0 0.0
    %720 = vmatpush1.msra.mxu0 0.0
    %721 = vmatprep.subr.mxu0 0.0
    %722 = vmatpush1.msra.mxu0 0.0
    %723 = vmatprep.subr.mxu0 0.0
    %724 = vmatpush1.msra.mxu0 0.0
    %725 = vmatprep.subr.mxu0 0.0
    %726 = vmatpush1.msra.mxu0 0.0
    %727 = vmatprep.subr.mxu0 0.0
    %728 = vmatpush1.msra.mxu0 0.0
    %729 = vmatprep.subr.mxu0 0.0
    %730 = vmatpush1.msra.mxu0 0.0
    %731 = vmatprep.subr.mxu0 0.0
    %732 = vmatpush1.msra.mxu0 0.0
    %733 = vmatprep.subr.mxu0 0.0
    %734 = vmatpush1.msra.mxu0 0.0
    %735 = vmatprep.subr.mxu0 0.0
    %736 = vmatpush1.msra.mxu0 0.0
    %737 = vmatprep.subr.mxu0 0.0
    %738 = vmatpush1.msra.mxu0 0.0
    %739 = vmatprep.subr.mxu0 0.0
    %740 = vmatpush1.msra.mxu0 0.0
    %741 = vmatprep.subr.mxu0 0.0
    %742 = vmatpush1.msra.mxu0 0.0
    %743 = vmatprep.subr.mxu0 0.0
    %744 = vmatpush1.msra.mxu0 0.0
    %745 = vmatprep.subr.mxu0 0.0
    %746 = vmatpush1.msra.mxu0 0.0
    %747 = vmatprep.subr.mxu0 0.0
    %748 = vmatpush1.msra.mxu0 0.0
    %749 = vmatprep.mubr.f32.mxu0 0.0
    %750 = vmatmul.mubr.f32.gmra.mrb[0].mxu0 %v683
    %v751 = vpop.f32.mrb[0].mxu0
    %v752 = vadd.f32 0.0, %v751
    %v753 = vpop.f32.mrb[0].mxu0
    %754 = vdwg.mxu0
    %v756 = vsel %vm491, %v535, 0
    %758 = vmatprep.subr.mxu0 0.0
    %759 = vmatpush1.msra.mxu0 %v183
    %760 = vmatprep.subr.mxu0 0.0
    %761 = vmatpush1.msra.mxu0 0.0
    %762 = vmatprep.subr.mxu0 0.0
    %763 = vmatpush1.msra.mxu0 0.0
    %764 = vmatprep.subr.mxu0 0.0
    %765 = vmatpush1.msra.mxu0 0.0
    %766 = vmatprep.subr.mxu0 0.0
    %767 = vmatpush1.msra.mxu0 0.0
    %768 = vmatprep.subr.mxu0 0.0
    %769 = vmatpush1.msra.mxu0 0.0
    %770 = vmatprep.subr.mxu0 0.0
    %771 = vmatpush1.msra.mxu0 0.0
    %772 = vmatprep.subr.mxu0 0.0
    %773 = vmatpush1.msra.mxu0 0.0
    %774 = vmatprep.subr.mxu0 0.0
    %775 = vmatpush1.msra.mxu0 0.0
    %776 = vmatprep.subr.mxu0 0.0
    %777 = vmatpush1.msra.mxu0 0.0
    %778 = vmatprep.subr.mxu0 0.0
    %779 = vmatpush1.msra.mxu0 0.0
    %780 = vmatprep.subr.mxu0 0.0
    %781 = vmatpush1.msra.mxu0 0.0
    %782 = vmatprep.subr.mxu0 0.0
    %783 = vmatpush1.msra.mxu0 0.0
    %784 = vmatprep.subr.mxu0 0.0
    %785 = vmatpush1.msra.mxu0 0.0
    %786 = vmatprep.subr.mxu0 0.0
    %787 = vmatpush1.msra.mxu0 0.0
    %788 = vmatprep.subr.mxu0 0.0
    %789 = vmatpush1.msra.mxu0 0.0
    %790 = vmatprep.subr.mxu0 0.0
    %791 = vmatpush1.msra.mxu0 0.0
    %792 = vmatprep.subr.mxu0 0.0
    %793 = vmatpush1.msra.mxu0 0.0
    %794 = vmatprep.subr.mxu0 0.0
    %795 = vmatpush1.msra.mxu0 0.0
    %796 = vmatprep.subr.mxu0 0.0
    %797 = vmatpush1.msra.mxu0 0.0
    %798 = vmatprep.subr.mxu0 0.0
    %799 = vmatpush1.msra.mxu0 0.0
    %800 = vmatprep.subr.mxu0 0.0
    %801 = vmatpush1.msra.mxu0 0.0
    %802 = vmatprep.subr.mxu0 0.0
    %803 = vmatpush1.msra.mxu0 0.0
    %804 = vmatprep.subr.mxu0 0.0
    %805 = vmatpush1.msra.mxu0 0.0
    %806 = vmatprep.subr.mxu0 0.0
    %807 = vmatpush1.msra.mxu0 0.0
    %808 = vmatprep.subr.mxu0 0.0
    %809 = vmatpush1.msra.mxu0 0.0
    %810 = vmatprep.subr.mxu0 0.0
    %811 = vmatpush1.msra.mxu0 0.0
    %812 = vmatprep.subr.mxu0 0.0
    %813 = vmatpush1.msra.mxu0 0.0
    %814 = vmatprep.subr.mxu0 0.0
    %815 = vmatpush1.msra.mxu0 0.0
    %816 = vmatprep.subr.mxu0 0.0
    %817 = vmatpush1.msra.mxu0 0.0
    %818 = vmatprep.subr.mxu0 0.0
    %819 = vmatpush1.msra.mxu0 0.0
    %820 = vmatprep.subr.mxu0 0.0
    %821 = vmatpush1.msra.mxu0 0.0
    %822 = vmatprep.mubr.f32.mxu0 0.0
    %823 = vmatmul.mubr.f32.gmra.mrb[0].mxu0 %v756
    %v824 = vpop.f32.mrb[0].mxu0
    %v825 = vadd.f32 0.0, %v824
    %v826 = vpop.f32.mrb[0].mxu0
    %827 = vdwg.mxu0
    %830 = vrot.lane.b32.xlu0 %v752, 32
    %v831 = vpop.permute.xlu0 %830
    %832 = vrot.lane.b32.xlu0 %v825, 32
    %v833 = vpop.permute.xlu0 %832
    %v836 = vsel %vm188, %v606, %v831
    %v837 = vsel %vm188, %v679, %v833
    %v838 = vpack.c.bf16 %v837, %v836
    %v839 = vld [vmem:[%s4] sm:$0xf]
    %v840 = vld [vmem:[%s4 + $0x4] sm:$0xf]
    %v841 = vld [vmem:[%s4 + $0x8] sm:$0xf]
    %v842 = vld [vmem:[%s4 + $0xc] sm:$0xf]
    %v843 = vld [vmem:[%s4 + $0x10] sm:$0xf]
    %v844 = vld [vmem:[%s4 + $0x14] sm:$0xf]
    %v845 = vld [vmem:[%s4 + $0x18] sm:$0xf]
    %v846 = vld [vmem:[%s4 + $0x1c] sm:$0xf]
    %v847 = vld [vmem:[%s5] sm:$0x1]
    %v848 = vlaneseq
    %v849 = vshrl.u32 %v848, 7
    %v850 = vsub.s32 0, %v849
    %v851 = vrot.slane %v847, %v850
    %v860 = vunpack.c.l.b16 %v839
    %v861 = vunpack.c.l.b16 %v840
    %v862 = vunpack.c.l.b16 %v841
    %v863 = vunpack.c.l.b16 %v842
    %v864 = vunpack.c.l.b16 %v843
    %v865 = vunpack.c.l.b16 %v844
    %v866 = vunpack.c.l.b16 %v845
    %v867 = vunpack.c.l.b16 %v846
    %v868 = vpack.c.b16 %v861, %v860
    %v869 = vpack.c.b16 %v863, %v862
    %v870 = vpack.c.b16 %v865, %v864
    %v871 = vpack.c.b16 %v867, %v866
    %v877 = vsel %vm125, %v838, 0
    %879 = vmatprep.subr.bf16.mxu0 0
    %880 = vmatpush1.bf16.msra.mxu0 %v868
    %881 = vmatprep.subr.bf16.mxu0 0
    %882 = vmatpush1.bf16.msra.mxu0 %v869
    %883 = vmatprep.subr.bf16.mxu0 0
    %884 = vmatpush1.bf16.msra.mxu0 %v870
    %885 = vmatprep.subr.bf16.mxu0 0
    %886 = vmatpush1.bf16.msra.mxu0 %v871
    %887 = vmatprep.subr.bf16.mxu0 0
    %888 = vmatpush1.bf16.msra.mxu0 0
    %889 = vmatprep.subr.bf16.mxu0 0
    %890 = vmatpush1.bf16.msra.mxu0 0
    %891 = vmatprep.subr.bf16.mxu0 0
    %892 = vmatpush1.bf16.msra.mxu0 0
    %893 = vmatprep.subr.bf16.mxu0 0
    %894 = vmatpush1.bf16.msra.mxu0 0
    %895 = vmatprep.subr.bf16.mxu0 0
    %896 = vmatpush1.bf16.msra.mxu0 0
    %897 = vmatprep.subr.bf16.mxu0 0
    %898 = vmatpush1.bf16.msra.mxu0 0
    %899 = vmatprep.subr.bf16.mxu0 0
    %900 = vmatpush1.bf16.msra.mxu0 0
    %901 = vmatprep.subr.bf16.mxu0 0
    %902 = vmatpush1.bf16.msra.mxu0 0
    %903 = vmatprep.subr.bf16.mxu0 0
    %904 = vmatpush1.bf16.msra.mxu0 0
    %905 = vmatprep.subr.bf16.mxu0 0
    %906 = vmatpush1.bf16.msra.mxu0 0
    %907 = vmatprep.subr.bf16.mxu0 0
    %908 = vmatpush1.bf16.msra.mxu0 0
    %909 = vmatprep.subr.bf16.mxu0 0
    %910 = vmatpush1.bf16.msra.mxu0 0
    %911 = vmatprep.mubr.bf16.mxu0 0
    %912 = vmatmul.mubr.bf16.gmra.mrb[0].mxu0 %v877
    %v913 = vpop.f32.mrb[0].mxu0
    %v914 = vadd.f32 %v851, %v913
    %v915 = vpop.f32.mrb[0].mxu0
    %v916 = vpop.f32.mrb[0].mxu0
    %v917 = vadd.f32 %v851, %v916
    %v918 = vpop.f32.mrb[0].mxu0
    %919 = vdwg.mxu0
    %v920 = vadd.f32 %v61, %v914
    %v921 = vadd.f32 %v62, %v917
    %v922 = vld [vmem:[%s16] sm:$0x1]
    %v923 = vld [vmem:[%s17] sm:$0x1]
    %v924 = vsel %vm125, %v920, 0.0
    %925 = vadd.xlane.f32.xlu0 %v924
    %v926 = vpop.xlane.xlu0 %925
    %v927 = vsel %vm125, %v921, 0.0
    %928 = vadd.xlane.f32.xlu0 %v927
    %v929 = vpop.xlane.xlu0 %928
    %v930 = vrcp.pop 64.0
    %v931 = vmul.f32 %v926, %v930
    %v932 = vmul.f32 %v929, %v930
    %v933 = vsub.f32 %v920, %v931
    %v934 = vsub.f32 %v921, %v932
    %v935 = vmul.f32 %v933, %v933
    %v936 = vmul.f32 %v934, %v934
    %v937 = vsel %vm125, %v935, 0.0
    %938 = vadd.xlane.f32.xlu0 %v937
    %v939 = vpop.xlane.xlu0 %938
    %v940 = vsel %vm125, %v936, 0.0
    %941 = vadd.xlane.f32.xlu0 %v940
    %v942 = vpop.xlane.xlu0 %941
    %v943 = vmul.f32 %v939, %v930
    %v944 = vmul.f32 %v942, %v930
    %v945 = vadd.f32 %v943, 1e-05
    %v946 = vadd.f32 %v944, 1e-05
    %v947 = vrsqrt.pop %v945
    %v948 = vrsqrt.pop %v946
    %v949 = vmul.f32 %v933, %v947
    %v950 = vmul.f32 %v934, %v948
    %v951 = vlaneseq
    %v952 = vshrl.u32 %v951, 7
    %v953 = vsub.s32 0, %v952
    %v954 = vrot.slane %v922, %v953
    %v955 = vmul.f32 %v949, %v954
    %v956 = vmul.f32 %v950, %v954
    %v957 = vlaneseq
    %v958 = vshrl.u32 %v957, 7
    %v959 = vsub.s32 0, %v958
    %v960 = vrot.slane %v923, %v959
    %v961 = vadd.f32 %v955, %v960
    %v962 = vadd.f32 %v956, %v960
    %v963 = vld [vmem:[%s8] sm:$0xf]
    %v964 = vld [vmem:[%s8 + $0x4] sm:$0xf]
    %v965 = vld [vmem:[%s8 + $0x8] sm:$0xf]
    %v966 = vld [vmem:[%s8 + $0xc] sm:$0xf]
    %v967 = vld [vmem:[%s8 + $0x10] sm:$0xf]
    %v968 = vld [vmem:[%s8 + $0x14] sm:$0xf]
    %v969 = vld [vmem:[%s8 + $0x18] sm:$0xf]
    %v970 = vld [vmem:[%s8 + $0x1c] sm:$0xf]
    %v971 = vld [vmem:[%s9] sm:$0x1]
    %v972 = vlaneseq
    %v973 = vshrl.u32 %v972, 7
    %v974 = vsub.s32 0, %v973
    %v975 = vrot.slane %v971, %v974
    %v984 = vunpack.c.l.b16 %v963
    %v985 = vunpack.c.l.b16 %v964
    %v986 = vunpack.c.l.b16 %v965
    %v987 = vunpack.c.l.b16 %v966
    %v988 = vunpack.c.l.b16 %v967
    %v989 = vunpack.c.l.b16 %v968
    %v990 = vunpack.c.l.b16 %v969
    %v991 = vunpack.c.l.b16 %v970
    %v992 = vpack.c.b16 %v985, %v984
    %v993 = vpack.c.b16 %v987, %v986
    %v994 = vpack.c.b16 %v989, %v988
    %v995 = vpack.c.b16 %v991, %v990
    %1000 = vmatprep.subr.bf16.mxu0 0
    %1001 = vmatpush1.bf16.msra.mxu0 %v992
    %1002 = vmatprep.subr.bf16.mxu0 0
    %1003 = vmatpush1.bf16.msra.mxu0 %v993
    %1004 = vmatprep.subr.bf16.mxu0 0
    %1005 = vmatpush1.bf16.msra.mxu0 %v994
    %1006 = vmatprep.subr.bf16.mxu0 0
    %1007 = vmatpush1.bf16.msra.mxu0 %v995
    %1008 = vmatprep.subr.bf16.mxu0 0
    %1009 = vmatpush1.bf16.msra.mxu0 0
    %1010 = vmatprep.subr.bf16.mxu0 0
    %1011 = vmatpush1.bf16.msra.mxu0 0
    %1012 = vmatprep.subr.bf16.mxu0 0
    %1013 = vmatpush1.bf16.msra.mxu0 0
    %1014 = vmatprep.subr.bf16.mxu0 0
    %1015 = vmatpush1.bf16.msra.mxu0 0
    %1016 = vmatprep.subr.bf16.mxu0 0
    %1017 = vmatpush1.bf16.msra.mxu0 0
    %1018 = vmatprep.subr.bf16.mxu0 0
    %1019 = vmatpush1.bf16.msra.mxu0 0
    %1020 = vmatprep.subr.bf16.mxu0 0
    %1021 = vmatpush1.bf16.msra.mxu0 0
    %1022 = vmatprep.subr.bf16.mxu0 0
    %1023 = vmatpush1.bf16.msra.mxu0 0
    %1024 = vmatprep.subr.bf16.mxu0 0
    %1025 = vmatpush1.bf16.msra.mxu0 0
    %1026 = vmatprep.subr.bf16.mxu0 0
    %1027 = vmatpush1.bf16.msra.mxu0 0
    %1028 = vmatprep.subr.bf16.mxu0 0
    %1029 = vmatpush1.bf16.msra.mxu0 0
    %1030 = vmatprep.subr.bf16.mxu0 0
    %1031 = vmatpush1.bf16.msra.mxu0 0
    %1032 = vmatprep.mubr.bf16.mxu0 0
    %1033 = vmatmul.mubr.bf16.gmra.mrb[0].mxu0 %v127
    %v1034 = vpop.f32.mrb[0].mxu0
    %v1035 = vadd.f32 %v975, %v1034
    %v1036 = vpop.f32.mrb[0].mxu0
    %v1037 = vpop.f32.mrb[0].mxu0
    %v1038 = vadd.f32 %v975, %v1037
    %v1039 = vpop.f32.mrb[0].mxu0
    %1040 = vdwg.mxu0
    %1043 = vrot.lane.b32.xlu0 %v1035, 96
    %v1044 = vpop.permute.xlu0 %1043
    %1045 = vrot.lane.b32.xlu0 %v1038, 96
    %v1046 = vpop.permute.xlu0 %1045
    %v1047 = vpack.c.bf16 %v962, %v961
    %v1048 = vld [vmem:[%s6] sm:$0xf]
    %v1049 = vld [vmem:[%s6 + $0x4] sm:$0xf]
    %v1050 = vld [vmem:[%s6 + $0x8] sm:$0xf]
    %v1051 = vld [vmem:[%s6 + $0xc] sm:$0xf]
    %v1052 = vld [vmem:[%s6 + $0x10] sm:$0xf]
    %v1053 = vld [vmem:[%s6 + $0x14] sm:$0xf]
    %v1054 = vld [vmem:[%s6 + $0x18] sm:$0xf]
    %v1055 = vld [vmem:[%s6 + $0x1c] sm:$0xf]
    %v1056 = vld [vmem:[%s7] sm:$0x1]
    %v1057 = vlaneseq
    %v1058 = vshrl.u32 %v1057, 7
    %v1059 = vsub.s32 0, %v1058
    %v1060 = vrot.slane %v1056, %v1059
    %v1069 = vunpack.c.l.b16 %v1048
    %v1070 = vunpack.c.l.b16 %v1049
    %v1071 = vunpack.c.l.b16 %v1050
    %v1072 = vunpack.c.l.b16 %v1051
    %v1073 = vunpack.c.l.b16 %v1052
    %v1074 = vunpack.c.l.b16 %v1053
    %v1075 = vunpack.c.l.b16 %v1054
    %v1076 = vunpack.c.l.b16 %v1055
    %v1077 = vpack.c.b16 %v1070, %v1069
    %v1078 = vpack.c.b16 %v1072, %v1071
    %v1079 = vpack.c.b16 %v1074, %v1073
    %v1080 = vpack.c.b16 %v1076, %v1075
    %v1086 = vsel %vm125, %v1047, 0
    %1088 = vmatprep.subr.bf16.mxu0 0
    %1089 = vmatpush1.bf16.msra.mxu0 %v1077
    %1090 = vmatprep.subr.bf16.mxu0 0
    %1091 = vmatpush1.bf16.msra.mxu0 %v1078
    %1092 = vmatprep.subr.bf16.mxu0 0
    %1093 = vmatpush1.bf16.msra.mxu0 %v1079
    %1094 = vmatprep.subr.bf16.mxu0 0
    %1095 = vmatpush1.bf16.msra.mxu0 %v1080
    %1096 = vmatprep.subr.bf16.mxu0 0
    %1097 = vmatpush1.bf16.msra.mxu0 0
    %1098 = vmatprep.subr.bf16.mxu0 0
    %1099 = vmatpush1.bf16.msra.mxu0 0
    %1100 = vmatprep.subr.bf16.mxu0 0
    %1101 = vmatpush1.bf16.msra.mxu0 0
    %1102 = vmatprep.subr.bf16.mxu0 0
    %1103 = vmatpush1.bf16.msra.mxu0 0
    %1104 = vmatprep.subr.bf16.mxu0 0
    %1105 = vmatpush1.bf16.msra.mxu0 0
    %1106 = vmatprep.subr.bf16.mxu0 0
    %1107 = vmatpush1.bf16.msra.mxu0 0
    %1108 = vmatprep.subr.bf16.mxu0 0
    %1109 = vmatpush1.bf16.msra.mxu0 0
    %1110 = vmatprep.subr.bf16.mxu0 0
    %1111 = vmatpush1.bf16.msra.mxu0 0
    %1112 = vmatprep.subr.bf16.mxu0 0
    %1113 = vmatpush1.bf16.msra.mxu0 0
    %1114 = vmatprep.subr.bf16.mxu0 0
    %1115 = vmatpush1.bf16.msra.mxu0 0
    %1116 = vmatprep.subr.bf16.mxu0 0
    %1117 = vmatpush1.bf16.msra.mxu0 0
    %1118 = vmatprep.subr.bf16.mxu0 0
    %1119 = vmatpush1.bf16.msra.mxu0 0
    %1120 = vmatprep.mubr.bf16.mxu0 0
    %1121 = vmatmul.mubr.bf16.gmra.mrb[0].mxu0 %v1086
    %v1122 = vpop.f32.mrb[0].mxu0
    %v1123 = vadd.f32 %v1060, %v1122
    %v1124 = vpop.f32.mrb[0].mxu0
    %v1125 = vpop.f32.mrb[0].mxu0
    %v1126 = vadd.f32 %v1060, %v1125
    %v1127 = vpop.f32.mrb[0].mxu0
    %1128 = vdwg.mxu0
    %1131 = vrot.lane.b32.xlu0 %v1123, 96
    %v1132 = vpop.permute.xlu0 %1131
    %1133 = vrot.lane.b32.xlu0 %v1126, 96
    %v1134 = vpop.permute.xlu0 %1133
    %v1135 = vsel %vm188, %v1123, 0
    %v1137 = vsel %vm188, %v1035, 0
    %1139 = vmatprep.subr.mxu0 0.0
    %1140 = vmatpush1.xpose.msra.mxu0 %v1137
    %1141 = vmatprep.subr.mxu0 0.0
    %1142 = vmatpush1.xpose.msra.mxu0 0.0
    %1143 = vmatprep.subr.mxu0 0.0
    %1144 = vmatpush1.xpose.msra.mxu0 0.0
    %1145 = vmatprep.subr.mxu0 0.0
    %1146 = vmatpush1.xpose.msra.mxu0 0.0
    %1147 = vmatprep.subr.mxu0 0.0
    %1148 = vmatpush1.xpose.msra.mxu0 0.0
    %1149 = vmatprep.subr.mxu0 0.0
    %1150 = vmatpush1.xpose.msra.mxu0 0.0
    %1151 = vmatprep.subr.mxu0 0.0
    %1152 = vmatpush1.xpose.msra.mxu0 0.0
    %1153 = vmatprep.subr.mxu0 0.0
    %1154 = vmatpush1.xpose.msra.mxu0 0.0
    %1155 = vmatprep.subr.mxu0 0.0
    %1156 = vmatpush1.xpose.msra.mxu0 0.0
    %1157 = vmatprep.subr.mxu0 0.0
    %1158 = vmatpush1.xpose.msra.mxu0 0.0
    %1159 = vmatprep.subr.mxu0 0.0
    %1160 = vmatpush1.xpose.msra.mxu0 0.0
    %1161 = vmatprep.subr.mxu0 0.0
    %1162 = vmatpush1.xpose.msra.mxu0 0.0
    %1163 = vmatprep.subr.mxu0 0.0
    %1164 = vmatpush1.xpose.msra.mxu0 0.0
    %1165 = vmatprep.subr.mxu0 0.0
    %1166 = vmatpush1.xpose.msra.mxu0 0.0
    %1167 = vmatprep.subr.mxu0 0.0
    %1168 = vmatpush1.xpose.msra.mxu0 0.0
    %1169 = vmatprep.subr.mxu0 0.0
    %1170 = vmatpush1.xpose.msra.mxu0 0.0
    %1171 = vmatprep.subr.mxu0 0.0
    %1172 = vmatpush1.xpose.msra.mxu0 0.0
    %1173 = vmatprep.subr.mxu0 0.0
    %1174 = vmatpush1.xpose.msra.mxu0 0.0
    %1175 = vmatprep.subr.mxu0 0.0
    %1176 = vmatpush1.xpose.msra.mxu0 0.0
    %1177 = vmatprep.subr.mxu0 0.0
    %1178 = vmatpush1.xpose.msra.mxu0 0.0
    %1179 = vmatprep.subr.mxu0 0.0
    %1180 = vmatpush1.xpose.msra.mxu0 0.0
    %1181 = vmatprep.subr.mxu0 0.0
    %1182 = vmatpush1.xpose.msra.mxu0 0.0
    %1183 = vmatprep.subr.mxu0 0.0
    %1184 = vmatpush1.xpose.msra.mxu0 0.0
    %1185 = vmatprep.subr.mxu0 0.0
    %1186 = vmatpush1.xpose.msra.mxu0 0.0
    %1187 = vmatprep.subr.mxu0 0.0
    %1188 = vmatpush1.xpose.msra.mxu0 0.0
    %1189 = vmatprep.subr.mxu0 0.0
    %1190 = vmatpush1.xpose.msra.mxu0 0.0
    %1191 = vmatprep.subr.mxu0 0.0
    %1192 = vmatpush1.xpose.msra.mxu0 0.0
    %1193 = vmatprep.subr.mxu0 0.0
    %1194 = vmatpush1.xpose.msra.mxu0 0.0
    %1195 = vmatprep.subr.mxu0 0.0
    %1196 = vmatpush1.xpose.msra.mxu0 0.0
    %1197 = vmatprep.subr.mxu0 0.0
    %1198 = vmatpush1.xpose.msra.mxu0 0.0
    %1199 = vmatprep.subr.mxu0 0.0
    %1200 = vmatpush1.xpose.msra.mxu0 0.0
    %1201 = vmatprep.subr.mxu0 0.0
    %1202 = vmatpush1.xpose.msra.mxu0 0.0
    %1203 = vmatprep.mubr.f32.mxu0 0.0
    %1204 = vmatmul.mubr.f32.gmra.mrb[0].mxu0 %v1135
    %v1205 = vpop.f32.mrb[0].mxu0
    %v1206 = vadd.f32 0.0, %v1205
    %v1207 = vpop.f32.mrb[0].mxu0
    %1208 = vdwg.mxu0
    %v1209 = vsel %vm188, %v1126, 0
    %v1211 = vsel %vm188, %v1038, 0
    %1213 = vmatprep.subr.mxu0 0.0
    %1214 = vmatpush1.xpose.msra.mxu0 %v1211
    %1215 = vmatprep.subr.mxu0 0.0
    %1216 = vmatpush1.xpose.msra.mxu0 0.0
    %1217 = vmatprep.subr.mxu0 0.0
    %1218 = vmatpush1.xpose.msra.mxu0 0.0
    %1219 = vmatprep.subr.mxu0 0.0
    %1220 = vmatpush1.xpose.msra.mxu0 0.0
    %1221 = vmatprep.subr.mxu0 0.0
    %1222 = vmatpush1.xpose.msra.mxu0 0.0
    %1223 = vmatprep.subr.mxu0 0.0
    %1224 = vmatpush1.xpose.msra.mxu0 0.0
    %1225 = vmatprep.subr.mxu0 0.0
    %1226 = vmatpush1.xpose.msra.mxu0 0.0
    %1227 = vmatprep.subr.mxu0 0.0
    %1228 = vmatpush1.xpose.msra.mxu0 0.0
    %1229 = vmatprep.subr.mxu0 0.0
    %1230 = vmatpush1.xpose.msra.mxu0 0.0
    %1231 = vmatprep.subr.mxu0 0.0
    %1232 = vmatpush1.xpose.msra.mxu0 0.0
    %1233 = vmatprep.subr.mxu0 0.0
    %1234 = vmatpush1.xpose.msra.mxu0 0.0
    %1235 = vmatprep.subr.mxu0 0.0
    %1236 = vmatpush1.xpose.msra.mxu0 0.0
    %1237 = vmatprep.subr.mxu0 0.0
    %1238 = vmatpush1.xpose.msra.mxu0 0.0
    %1239 = vmatprep.subr.mxu0 0.0
    %1240 = vmatpush1.xpose.msra.mxu0 0.0
    %1241 = vmatprep.subr.mxu0 0.0
    %1242 = vmatpush1.xpose.msra.mxu0 0.0
    %1243 = vmatprep.subr.mxu0 0.0
    %1244 = vmatpush1.xpose.msra.mxu0 0.0
    %1245 = vmatprep.subr.mxu0 0.0
    %1246 = vmatpush1.xpose.msra.mxu0 0.0
    %1247 = vmatprep.subr.mxu0 0.0
    %1248 = vmatpush1.xpose.msra.mxu0 0.0
    %1249 = vmatprep.subr.mxu0 0.0
    %1250 = vmatpush1.xpose.msra.mxu0 0.0
    %1251 = vmatprep.subr.mxu0 0.0
    %1252 = vmatpush1.xpose.msra.mxu0 0.0
    %1253 = vmatprep.subr.mxu0 0.0
    %1254 = vmatpush1.xpose.msra.mxu0 0.0
    %1255 = vmatprep.subr.mxu0 0.0
    %1256 = vmatpush1.xpose.msra.mxu0 0.0
    %1257 = vmatprep.subr.mxu0 0.0
    %1258 = vmatpush1.xpose.msra.mxu0 0.0
    %1259 = vmatprep.subr.mxu0 0.0
    %1260 = vmatpush1.xpose.msra.mxu0 0.0
    %1261 = vmatprep.subr.mxu0 0.0
    %1262 = vmatpush1.xpose.msra.mxu0 0.0
    %1263 = vmatprep.subr.mxu0 0.0
    %1264 = vmatpush1.xpose.msra.mxu0 0.0
    %1265 = vmatprep.subr.mxu0 0.0
    %1266 = vmatpush1.xpose.msra.mxu0 0.0
    %1267 = vmatprep.subr.mxu0 0.0
    %1268 = vmatpush1.xpose.msra.mxu0 0.0
    %1269 = vmatprep.subr.mxu0 0.0
    %1270 = vmatpush1.xpose.msra.mxu0 0.0
    %1271 = vmatprep.subr.mxu0 0.0
    %1272 = vmatpush1.xpose.msra.mxu0 0.0
    %1273 = vmatprep.subr.mxu0 0.0
    %1274 = vmatpush1.xpose.msra.mxu0 0.0
    %1275 = vmatprep.subr.mxu0 0.0
    %1276 = vmatpush1.xpose.msra.mxu0 0.0
    %1277 = vmatprep.mubr.f32.mxu0 0.0
    %1278 = vmatmul.mubr.f32.gmra.mrb[0].mxu0 %v1209
    %v1279 = vpop.f32.mrb[0].mxu0
    %v1280 = vadd.f32 0.0, %v1279
    %v1281 = vpop.f32.mrb[0].mxu0
    %1282 = vdwg.mxu0
    %v1283 = vsel %vm188, %v1132, 0
    %v1285 = vsel %vm188, %v1044, 0
    %1287 = vmatprep.subr.mxu0 0.0
    %1288 = vmatpush1.xpose.msra.mxu0 %v1285
    %1289 = vmatprep.subr.mxu0 0.0
    %1290 = vmatpush1.xpose.msra.mxu0 0.0
    %1291 = vmatprep.subr.mxu0 0.0
    %1292 = vmatpush1.xpose.msra.mxu0 0.0
    %1293 = vmatprep.subr.mxu0 0.0
    %1294 = vmatpush1.xpose.msra.mxu0 0.0
    %1295 = vmatprep.subr.mxu0 0.0
    %1296 = vmatpush1.xpose.msra.mxu0 0.0
    %1297 = vmatprep.subr.mxu0 0.0
    %1298 = vmatpush1.xpose.msra.mxu0 0.0
    %1299 = vmatprep.subr.mxu0 0.0
    %1300 = vmatpush1.xpose.msra.mxu0 0.0
    %1301 = vmatprep.subr.mxu0 0.0
    %1302 = vmatpush1.xpose.msra.mxu0 0.0
    %1303 = vmatprep.subr.mxu0 0.0
    %1304 = vmatpush1.xpose.msra.mxu0 0.0
    %1305 = vmatprep.subr.mxu0 0.0
    %1306 = vmatpush1.xpose.msra.mxu0 0.0
    %1307 = vmatprep.subr.mxu0 0.0
    %1308 = vmatpush1.xpose.msra.mxu0 0.0
    %1309 = vmatprep.subr.mxu0 0.0
    %1310 = vmatpush1.xpose.msra.mxu0 0.0
    %1311 = vmatprep.subr.mxu0 0.0
    %1312 = vmatpush1.xpose.msra.mxu0 0.0
    %1313 = vmatprep.subr.mxu0 0.0
    %1314 = vmatpush1.xpose.msra.mxu0 0.0
    %1315 = vmatprep.subr.mxu0 0.0
    %1316 = vmatpush1.xpose.msra.mxu0 0.0
    %1317 = vmatprep.subr.mxu0 0.0
    %1318 = vmatpush1.xpose.msra.mxu0 0.0
    %1319 = vmatprep.subr.mxu0 0.0
    %1320 = vmatpush1.xpose.msra.mxu0 0.0
    %1321 = vmatprep.subr.mxu0 0.0
    %1322 = vmatpush1.xpose.msra.mxu0 0.0
    %1323 = vmatprep.subr.mxu0 0.0
    %1324 = vmatpush1.xpose.msra.mxu0 0.0
    %1325 = vmatprep.subr.mxu0 0.0
    %1326 = vmatpush1.xpose.msra.mxu0 0.0
    %1327 = vmatprep.subr.mxu0 0.0
    %1328 = vmatpush1.xpose.msra.mxu0 0.0
    %1329 = vmatprep.subr.mxu0 0.0
    %1330 = vmatpush1.xpose.msra.mxu0 0.0
    %1331 = vmatprep.subr.mxu0 0.0
    %1332 = vmatpush1.xpose.msra.mxu0 0.0
    %1333 = vmatprep.subr.mxu0 0.0
    %1334 = vmatpush1.xpose.msra.mxu0 0.0
    %1335 = vmatprep.subr.mxu0 0.0
    %1336 = vmatpush1.xpose.msra.mxu0 0.0
    %1337 = vmatprep.subr.mxu0 0.0
    %1338 = vmatpush1.xpose.msra.mxu0 0.0
    %1339 = vmatprep.subr.mxu0 0.0
    %1340 = vmatpush1.xpose.msra.mxu0 0.0
    %1341 = vmatprep.subr.mxu0 0.0
    %1342 = vmatpush1.xpose.msra.mxu0 0.0
    %1343 = vmatprep.subr.mxu0 0.0
    %1344 = vmatpush1.xpose.msra.mxu0 0.0
    %1345 = vmatprep.subr.mxu0 0.0
    %1346 = vmatpush1.xpose.msra.mxu0 0.0
    %1347 = vmatprep.subr.mxu0 0.0
    %1348 = vmatpush1.xpose.msra.mxu0 0.0
    %1349 = vmatprep.subr.mxu0 0.0
    %1350 = vmatpush1.xpose.msra.mxu0 0.0
    %1351 = vmatprep.mubr.f32.mxu0 0.0
    %1352 = vmatmul.mubr.f32.gmra.mrb[0].mxu0 %v1283
    %v1353 = vpop.f32.mrb[0].mxu0
    %v1354 = vadd.f32 0.0, %v1353
    %v1355 = vpop.f32.mrb[0].mxu0
    %1356 = vdwg.mxu0
    %v1357 = vsel %vm188, %v1134, 0
    %v1359 = vsel %vm188, %v1046, 0
    %1361 = vmatprep.subr.mxu0 0.0
    %1362 = vmatpush1.xpose.msra.mxu0 %v1359
    %1363 = vmatprep.subr.mxu0 0.0
    %1364 = vmatpush1.xpose.msra.mxu0 0.0
    %1365 = vmatprep.subr.mxu0 0.0
    %1366 = vmatpush1.xpose.msra.mxu0 0.0
    %1367 = vmatprep.subr.mxu0 0.0
    %1368 = vmatpush1.xpose.msra.mxu0 0.0
    %1369 = vmatprep.subr.mxu0 0.0
    %1370 = vmatpush1.xpose.msra.mxu0 0.0
    %1371 = vmatprep.subr.mxu0 0.0
    %1372 = vmatpush1.xpose.msra.mxu0 0.0
    %1373 = vmatprep.subr.mxu0 0.0
    %1374 = vmatpush1.xpose.msra.mxu0 0.0
    %1375 = vmatprep.subr.mxu0 0.0
    %1376 = vmatpush1.xpose.msra.mxu0 0.0
    %1377 = vmatprep.subr.mxu0 0.0
    %1378 = vmatpush1.xpose.msra.mxu0 0.0
    %1379 = vmatprep.subr.mxu0 0.0
    %1380 = vmatpush1.xpose.msra.mxu0 0.0
    %1381 = vmatprep.subr.mxu0 0.0
    %1382 = vmatpush1.xpose.msra.mxu0 0.0
    %1383 = vmatprep.subr.mxu0 0.0
    %1384 = vmatpush1.xpose.msra.mxu0 0.0
    %1385 = vmatprep.subr.mxu0 0.0
    %1386 = vmatpush1.xpose.msra.mxu0 0.0
    %1387 = vmatprep.subr.mxu0 0.0
    %1388 = vmatpush1.xpose.msra.mxu0 0.0
    %1389 = vmatprep.subr.mxu0 0.0
    %1390 = vmatpush1.xpose.msra.mxu0 0.0
    %1391 = vmatprep.subr.mxu0 0.0
    %1392 = vmatpush1.xpose.msra.mxu0 0.0
    %1393 = vmatprep.subr.mxu0 0.0
    %1394 = vmatpush1.xpose.msra.mxu0 0.0
    %1395 = vmatprep.subr.mxu0 0.0
    %1396 = vmatpush1.xpose.msra.mxu0 0.0
    %1397 = vmatprep.subr.mxu0 0.0
    %1398 = vmatpush1.xpose.msra.mxu0 0.0
    %1399 = vmatprep.subr.mxu0 0.0
    %1400 = vmatpush1.xpose.msra.mxu0 0.0
    %1401 = vmatprep.subr.mxu0 0.0
    %1402 = vmatpush1.xpose.msra.mxu0 0.0
    %1403 = vmatprep.subr.mxu0 0.0
    %1404 = vmatpush1.xpose.msra.mxu0 0.0
    %1405 = vmatprep.subr.mxu0 0.0
    %1406 = vmatpush1.xpose.msra.mxu0 0.0
    %1407 = vmatprep.subr.mxu0 0.0
    %1408 = vmatpush1.xpose.msra.mxu0 0.0
    %1409 = vmatprep.subr.mxu0 0.0
    %1410 = vmatpush1.xpose.msra.mxu0 0.0
    %1411 = vmatprep.subr.mxu0 0.0
    %1412 = vmatpush1.xpose.msra.mxu0 0.0
    %1413 = vmatprep.subr.mxu0 0.0
    %1414 = vmatpush1.xpose.msra.mxu0 0.0
    %1415 = vmatprep.subr.mxu0 0.0
    %1416 = vmatpush1.xpose.msra.mxu0 0.0
    %1417 = vmatprep.subr.mxu0 0.0
    %1418 = vmatpush1.xpose.msra.mxu0 0.0
    %1419 = vmatprep.subr.mxu0 0.0
    %1420 = vmatpush1.xpose.msra.mxu0 0.0
    %1421 = vmatprep.subr.mxu0 0.0
    %1422 = vmatpush1.xpose.msra.mxu0 0.0
    %1423 = vmatprep.subr.mxu0 0.0
    %1424 = vmatpush1.xpose.msra.mxu0 0.0
    %1425 = vmatprep.mubr.f32.mxu0 0.0
    %1426 = vmatmul.mubr.f32.gmra.mrb[0].mxu0 %v1357
    %v1427 = vpop.f32.mrb[0].mxu0
    %v1428 = vadd.f32 0.0, %v1427
    %v1429 = vpop.f32.mrb[0].mxu0
    %1430 = vdwg.mxu0
    %v1431 = vsel %vm491, %v1206, -inf
    %1432 = vmax.xlane.f32.xlu0 %v1431
    %v1433 = vpop.xlane.xlu0 %1432
    %v1434 = vsel %vm491, %v1280, -inf
    %1435 = vmax.xlane.f32.xlu0 %v1434
    %v1436 = vpop.xlane.xlu0 %1435
    %v1437 = vsel %vm491, %v1354, -inf
    %1438 = vmax.xlane.f32.xlu0 %v1437
    %v1439 = vpop.xlane.xlu0 %1438
    %v1440 = vsel %vm491, %v1428, -inf
    %1441 = vmax.xlane.f32.xlu0 %v1440
    %v1442 = vpop.xlane.xlu0 %1441
    %v1443 = vsub.f32 %v1206, %v1433
    %v1444 = vsub.f32 %v1280, %v1436
    %v1445 = vsub.f32 %v1354, %v1439
    %v1446 = vsub.f32 %v1428, %v1442
    %v1447 = vmul.f32 %v1443, 1.442695
    %v1448 = vpow.pop %v1447
    %v1449 = vmul.f32 %v1444, 1.442695
    %v1450 = vpow.pop %v1449
    %v1451 = vmul.f32 %v1445, 1.442695
    %v1452 = vpow.pop %v1451
    %v1453 = vmul.f32 %v1446, 1.442695
    %v1454 = vpow.pop %v1453
    %v1455 = vsel %vm491, %v1448, 0.0
    %1456 = vadd.xlane.f32.xlu0 %v1455
    %v1457 = vpop.xlane.xlu0 %1456
    %v1458 = vsel %vm491, %v1450, 0.0
    %1459 = vadd.xlane.f32.xlu0 %v1458
    %v1460 = vpop.xlane.xlu0 %1459
    %v1461 = vsel %vm491, %v1452, 0.0
    %1462 = vadd.xlane.f32.xlu0 %v1461
    %v1463 = vpop.xlane.xlu0 %1462
    %v1464 = vsel %vm491, %v1454, 0.0
    %1465 = vadd.xlane.f32.xlu0 %v1464
    %v1466 = vpop.xlane.xlu0 %1465
    %v1467 = vrcp.pop %v1457
    %v1468 = vrcp.pop %v1460
    %v1469 = vrcp.pop %v1463
    %v1470 = vrcp.pop %v1466
    %v1471 = vmul.f32 %v1448, %v1467
    %v1472 = vmul.f32 %v1450, %v1468
    %v1473 = vmul.f32 %v1452, %v1469
    %v1474 = vmul.f32 %v1454, %v1470
    %1475 = vrot.lane.b32.xlu0 %v1035, 64
    %v1476 = vpop.permute.xlu0 %1475
    %v1479 = vsel %vm491, %v1471, 0
    %1481 = vmatprep.subr.mxu0 0.0
    %1482 = vmatpush1.msra.mxu0 %v1476
    %1483 = vmatprep.subr.mxu0 0.0
    %1484 = vmatpush1.msra.mxu0 0.0
    %1485 = vmatprep.subr.mxu0 0.0
    %1486 = vmatpush1.msra.mxu0 0.0
    %1487 = vmatprep.subr.mxu0 0.0
    %1488 = vmatpush1.msra.mxu0 0.0
    %1489 = vmatprep.subr.mxu0 0.0
    %1490 = vmatpush1.msra.mxu0 0.0
    %1491 = vmatprep.subr.mxu0 0.0
    %1492 = vmatpush1.msra.mxu0 0.0
    %1493 = vmatprep.subr.mxu0 0.0
    %1494 = vmatpush1.msra.mxu0 0.0
    %1495 = vmatprep.subr.mxu0 0.0
    %1496 = vmatpush1.msra.mxu0 0.0
    %1497 = vmatprep.subr.mxu0 0.0
    %1498 = vmatpush1.msra.mxu0 0.0
    %1499 = vmatprep.subr.mxu0 0.0
    %1500 = vmatpush1.msra.mxu0 0.0
    %1501 = vmatprep.subr.mxu0 0.0
    %1502 = vmatpush1.msra.mxu0 0.0
    %1503 = vmatprep.subr.mxu0 0.0
    %1504 = vmatpush1.msra.mxu0 0.0
    %1505 = vmatprep.subr.mxu0 0.0
    %1506 = vmatpush1.msra.mxu0 0.0
    %1507 = vmatprep.subr.mxu0 0.0
    %1508 = vmatpush1.msra.mxu0 0.0
    %1509 = vmatprep.subr.mxu0 0.0
    %1510 = vmatpush1.msra.mxu0 0.0
    %1511 = vmatprep.subr.mxu0 0.0
    %1512 = vmatpush1.msra.mxu0 0.0
    %1513 = vmatprep.subr.mxu0 0.0
    %1514 = vmatpush1.msra.mxu0 0.0
    %1515 = vmatprep.subr.mxu0 0.0
    %1516 = vmatpush1.msra.mxu0 0.0
    %1517 = vmatprep.subr.mxu0 0.0
    %1518 = vmatpush1.msra.mxu0 0.0
    %1519 = vmatprep.subr.mxu0 0.0
    %1520 = vmatpush1.msra.mxu0 0.0
    %1521 = vmatprep.subr.mxu0 0.0
    %1522 = vmatpush1.msra.mxu0 0.0
    %1523 = vmatprep.subr.mxu0 0.0
    %1524 = vmatpush1.msra.mxu0 0.0
    %1525 = vmatprep.subr.mxu0 0.0
    %1526 = vmatpush1.msra.mxu0 0.0
    %1527 = vmatprep.subr.mxu0 0.0
    %1528 = vmatpush1.msra.mxu0 0.0
    %1529 = vmatprep.subr.mxu0 0.0
    %1530 = vmatpush1.msra.mxu0 0.0
    %1531 = vmatprep.subr.mxu0 0.0
    %1532 = vmatpush1.msra.mxu0 0.0
    %1533 = vmatprep.subr.mxu0 0.0
    %1534 = vmatpush1.msra.mxu0 0.0
    %1535 = vmatprep.subr.mxu0 0.0
    %1536 = vmatpush1.msra.mxu0 0.0
    %1537 = vmatprep.subr.mxu0 0.0
    %1538 = vmatpush1.msra.mxu0 0.0
    %1539 = vmatprep.subr.mxu0 0.0
    %1540 = vmatpush1.msra.mxu0 0.0
    %1541 = vmatprep.subr.mxu0 0.0
    %1542 = vmatpush1.msra.mxu0 0.0
    %1543 = vmatprep.subr.mxu0 0.0
    %1544 = vmatpush1.msra.mxu0 0.0
    %1545 = vmatprep.mubr.f32.mxu0 0.0
    %1546 = vmatmul.mubr.f32.gmra.mrb[0].mxu0 %v1479
    %v1547 = vpop.f32.mrb[0].mxu0
    %v1548 = vadd.f32 0.0, %v1547
    %v1549 = vpop.f32.mrb[0].mxu0
    %1550 = vdwg.mxu0
    %1551 = vrot.lane.b32.xlu0 %v1038, 64
    %v1552 = vpop.permute.xlu0 %1551
    %v1555 = vsel %vm491, %v1472, 0
    %1557 = vmatprep.subr.mxu0 0.0
    %1558 = vmatpush1.msra.mxu0 %v1552
    %1559 = vmatprep.subr.mxu0 0.0
    %1560 = vmatpush1.msra.mxu0 0.0
    %1561 = vmatprep.subr.mxu0 0.0
    %1562 = vmatpush1.msra.mxu0 0.0
    %1563 = vmatprep.subr.mxu0 0.0
    %1564 = vmatpush1.msra.mxu0 0.0
    %1565 = vmatprep.subr.mxu0 0.0
    %1566 = vmatpush1.msra.mxu0 0.0
    %1567 = vmatprep.subr.mxu0 0.0
    %1568 = vmatpush1.msra.mxu0 0.0
    %1569 = vmatprep.subr.mxu0 0.0
    %1570 = vmatpush1.msra.mxu0 0.0
    %1571 = vmatprep.subr.mxu0 0.0
    %1572 = vmatpush1.msra.mxu0 0.0
    %1573 = vmatprep.subr.mxu0 0.0
    %1574 = vmatpush1.msra.mxu0 0.0
    %1575 = vmatprep.subr.mxu0 0.0
    %1576 = vmatpush1.msra.mxu0 0.0
    %1577 = vmatprep.subr.mxu0 0.0
    %1578 = vmatpush1.msra.mxu0 0.0
    %1579 = vmatprep.subr.mxu0 0.0
    %1580 = vmatpush1.msra.mxu0 0.0
    %1581 = vmatprep.subr.mxu0 0.0
    %1582 = vmatpush1.msra.mxu0 0.0
    %1583 = vmatprep.subr.mxu0 0.0
    %1584 = vmatpush1.msra.mxu0 0.0
    %1585 = vmatprep.subr.mxu0 0.0
    %1586 = vmatpush1.msra.mxu0 0.0
    %1587 = vmatprep.subr.mxu0 0.0
    %1588 = vmatpush1.msra.mxu0 0.0
    %1589 = vmatprep.subr.mxu0 0.0
    %1590 = vmatpush1.msra.mxu0 0.0
    %1591 = vmatprep.subr.mxu0 0.0
    %1592 = vmatpush1.msra.mxu0 0.0
    %1593 = vmatprep.subr.mxu0 0.0
    %1594 = vmatpush1.msra.mxu0 0.0
    %1595 = vmatprep.subr.mxu0 0.0
    %1596 = vmatpush1.msra.mxu0 0.0
    %1597 = vmatprep.subr.mxu0 0.0
    %1598 = vmatpush1.msra.mxu0 0.0
    %1599 = vmatprep.subr.mxu0 0.0
    %1600 = vmatpush1.msra.mxu0 0.0
    %1601 = vmatprep.subr.mxu0 0.0
    %1602 = vmatpush1.msra.mxu0 0.0
    %1603 = vmatprep.subr.mxu0 0.0
    %1604 = vmatpush1.msra.mxu0 0.0
    %1605 = vmatprep.subr.mxu0 0.0
    %1606 = vmatpush1.msra.mxu0 0.0
    %1607 = vmatprep.subr.mxu0 0.0
    %1608 = vmatpush1.msra.mxu0 0.0
    %1609 = vmatprep.subr.mxu0 0.0
    %1610 = vmatpush1.msra.mxu0 0.0
    %1611 = vmatprep.subr.mxu0 0.0
    %1612 = vmatpush1.msra.mxu0 0.0
    %1613 = vmatprep.subr.mxu0 0.0
    %1614 = vmatpush1.msra.mxu0 0.0
    %1615 = vmatprep.subr.mxu0 0.0
    %1616 = vmatpush1.msra.mxu0 0.0
    %1617 = vmatprep.subr.mxu0 0.0
    %1618 = vmatpush1.msra.mxu0 0.0
    %1619 = vmatprep.subr.mxu0 0.0
    %1620 = vmatpush1.msra.mxu0 0.0
    %1621 = vmatprep.mubr.f32.mxu0 0.0
    %1622 = vmatmul.mubr.f32.gmra.mrb[0].mxu0 %v1555
    %v1623 = vpop.f32.mrb[0].mxu0
    %v1624 = vadd.f32 0.0, %v1623
    %v1625 = vpop.f32.mrb[0].mxu0
    %1626 = vdwg.mxu0
    %1627 = vrot.lane.b32.xlu0 %v1044, 64
    %v1628 = vpop.permute.xlu0 %1627
    %v1631 = vsel %vm491, %v1473, 0
    %1633 = vmatprep.subr.mxu0 0.0
    %1634 = vmatpush1.msra.mxu0 %v1628
    %1635 = vmatprep.subr.mxu0 0.0
    %1636 = vmatpush1.msra.mxu0 0.0
    %1637 = vmatprep.subr.mxu0 0.0
    %1638 = vmatpush1.msra.mxu0 0.0
    %1639 = vmatprep.subr.mxu0 0.0
    %1640 = vmatpush1.msra.mxu0 0.0
    %1641 = vmatprep.subr.mxu0 0.0
    %1642 = vmatpush1.msra.mxu0 0.0
    %1643 = vmatprep.subr.mxu0 0.0
    %1644 = vmatpush1.msra.mxu0 0.0
    %1645 = vmatprep.subr.mxu0 0.0
    %1646 = vmatpush1.msra.mxu0 0.0
    %1647 = vmatprep.subr.mxu0 0.0
    %1648 = vmatpush1.msra.mxu0 0.0
    %1649 = vmatprep.subr.mxu0 0.0
    %1650 = vmatpush1.msra.mxu0 0.0
    %1651 = vmatprep.subr.mxu0 0.0
    %1652 = vmatpush1.msra.mxu0 0.0
    %1653 = vmatprep.subr.mxu0 0.0
    %1654 = vmatpush1.msra.mxu0 0.0
    %1655 = vmatprep.subr.mxu0 0.0
    %1656 = vmatpush1.msra.mxu0 0.0
    %1657 = vmatprep.subr.mxu0 0.0
    %1658 = vmatpush1.msra.mxu0 0.0
    %1659 = vmatprep.subr.mxu0 0.0
    %1660 = vmatpush1.msra.mxu0 0.0
    %1661 = vmatprep.subr.mxu0 0.0
    %1662 = vmatpush1.msra.mxu0 0.0
    %1663 = vmatprep.subr.mxu0 0.0
    %1664 = vmatpush1.msra.mxu0 0.0
    %1665 = vmatprep.subr.mxu0 0.0
    %1666 = vmatpush1.msra.mxu0 0.0
    %1667 = vmatprep.subr.mxu0 0.0
    %1668 = vmatpush1.msra.mxu0 0.0
    %1669 = vmatprep.subr.mxu0 0.0
    %1670 = vmatpush1.msra.mxu0 0.0
    %1671 = vmatprep.subr.mxu0 0.0
    %1672 = vmatpush1.msra.mxu0 0.0
    %1673 = vmatprep.subr.mxu0 0.0
    %1674 = vmatpush1.msra.mxu0 0.0
    %1675 = vmatprep.subr.mxu0 0.0
    %1676 = vmatpush1.msra.mxu0 0.0
    %1677 = vmatprep.subr.mxu0 0.0
    %1678 = vmatpush1.msra.mxu0 0.0
    %1679 = vmatprep.subr.mxu0 0.0
    %1680 = vmatpush1.msra.mxu0 0.0
    %1681 = vmatprep.subr.mxu0 0.0
    %1682 = vmatpush1.msra.mxu0 0.0
    %1683 = vmatprep.subr.mxu0 0.0
    %1684 = vmatpush1.msra.mxu0 0.0
    %1685 = vmatprep.subr.mxu0 0.0
    %1686 = vmatpush1.msra.mxu0 0.0
    %1687 = vmatprep.subr.mxu0 0.0
    %1688 = vmatpush1.msra.mxu0 0.0
    %1689 = vmatprep.subr.mxu0 0.0
    %1690 = vmatpush1.msra.mxu0 0.0
    %1691 = vmatprep.subr.mxu0 0.0
    %1692 = vmatpush1.msra.mxu0 0.0
    %1693 = vmatprep.subr.mxu0 0.0
    %1694 = vmatpush1.msra.mxu0 0.0
    %1695 = vmatprep.subr.mxu0 0.0
    %1696 = vmatpush1.msra.mxu0 0.0
    %1697 = vmatprep.mubr.f32.mxu0 0.0
    %1698 = vmatmul.mubr.f32.gmra.mrb[0].mxu0 %v1631
    %v1699 = vpop.f32.mrb[0].mxu0
    %v1700 = vadd.f32 0.0, %v1699
    %v1701 = vpop.f32.mrb[0].mxu0
    %1702 = vdwg.mxu0
    %1703 = vrot.lane.b32.xlu0 %v1046, 64
    %v1704 = vpop.permute.xlu0 %1703
    %v1707 = vsel %vm491, %v1474, 0
    %1709 = vmatprep.subr.mxu0 0.0
    %1710 = vmatpush1.msra.mxu0 %v1704
    %1711 = vmatprep.subr.mxu0 0.0
    %1712 = vmatpush1.msra.mxu0 0.0
    %1713 = vmatprep.subr.mxu0 0.0
    %1714 = vmatpush1.msra.mxu0 0.0
    %1715 = vmatprep.subr.mxu0 0.0
    %1716 = vmatpush1.msra.mxu0 0.0
    %1717 = vmatprep.subr.mxu0 0.0
    %1718 = vmatpush1.msra.mxu0 0.0
    %1719 = vmatprep.subr.mxu0 0.0
    %1720 = vmatpush1.msra.mxu0 0.0
    %1721 = vmatprep.subr.mxu0 0.0
    %1722 = vmatpush1.msra.mxu0 0.0
    %1723 = vmatprep.subr.mxu0 0.0
    %1724 = vmatpush1.msra.mxu0 0.0
    %1725 = vmatprep.subr.mxu0 0.0
    %1726 = vmatpush1.msra.mxu0 0.0
    %1727 = vmatprep.subr.mxu0 0.0
    %1728 = vmatpush1.msra.mxu0 0.0
    %1729 = vmatprep.subr.mxu0 0.0
    %1730 = vmatpush1.msra.mxu0 0.0
    %1731 = vmatprep.subr.mxu0 0.0
    %1732 = vmatpush1.msra.mxu0 0.0
    %1733 = vmatprep.subr.mxu0 0.0
    %1734 = vmatpush1.msra.mxu0 0.0
    %1735 = vmatprep.subr.mxu0 0.0
    %1736 = vmatpush1.msra.mxu0 0.0
    %1737 = vmatprep.subr.mxu0 0.0
    %1738 = vmatpush1.msra.mxu0 0.0
    %1739 = vmatprep.subr.mxu0 0.0
    %1740 = vmatpush1.msra.mxu0 0.0
    %1741 = vmatprep.subr.mxu0 0.0
    %1742 = vmatpush1.msra.mxu0 0.0
    %1743 = vmatprep.subr.mxu0 0.0
    %1744 = vmatpush1.msra.mxu0 0.0
    %1745 = vmatprep.subr.mxu0 0.0
    %1746 = vmatpush1.msra.mxu0 0.0
    %1747 = vmatprep.subr.mxu0 0.0
    %1748 = vmatpush1.msra.mxu0 0.0
    %1749 = vmatprep.subr.mxu0 0.0
    %1750 = vmatpush1.msra.mxu0 0.0
    %1751 = vmatprep.subr.mxu0 0.0
    %1752 = vmatpush1.msra.mxu0 0.0
    %1753 = vmatprep.subr.mxu0 0.0
    %1754 = vmatpush1.msra.mxu0 0.0
    %1755 = vmatprep.subr.mxu0 0.0
    %1756 = vmatpush1.msra.mxu0 0.0
    %1757 = vmatprep.subr.mxu0 0.0
    %1758 = vmatpush1.msra.mxu0 0.0
    %1759 = vmatprep.subr.mxu0 0.0
    %1760 = vmatpush1.msra.mxu0 0.0
    %1761 = vmatprep.subr.mxu0 0.0
    %1762 = vmatpush1.msra.mxu0 0.0
    %1763 = vmatprep.subr.mxu0 0.0
    %1764 = vmatpush1.msra.mxu0 0.0
    %1765 = vmatprep.subr.mxu0 0.0
    %1766 = vmatpush1.msra.mxu0 0.0
    %1767 = vmatprep.subr.mxu0 0.0
    %1768 = vmatpush1.msra.mxu0 0.0
    %1769 = vmatprep.subr.mxu0 0.0
    %1770 = vmatpush1.msra.mxu0 0.0
    %1771 = vmatprep.subr.mxu0 0.0
    %1772 = vmatpush1.msra.mxu0 0.0
    %1773 = vmatprep.mubr.f32.mxu0 0.0
    %1774 = vmatmul.mubr.f32.gmra.mrb[0].mxu0 %v1707
    %v1775 = vpop.f32.mrb[0].mxu0
    %v1776 = vadd.f32 0.0, %v1775
    %v1777 = vpop.f32.mrb[0].mxu0
    %1778 = vdwg.mxu0
    %1781 = vrot.lane.b32.xlu0 %v1700, 32
    %v1782 = vpop.permute.xlu0 %1781
    %1783 = vrot.lane.b32.xlu0 %v1776, 32
    %v1784 = vpop.permute.xlu0 %1783
    %v1787 = vsel %vm188, %v1548, %v1782
    %v1788 = vsel %vm188, %v1624, %v1784
    %v1789 = vpack.c.bf16 %v1788, %v1787
    %v1790 = vld [vmem:[%s10] sm:$0xf]
    %v1791 = vld [vmem:[%s10 + $0x4] sm:$0xf]
    %v1792 = vld [vmem:[%s10 + $0x8] sm:$0xf]
    %v1793 = vld [vmem:[%s10 + $0xc] sm:$0xf]
    %v1794 = vld [vmem:[%s10 + $0x10] sm:$0xf]
    %v1795 = vld [vmem:[%s10 + $0x14] sm:$0xf]
    %v1796 = vld [vmem:[%s10 + $0x18] sm:$0xf]
    %v1797 = vld [vmem:[%s10 + $0x1c] sm:$0xf]
    %v1798 = vld [vmem:[%s11] sm:$0x1]
    %v1799 = vlaneseq
    %v1800 = vshrl.u32 %v1799, 7
    %v1801 = vsub.s32 0, %v1800
    %v1802 = vrot.slane %v1798, %v1801
    %v1811 = vunpack.c.l.b16 %v1790
    %v1812 = vunpack.c.l.b16 %v1791
    %v1813 = vunpack.c.l.b16 %v1792
    %v1814 = vunpack.c.l.b16 %v1793
    %v1815 = vunpack.c.l.b16 %v1794
    %v1816 = vunpack.c.l.b16 %v1795
    %v1817 = vunpack.c.l.b16 %v1796
    %v1818 = vunpack.c.l.b16 %v1797
    %v1819 = vpack.c.b16 %v1812, %v1811
    %v1820 = vpack.c.b16 %v1814, %v1813
    %v1821 = vpack.c.b16 %v1816, %v1815
    %v1822 = vpack.c.b16 %v1818, %v1817
    %v1828 = vsel %vm125, %v1789, 0
    %1830 = vmatprep.subr.bf16.mxu0 0
    %1831 = vmatpush1.bf16.msra.mxu0 %v1819
    %1832 = vmatprep.subr.bf16.mxu0 0
    %1833 = vmatpush1.bf16.msra.mxu0 %v1820
    %1834 = vmatprep.subr.bf16.mxu0 0
    %1835 = vmatpush1.bf16.msra.mxu0 %v1821
    %1836 = vmatprep.subr.bf16.mxu0 0
    %1837 = vmatpush1.bf16.msra.mxu0 %v1822
    %1838 = vmatprep.subr.bf16.mxu0 0
    %1839 = vmatpush1.bf16.msra.mxu0 0
    %1840 = vmatprep.subr.bf16.mxu0 0
    %1841 = vmatpush1.bf16.msra.mxu0 0
    %1842 = vmatprep.subr.bf16.mxu0 0
    %1843 = vmatpush1.bf16.msra.mxu0 0
    %1844 = vmatprep.subr.bf16.mxu0 0
    %1845 = vmatpush1.bf16.msra.mxu0 0
    %1846 = vmatprep.subr.bf16.mxu0 0
    %1847 = vmatpush1.bf16.msra.mxu0 0
    %1848 = vmatprep.subr.bf16.mxu0 0
    %1849 = vmatpush1.bf16.msra.mxu0 0
    %1850 = vmatprep.subr.bf16.mxu0 0
    %1851 = vmatpush1.bf16.msra.mxu0 0
    %1852 = vmatprep.subr.bf16.mxu0 0
    %1853 = vmatpush1.bf16.msra.mxu0 0
    %1854 = vmatprep.subr.bf16.mxu0 0
    %1855 = vmatpush1.bf16.msra.mxu0 0
    %1856 = vmatprep.subr.bf16.mxu0 0
    %1857 = vmatpush1.bf16.msra.mxu0 0
    %1858 = vmatprep.subr.bf16.mxu0 0
    %1859 = vmatpush1.bf16.msra.mxu0 0
    %1860 = vmatprep.subr.bf16.mxu0 0
    %1861 = vmatpush1.bf16.msra.mxu0 0
    %1862 = vmatprep.mubr.bf16.mxu0 0
    %1863 = vmatmul.mubr.bf16.gmra.mrb[0].mxu0 %v1828
    %v1864 = vpop.f32.mrb[0].mxu0
    %v1865 = vadd.f32 %v1802, %v1864
    %v1866 = vpop.f32.mrb[0].mxu0
    %v1867 = vpop.f32.mrb[0].mxu0
    %v1868 = vadd.f32 %v1802, %v1867
    %v1869 = vpop.f32.mrb[0].mxu0
    %1870 = vdwg.mxu0
    %v1871 = vadd.f32 %v961, %v1865
    %v1872 = vadd.f32 %v962, %v1868
    %v1873 = vld [vmem:[%s16 + $0x1] sm:$0x1]
    %v1874 = vld [vmem:[%s17 + $0x1] sm:$0x1]
    %v1875 = vsel %vm125, %v1871, 0.0
    %1876 = vadd.xlane.f32.xlu0 %v1875
    %v1877 = vpop.xlane.xlu0 %1876
    %v1878 = vsel %vm125, %v1872, 0.0
    %1879 = vadd.xlane.f32.xlu0 %v1878
    %v1880 = vpop.xlane.xlu0 %1879
    %v1881 = vmul.f32 %v1877, %v930
    %v1882 = vmul.f32 %v1880, %v930
    %v1883 = vsub.f32 %v1871, %v1881
    %v1884 = vsub.f32 %v1872, %v1882
    %v1885 = vmul.f32 %v1883, %v1883
    %v1886 = vmul.f32 %v1884, %v1884
    %v1887 = vsel %vm125, %v1885, 0.0
    %1888 = vadd.xlane.f32.xlu0 %v1887
    %v1889 = vpop.xlane.xlu0 %1888
    %v1890 = vsel %vm125, %v1886, 0.0
    %1891 = vadd.xlane.f32.xlu0 %v1890
    %v1892 = vpop.xlane.xlu0 %1891
    %v1893 = vmul.f32 %v1889, %v930
    %v1894 = vmul.f32 %v1892, %v930
    %v1895 = vadd.f32 %v1893, 1e-05
    %v1896 = vadd.f32 %v1894, 1e-05
    %v1897 = vrsqrt.pop %v1895
    %v1898 = vrsqrt.pop %v1896
    %v1899 = vmul.f32 %v1883, %v1897
    %v1900 = vmul.f32 %v1884, %v1898
    %v1901 = vlaneseq
    %v1902 = vshrl.u32 %v1901, 7
    %v1903 = vsub.s32 0, %v1902
    %v1904 = vrot.slane %v1873, %v1903
    %v1905 = vmul.f32 %v1899, %v1904
    %v1906 = vmul.f32 %v1900, %v1904
    %v1907 = vlaneseq
    %v1908 = vshrl.u32 %v1907, 7
    %v1909 = vsub.s32 0, %v1908
    %v1910 = vrot.slane %v1874, %v1909
    %v1911 = vadd.f32 %v1905, %v1910
    %v1912 = vadd.f32 %v1906, %v1910
    %v1913 = vpack.c.bf16 %v1912, %v1911
    %v1914 = vld [vmem:[%s12] sm:$0xff]
    %v1915 = vld [vmem:[%s12 + $0x8] sm:$0xff]
    %v1916 = vld [vmem:[%s12 + $0x10] sm:$0xff]
    %v1917 = vld [vmem:[%s12 + $0x18] sm:$0xff]
    %v1918 = vld [vmem:[%s12 + $0x20] sm:$0xff]
    %v1919 = vld [vmem:[%s12 + $0x28] sm:$0xff]
    %v1920 = vld [vmem:[%s12 + $0x30] sm:$0xff]
    %v1921 = vld [vmem:[%s12 + $0x38] sm:$0xff]
    %v1922 = vld [vmem:[%s12 + $0x40] sm:$0xff]
    %v1923 = vld [vmem:[%s12 + $0x48] sm:$0xff]
    %v1924 = vld [vmem:[%s12 + $0x50] sm:$0xff]
    %v1925 = vld [vmem:[%s12 + $0x58] sm:$0xff]
    %v1926 = vld [vmem:[%s12 + $0x60] sm:$0xff]
    %v1927 = vld [vmem:[%s12 + $0x68] sm:$0xff]
    %v1928 = vld [vmem:[%s12 + $0x70] sm:$0xff]
    %v1929 = vld [vmem:[%s12 + $0x78] sm:$0xff]
    %v1930 = vld [vmem:[%s13] ss:$2 sm:$0xf]
    %v1932 = vlaneseq
    %v1933 = vshrl.u32 %v1932, 7
    %v1934 = vsub.s32 0, %v1933
    %v1935 = vrot.slane %v1930, %v1934
    %v1936 = vlaneseq
    %v1937 = vshrl.u32 %v1936, 7
    %v1938 = vsub.s32 1, %v1937
    %v1939 = vrot.slane %v1930, %v1938
    %v1940 = vlaneseq
    %v1941 = vshrl.u32 %v1940, 7
    %v1942 = vsub.s32 2, %v1941
    %v1943 = vrot.slane %v1930, %v1942
    %v1944 = vlaneseq
    %v1945 = vshrl.u32 %v1944, 7
    %v1946 = vsub.s32 3, %v1945
    %v1947 = vrot.slane %v1930, %v1946
    %v1968 = vunpack.c.l.b16 %v1914
    %v1969 = vunpack.c.h.b16 %v1914
    %v1970 = vunpack.c.l.b16 %v1915
    %v1971 = vunpack.c.h.b16 %v1915
    %v1972 = vunpack.c.l.b16 %v1916
    %v1973 = vunpack.c.h.b16 %v1916
    %v1974 = vunpack.c.l.b16 %v1917
    %v1975 = vunpack.c.h.b16 %v1917
    %v1976 = vunpack.c.l.b16 %v1918
    %v1977 = vunpack.c.h.b16 %v1918
    %v1978 = vunpack.c.l.b16 %v1919
    %v1979 = vunpack.c.h.b16 %v1919
    %v1980 = vunpack.c.l.b16 %v1920
    %v1981 = vunpack.c.h.b16 %v1920
    %v1982 = vunpack.c.l.b16 %v1921
    %v1983 = vunpack.c.h.b16 %v1921
    %v1984 = vunpack.c.l.b16 %v1922
    %v1985 = vunpack.c.h.b16 %v1922
    %v1986 = vunpack.c.l.b16 %v1923
    %v1987 = vunpack.c.h.b16 %v1923
    %v1988 = vunpack.c.l.b16 %v1924
    %v1989 = vunpack.c.h.b16 %v1924
    %v1990 = vunpack.c.l.b16 %v1925
    %v1991 = vunpack.c.h.b16 %v1925
    %v1992 = vunpack.c.l.b16 %v1926
    %v1993 = vunpack.c.h.b16 %v1926
    %v1994 = vunpack.c.l.b16 %v1927
    %v1995 = vunpack.c.h.b16 %v1927
    %v1996 = vunpack.c.l.b16 %v1928
    %v1997 = vunpack.c.h.b16 %v1928
    %v1998 = vunpack.c.l.b16 %v1929
    %v1999 = vunpack.c.h.b16 %v1929
    %v2000 = vpack.c.b16 %v1972, %v1968
    %v2001 = vpack.c.b16 %v1973, %v1969
    %v2002 = vpack.c.b16 %v1974, %v1970
    %v2003 = vpack.c.b16 %v1975, %v1971
    %v2004 = vpack.c.b16 %v1980, %v1976
    %v2005 = vpack.c.b16 %v1981, %v1977
    %v2006 = vpack.c.b16 %v1982, %v1978
    %v2007 = vpack.c.b16 %v1983, %v1979
    %v2008 = vpack.c.b16 %v1988, %v1984
    %v2009 = vpack.c.b16 %v1989, %v1985
    %v2010 = vpack.c.b16 %v1990, %v1986
    %v2011 = vpack.c.b16 %v1991, %v1987
    %v2012 = vpack.c.b16 %v1996, %v1992
    %v2013 = vpack.c.b16 %v1997, %v1993
    %v2014 = vpack.c.b16 %v1998, %v1994
    %v2015 = vpack.c.b16 %v1999, %v1995
    %v2033 = vsel %vm125, %v1913, 0
    %2035 = vmatprep.subr.bf16.mxu0 %v2001
    %2036 = vmatpush1.bf16.msra.mxu0 %v2000
    %2037 = vmatprep.subr.bf16.mxu0 %v2005
    %2038 = vmatpush1.bf16.msra.mxu0 %v2004
    %2039 = vmatprep.subr.bf16.mxu0 %v2009
    %2040 = vmatpush1.bf16.msra.mxu0 %v2008
    %2041 = vmatprep.subr.bf16.mxu0 %v2013
    %2042 = vmatpush1.bf16.msra.mxu0 %v2012
    %2043 = vmatprep.subr.bf16.mxu0 0
    %2044 = vmatpush1.bf16.msra.mxu0 0
    %2045 = vmatprep.subr.bf16.mxu0 0
    %2046 = vmatpush1.bf16.msra.mxu0 0
    %2047 = vmatprep.subr.bf16.mxu0 0
    %2048 = vmatpush1.bf16.msra.mxu0 0
    %2049 = vmatprep.subr.bf16.mxu0 0
    %2050 = vmatpush1.bf16.msra.mxu0 0
    %2051 = vmatprep.subr.bf16.mxu0 0
    %2052 = vmatpush1.bf16.msra.mxu0 0
    %2053 = vmatprep.subr.bf16.mxu0 0
    %2054 = vmatpush1.bf16.msra.mxu0 0
    %2055 = vmatprep.subr.bf16.mxu0 0
    %2056 = vmatpush1.bf16.msra.mxu0 0
    %2057 = vmatprep.subr.bf16.mxu0 0
    %2058 = vmatpush1.bf16.msra.mxu0 0
    %2059 = vmatprep.subr.bf16.mxu0 0
    %2060 = vmatpush1.bf16.msra.mxu0 0
    %2061 = vmatprep.subr.bf16.mxu0 0
    %2062 = vmatpush1.bf16.msra.mxu0 0
    %2063 = vmatprep.subr.bf16.mxu0 0
    %2064 = vmatpush1.bf16.msra.mxu0 0
    %2065 = vmatprep.subr.bf16.mxu0 0
    %2066 = vmatpush1.bf16.msra.mxu0 0
    %2067 = vmatprep.mubr.bf16.mxu0 0
    %2068 = vmatmul.mubr.bf16.gmra.mrb[0].mxu0 %v2033
    %v2069 = vpop.f32.mrb[0].mxu0
    %v2070 = vadd.f32 %v1935, %v2069
    %v2071 = vpop.f32.mrb[0].mxu0
    %v2072 = vadd.f32 %v1939, %v2071
    %v2073 = vpop.f32.mrb[0].mxu0
    %v2074 = vadd.f32 %v1935, %v2073
    %v2075 = vpop.f32.mrb[0].mxu0
    %v2076 = vadd.f32 %v1939, %v2075
    %2077 = vdwg.mxu0
    %2078 = vmatprep.subr.bf16.mxu0 %v2003
    %2079 = vmatpush1.bf16.msra.mxu0 %v2002
    %2080 = vmatprep.subr.bf16.mxu0 %v2007
    %2081 = vmatpush1.bf16.msra.mxu0 %v2006
    %2082 = vmatprep.subr.bf16.mxu0 %v2011
    %2083 = vmatpush1.bf16.msra.mxu0 %v2010
    %2084 = vmatprep.subr.bf16.mxu0 %v2015
    %2085 = vmatpush1.bf16.msra.mxu0 %v2014
    %2086 = vmatprep.subr.bf16.mxu0 0
    %2087 = vmatpush1.bf16.msra.mxu0 0
    %2088 = vmatprep.subr.bf16.mxu0 0
    %2089 = vmatpush1.bf16.msra.mxu0 0
    %2090 = vmatprep.subr.bf16.mxu0 0
    %2091 = vmatpush1.bf16.msra.mxu0 0
    %2092 = vmatprep.subr.bf16.mxu0 0
    %2093 = vmatpush1.bf16.msra.mxu0 0
    %2094 = vmatprep.subr.bf16.mxu0 0
    %2095 = vmatpush1.bf16.msra.mxu0 0
    %2096 = vmatprep.subr.bf16.mxu0 0
    %2097 = vmatpush1.bf16.msra.mxu0 0
    %2098 = vmatprep.subr.bf16.mxu0 0
    %2099 = vmatpush1.bf16.msra.mxu0 0
    %2100 = vmatprep.subr.bf16.mxu0 0
    %2101 = vmatpush1.bf16.msra.mxu0 0
    %2102 = vmatprep.subr.bf16.mxu0 0
    %2103 = vmatpush1.bf16.msra.mxu0 0
    %2104 = vmatprep.subr.bf16.mxu0 0
    %2105 = vmatpush1.bf16.msra.mxu0 0
    %2106 = vmatprep.subr.bf16.mxu0 0
    %2107 = vmatpush1.bf16.msra.mxu0 0
    %2108 = vmatprep.subr.bf16.mxu0 0
    %2109 = vmatpush1.bf16.msra.mxu0 0
    %2110 = vmatprep.mubr.bf16.mxu0 0
    %2111 = vmatmul.mubr.bf16.gmra.mrb[0].mxu0 %v2033
    %v2112 = vpop.f32.mrb[0].mxu0
    %v2113 = vadd.f32 %v1943, %v2112
    %v2114 = vpop.f32.mrb[0].mxu0
    %v2115 = vadd.f32 %v1947, %v2114
    %v2116 = vpop.f32.mrb[0].mxu0
    %v2117 = vadd.f32 %v1943, %v2116
    %v2118 = vpop.f32.mrb[0].mxu0
    %v2119 = vadd.f32 %v1947, %v2118
    %2120 = vdwg.mxu0
    %v2121 = vmax.f32 %v2070, 0.0
    %v2122 = vmax.f32 %v2072, 0.0
    %v2123 = vmax.f32 %v2113, 0.0
    %v2124 = vmax.f32 %v2115, 0.0
    %v2125 = vmax.f32 %v2074, 0.0
    %v2126 = vmax.f32 %v2076, 0.0
    %v2127 = vmax.f32 %v2117, 0.0
    %v2128 = vmax.f32 %v2119, 0.0
    %v2129 = vpack.c.bf16 %v2125, %v2121
    %v2130 = vpack.c.bf16 %v2126, %v2122
    %v2131 = vpack.c.bf16 %v2127, %v2123
    %v2132 = vpack.c.bf16 %v2128, %v2124
    %v2133 = vld [vmem:[%s14] sm:$0xf]
    %v2134 = vld [vmem:[%s14 + $0x4] sm:$0xf]
    %v2135 = vld [vmem:[%s14 + $0x8] sm:$0xf]
    %v2136 = vld [vmem:[%s14 + $0xc] sm:$0xf]
    %v2137 = vld [vmem:[%s14 + $0x10] sm:$0xf]
    %v2138 = vld [vmem:[%s14 + $0x14] sm:$0xf]
    %v2139 = vld [vmem:[%s14 + $0x18] sm:$0xf]
    %v2140 = vld [vmem:[%s14 + $0x1c] sm:$0xf]
    %v2141 = vld [vmem:[%s14 + $0x20] sm:$0xf]
    %v2142 = vld [vmem:[%s14 + $0x24] sm:$0xf]
    %v2143 = vld [vmem:[%s14 + $0x28] sm:$0xf]
    %v2144 = vld [vmem:[%s14 + $0x2c] sm:$0xf]
    %v2145 = vld [vmem:[%s14 + $0x30] sm:$0xf]
    %v2146 = vld [vmem:[%s14 + $0x34] sm:$0xf]
    %v2147 = vld [vmem:[%s14 + $0x38] sm:$0xf]
    %v2148 = vld [vmem:[%s14 + $0x3c] sm:$0xf]
    %v2149 = vld [vmem:[%s14 + $0x40] sm:$0xf]
    %v2150 = vld [vmem:[%s14 + $0x44] sm:$0xf]
    %v2151 = vld [vmem:[%s14 + $0x48] sm:$0xf]
    %v2152 = vld [vmem:[%s14 + $0x4c] sm:$0xf]
    %v2153 = vld [vmem:[%s14 + $0x50] sm:$0xf]
    %v2154 = vld [vmem:[%s14 + $0x54] sm:$0xf]
    %v2155 = vld [vmem:[%s14 + $0x58] sm:$0xf]
    %v2156 = vld [vmem:[%s14 + $0x5c] sm:$0xf]
    %v2157 = vld [vmem:[%s14 + $0x60] sm:$0xf]
    %v2158 = vld [vmem:[%s14 + $0x64] sm:$0xf]
    %v2159 = vld [vmem:[%s14 + $0x68] sm:$0xf]
    %v2160 = vld [vmem:[%s14 + $0x6c] sm:$0xf]
    %v2161 = vld [vmem:[%s14 + $0x70] sm:$0xf]
    %v2162 = vld [vmem:[%s14 + $0x74] sm:$0xf]
    %v2163 = vld [vmem:[%s14 + $0x78] sm:$0xf]
    %v2164 = vld [vmem:[%s14 + $0x7c] sm:$0xf]
    %v2165 = vld [vmem:[%s14 + $0x80] sm:$0xf]
    %v2166 = vld [vmem:[%s14 + $0x84] sm:$0xf]
    %v2167 = vld [vmem:[%s14 + $0x88] sm:$0xf]
    %v2168 = vld [vmem:[%s14 + $0x8c] sm:$0xf]
    %v2169 = vld [vmem:[%s14 + $0x90] sm:$0xf]
    %v2170 = vld [vmem:[%s14 + $0x94] sm:$0xf]
    %v2171 = vld [vmem:[%s14 + $0x98] sm:$0xf]
    %v2172 = vld [vmem:[%s14 + $0x9c] sm:$0xf]
    %v2173 = vld [vmem:[%s14 + $0xa0] sm:$0xf]
    %v2174 = vld [vmem:[%s14 + $0xa4] sm:$0xf]
    %v2175 = vld [vmem:[%s14 + $0xa8] sm:$0xf]
    %v2176 = vld [vmem:[%s14 + $0xac] sm:$0xf]
    %v2177 = vld [vmem:[%s14 + $0xb0] sm:$0xf]
    %v2178 = vld [vmem:[%s14 + $0xb4] sm:$0xf]
    %v2179 = vld [vmem:[%s14 + $0xb8] sm:$0xf]
    %v2180 = vld [vmem:[%s14 + $0xbc] sm:$0xf]
    %v2181 = vld [vmem:[%s14 + $0xc0] sm:$0xf]
    %v2182 = vld [vmem:[%s14 + $0xc4] sm:$0xf]
    %v2183 = vld [vmem:[%s14 + $0xc8] sm:$0xf]
    %v2184 = vld [vmem:[%s14 + $0xcc] sm:$0xf]
    %v2185 = vld [vmem:[%s14 + $0xd0] sm:$0xf]
    %v2186 = vld [vmem:[%s14 + $0xd4] sm:$0xf]
    %v2187 = vld [vmem:[%s14 + $0xd8] sm:$0xf]
    %v2188 = vld [vmem:[%s14 + $0xdc] sm:$0xf]
    %v2189 = vld [vmem:[%s14 + $0xe0] sm:$0xf]
    %v2190 = vld [vmem:[%s14 + $0xe4] sm:$0xf]
    %v2191 = vld [vmem:[%s14 + $0xe8] sm:$0xf]
    %v2192 = vld [vmem:[%s14 + $0xec] sm:$0xf]
    %v2193 = vld [vmem:[%s14 + $0xf0] sm:$0xf]
    %v2194 = vld [vmem:[%s14 + $0xf4] sm:$0xf]
    %v2195 = vld [vmem:[%s14 + $0xf8] sm:$0xf]
    %v2196 = vld [vmem:[%s14 + $0xfc] sm:$0xf]
    %v2197 = vld [vmem:[%s15] sm:$0x1]
    %v2198 = vlaneseq
    %v2199 = vshrl.u32 %v2198, 7
    %v2200 = vsub.s32 0, %v2199
    %v2201 = vrot.slane %v2197, %v2200
    %v2266 = vunpack.c.l.b16 %v2133
    %v2267 = vunpack.c.l.b16 %v2134
    %v2268 = vunpack.c.l.b16 %v2135
    %v2269 = vunpack.c.l.b16 %v2136
    %v2270 = vunpack.c.l.b16 %v2137
    %v2271 = vunpack.c.l.b16 %v2138
    %v2272 = vunpack.c.l.b16 %v2139
    %v2273 = vunpack.c.l.b16 %v2140
    %v2274 = vunpack.c.l.b16 %v2141
    %v2275 = vunpack.c.l.b16 %v2142
    %v2276 = vunpack.c.l.b16 %v2143
    %v2277 = vunpack.c.l.b16 %v2144
    %v2278 = vunpack.c.l.b16 %v2145
    %v2279 = vunpack.c.l.b16 %v2146
    %v2280 = vunpack.c.l.b16 %v2147
    %v2281 = vunpack.c.l.b16 %v2148
    %v2282 = vunpack.c.l.b16 %v2149
    %v2283 = vunpack.c.l.b16 %v2150
    %v2284 = vunpack.c.l.b16 %v2151
    %v2285 = vunpack.c.l.b16 %v2152
    %v2286 = vunpack.c.l.b16 %v2153
    %v2287 = vunpack.c.l.b16 %v2154
    %v2288 = vunpack.c.l.b16 %v2155
    %v2289 = vunpack.c.l.b16 %v2156
    %v2290 = vunpack.c.l.b16 %v2157
    %v2291 = vunpack.c.l.b16 %v2158
    %v2292 = vunpack.c.l.b16 %v2159
    %v2293 = vunpack.c.l.b16 %v2160
    %v2294 = vunpack.c.l.b16 %v2161
    %v2295 = vunpack.c.l.b16 %v2162
    %v2296 = vunpack.c.l.b16 %v2163
    %v2297 = vunpack.c.l.b16 %v2164
    %v2298 = vunpack.c.l.b16 %v2165
    %v2299 = vunpack.c.l.b16 %v2166
    %v2300 = vunpack.c.l.b16 %v2167
    %v2301 = vunpack.c.l.b16 %v2168
    %v2302 = vunpack.c.l.b16 %v2169
    %v2303 = vunpack.c.l.b16 %v2170
    %v2304 = vunpack.c.l.b16 %v2171
    %v2305 = vunpack.c.l.b16 %v2172
    %v2306 = vunpack.c.l.b16 %v2173
    %v2307 = vunpack.c.l.b16 %v2174
    %v2308 = vunpack.c.l.b16 %v2175
    %v2309 = vunpack.c.l.b16 %v2176
    %v2310 = vunpack.c.l.b16 %v2177
    %v2311 = vunpack.c.l.b16 %v2178
    %v2312 = vunpack.c.l.b16 %v2179
    %v2313 = vunpack.c.l.b16 %v2180
    %v2314 = vunpack.c.l.b16 %v2181
    %v2315 = vunpack.c.l.b16 %v2182
    %v2316 = vunpack.c.l.b16 %v2183
    %v2317 = vunpack.c.l.b16 %v2184
    %v2318 = vunpack.c.l.b16 %v2185
    %v2319 = vunpack.c.l.b16 %v2186
    %v2320 = vunpack.c.l.b16 %v2187
    %v2321 = vunpack.c.l.b16 %v2188
    %v2322 = vunpack.c.l.b16 %v2189
    %v2323 = vunpack.c.l.b16 %v2190
    %v2324 = vunpack.c.l.b16 %v2191
    %v2325 = vunpack.c.l.b16 %v2192
    %v2326 = vunpack.c.l.b16 %v2193
    %v2327 = vunpack.c.l.b16 %v2194
    %v2328 = vunpack.c.l.b16 %v2195
    %v2329 = vunpack.c.l.b16 %v2196
    %v2330 = vpack.c.b16 %v2267, %v2266
    %v2331 = vpack.c.b16 %v2269, %v2268
    %v2332 = vpack.c.b16 %v2271, %v2270
    %v2333 = vpack.c.b16 %v2273, %v2272
    %v2334 = vpack.c.b16 %v2275, %v2274
    %v2335 = vpack.c.b16 %v2277, %v2276
    %v2336 = vpack.c.b16 %v2279, %v2278
    %v2337 = vpack.c.b16 %v2281, %v2280
    %v2338 = vpack.c.b16 %v2283, %v2282
    %v2339 = vpack.c.b16 %v2285, %v2284
    %v2340 = vpack.c.b16 %v2287, %v2286
    %v2341 = vpack.c.b16 %v2289, %v2288
    %v2342 = vpack.c.b16 %v2291, %v2290
    %v2343 = vpack.c.b16 %v2293, %v2292
    %v2344 = vpack.c.b16 %v2295, %v2294
    %v2345 = vpack.c.b16 %v2297, %v2296
    %v2346 = vpack.c.b16 %v2299, %v2298
    %v2347 = vpack.c.b16 %v2301, %v2300
    %v2348 = vpack.c.b16 %v2303, %v2302
    %v2349 = vpack.c.b16 %v2305, %v2304
    %v2350 = vpack.c.b16 %v2307, %v2306
    %v2351 = vpack.c.b16 %v2309, %v2308
    %v2352 = vpack.c.b16 %v2311, %v2310
    %v2353 = vpack.c.b16 %v2313, %v2312
    %v2354 = vpack.c.b16 %v2315, %v2314
    %v2355 = vpack.c.b16 %v2317, %v2316
    %v2356 = vpack.c.b16 %v2319, %v2318
    %v2357 = vpack.c.b16 %v2321, %v2320
    %v2358 = vpack.c.b16 %v2323, %v2322
    %v2359 = vpack.c.b16 %v2325, %v2324
    %v2360 = vpack.c.b16 %v2327, %v2326
    %v2361 = vpack.c.b16 %v2329, %v2328
    %2394 = vmatprep.subr.bf16.mxu0 0
    %2395 = vmatpush1.bf16.msra.mxu0 %v2330
    %2396 = vmatprep.subr.bf16.mxu0 0
    %2397 = vmatpush1.bf16.msra.mxu0 %v2331
    %2398 = vmatprep.subr.bf16.mxu0 0
    %2399 = vmatpush1.bf16.msra.mxu0 %v2332
    %2400 = vmatprep.subr.bf16.mxu0 0
    %2401 = vmatpush1.bf16.msra.mxu0 %v2333
    %2402 = vmatprep.subr.bf16.mxu0 0
    %2403 = vmatpush1.bf16.msra.mxu0 %v2334
    %2404 = vmatprep.subr.bf16.mxu0 0
    %2405 = vmatpush1.bf16.msra.mxu0 %v2335
    %2406 = vmatprep.subr.bf16.mxu0 0
    %2407 = vmatpush1.bf16.msra.mxu0 %v2336
    %2408 = vmatprep.subr.bf16.mxu0 0
    %2409 = vmatpush1.bf16.msra.mxu0 %v2337
    %2410 = vmatprep.subr.bf16.mxu0 0
    %2411 = vmatpush1.bf16.msra.mxu0 %v2338
    %2412 = vmatprep.subr.bf16.mxu0 0
    %2413 = vmatpush1.bf16.msra.mxu0 %v2339
    %2414 = vmatprep.subr.bf16.mxu0 0
    %2415 = vmatpush1.bf16.msra.mxu0 %v2340
    %2416 = vmatprep.subr.bf16.mxu0 0
    %2417 = vmatpush1.bf16.msra.mxu0 %v2341
    %2418 = vmatprep.subr.bf16.mxu0 0
    %2419 = vmatpush1.bf16.msra.mxu0 %v2342
    %2420 = vmatprep.subr.bf16.mxu0 0
    %2421 = vmatpush1.bf16.msra.mxu0 %v2343
    %2422 = vmatprep.subr.bf16.mxu0 0
    %2423 = vmatpush1.bf16.msra.mxu0 %v2344
    %2424 = vmatprep.subr.bf16.mxu0 0
    %2425 = vmatpush1.bf16.msra.mxu0 %v2345
    %2426 = vmatprep.mubr.bf16.mxu0 %v2130
    %2427 = vmatmul.mubr.bf16.gmra.mrb[0].mxu0 %v2129
    %v2428 = vpop.f32.mrb[0].mxu0
    %v2429 = vadd.f32 %v2201, %v2428
    %v2430 = vpop.f32.mrb[0].mxu0
    %v2431 = vpop.f32.mrb[0].mxu0
    %v2432 = vadd.f32 %v2201, %v2431
    %v2433 = vpop.f32.mrb[0].mxu0
    %2434 = vdwg.mxu0
    %2435 = vmatprep.subr.bf16.mxu0 0
    %2436 = vmatpush1.bf16.msra.mxu0 %v2346
    %2437 = vmatprep.subr.bf16.mxu0 0
    %2438 = vmatpush1.bf16.msra.mxu0 %v2347
    %2439 = vmatprep.subr.bf16.mxu0 0
    %2440 = vmatpush1.bf16.msra.mxu0 %v2348
    %2441 = vmatprep.subr.bf16.mxu0 0
    %2442 = vmatpush1.bf16.msra.mxu0 %v2349
    %2443 = vmatprep.subr.bf16.mxu0 0
    %2444 = vmatpush1.bf16.msra.mxu0 %v2350
    %2445 = vmatprep.subr.bf16.mxu0 0
    %2446 = vmatpush1.bf16.msra.mxu0 %v2351
    %2447 = vmatprep.subr.bf16.mxu0 0
    %2448 = vmatpush1.bf16.msra.mxu0 %v2352
    %2449 = vmatprep.subr.bf16.mxu0 0
    %2450 = vmatpush1.bf16.msra.mxu0 %v2353
    %2451 = vmatprep.subr.bf16.mxu0 0
    %2452 = vmatpush1.bf16.msra.mxu0 %v2354
    %2453 = vmatprep.subr.bf16.mxu0 0
    %2454 = vmatpush1.bf16.msra.mxu0 %v2355
    %2455 = vmatprep.subr.bf16.mxu0 0
    %2456 = vmatpush1.bf16.msra.mxu0 %v2356
    %2457 = vmatprep.subr.bf16.mxu0 0
    %2458 = vmatpush1.bf16.msra.mxu0 %v2357
    %2459 = vmatprep.subr.bf16.mxu0 0
    %2460 = vmatpush1.bf16.msra.mxu0 %v2358
    %2461 = vmatprep.subr.bf16.mxu0 0
    %2462 = vmatpush1.bf16.msra.mxu0 %v2359
    %2463 = vmatprep.subr.bf16.mxu0 0
    %2464 = vmatpush1.bf16.msra.mxu0 %v2360
    %2465 = vmatprep.subr.bf16.mxu0 0
    %2466 = vmatpush1.bf16.msra.mxu0 %v2361
    %2467 = vmatprep.mubr.bf16.mxu0 %v2132
    %2468 = vmatmul.mubr.bf16.gmra.mrb[0].mxu0 %v2131
    %v2469 = vpop.f32.mrb[0].mxu0
    %v2470 = vadd.f32 %v2429, %v2469
    %v2471 = vpop.f32.mrb[0].mxu0
    %v2472 = vpop.f32.mrb[0].mxu0
    %v2473 = vadd.f32 %v2432, %v2472
    %v2474 = vpop.f32.mrb[0].mxu0
    %2475 = vdwg.mxu0
    %v2476 = vadd.f32 %v1911, %v2470
    %v2477 = vadd.f32 %v1912, %v2473
    %v2478 = vld [vmem:[%s16 + $0x2] sm:$0x1]
    %v2479 = vld [vmem:[%s17 + $0x2] sm:$0x1]
    %v2480 = vsel %vm125, %v2476, 0.0
    %2481 = vadd.xlane.f32.xlu0 %v2480
    %v2482 = vpop.xlane.xlu0 %2481
    %v2483 = vsel %vm125, %v2477, 0.0
    %2484 = vadd.xlane.f32.xlu0 %v2483
    %v2485 = vpop.xlane.xlu0 %2484
    %v2486 = vmul.f32 %v2482, %v930
    %v2487 = vmul.f32 %v2485, %v930
    %v2488 = vsub.f32 %v2476, %v2486
    %v2489 = vsub.f32 %v2477, %v2487
    %v2490 = vmul.f32 %v2488, %v2488
    %v2491 = vmul.f32 %v2489, %v2489
    %v2492 = vsel %vm125, %v2490, 0.0
    %2493 = vadd.xlane.f32.xlu0 %v2492
    %v2494 = vpop.xlane.xlu0 %2493
    %v2495 = vsel %vm125, %v2491, 0.0
    %2496 = vadd.xlane.f32.xlu0 %v2495
    %v2497 = vpop.xlane.xlu0 %2496
    %v2498 = vmul.f32 %v2494, %v930
    %v2499 = vmul.f32 %v2497, %v930
    %v2500 = vadd.f32 %v2498, 1e-05
    %v2501 = vadd.f32 %v2499, 1e-05
    %v2502 = vrsqrt.pop %v2500
    %v2503 = vrsqrt.pop %v2501
    %v2504 = vmul.f32 %v2488, %v2502
    %v2505 = vmul.f32 %v2489, %v2503
    %v2506 = vlaneseq
    %v2507 = vshrl.u32 %v2506, 7
    %v2508 = vsub.s32 0, %v2507
    %v2509 = vrot.slane %v2478, %v2508
    %v2510 = vmul.f32 %v2504, %v2509
    %v2511 = vmul.f32 %v2505, %v2509
    %v2512 = vlaneseq
    %v2513 = vshrl.u32 %v2512, 7
    %v2514 = vsub.s32 0, %v2513
    %v2515 = vrot.slane %v2479, %v2514
    %v2516 = vadd.f32 %v2510, %v2515
    %v2517 = vadd.f32 %v2511, %v2515
    %v2518 = vpack.c.bf16 %v2517, %v2516
    %s2519 = scalar_lea.vmem %s2, 64
    %v2520 = vld [vmem:[%s2519] sm:$0xff]
    %v2521 = vld [vmem:[%s2519 + $0x8] sm:$0xff]
    %v2522 = vld [vmem:[%s2519 + $0x10] sm:$0xff]
    %v2523 = vld [vmem:[%s2519 + $0x18] sm:$0xff]
    %v2524 = vld [vmem:[%s2519 + $0x20] sm:$0xff]
    %v2525 = vld [vmem:[%s2519 + $0x28] sm:$0xff]
    %v2526 = vld [vmem:[%s2519 + $0x30] sm:$0xff]
    %v2527 = vld [vmem:[%s2519 + $0x38] sm:$0xff]
    %s2528 = scalar_lea.vmem %s3, 1
    %v2529 = vld [vmem:[%s2528] ss:$2 sm:$0x3]
    %v2531 = vlaneseq
    %v2532 = vshrl.u32 %v2531, 7
    %v2533 = vsub.s32 0, %v2532
    %v2534 = vrot.slane %v2529, %v2533
    %v2535 = vlaneseq
    %v2536 = vshrl.u32 %v2535, 7
    %v2537 = vsub.s32 1, %v2536
    %v2538 = vrot.slane %v2529, %v2537
    %v2549 = vunpack.c.l.b16 %v2520
    %v2550 = vunpack.c.h.b16 %v2520
    %v2551 = vunpack.c.l.b16 %v2521
    %v2552 = vunpack.c.h.b16 %v2521
    %v2553 = vunpack.c.l.b16 %v2522
    %v2554 = vunpack.c.h.b16 %v2522
    %v2555 = vunpack.c.l.b16 %v2523
    %v2556 = vunpack.c.h.b16 %v2523
    %v2557 = vunpack.c.l.b16 %v2524
    %v2558 = vunpack.c.h.b16 %v2524
    %v2559 = vunpack.c.l.b16 %v2525
    %v2560 = vunpack.c.h.b16 %v2525
    %v2561 = vunpack.c.l.b16 %v2526
    %v2562 = vunpack.c.h.b16 %v2526
    %v2563 = vunpack.c.l.b16 %v2527
    %v2564 = vunpack.c.h.b16 %v2527
    %v2565 = vpack.c.b16 %v2551, %v2549
    %v2566 = vpack.c.b16 %v2552, %v2550
    %v2567 = vpack.c.b16 %v2555, %v2553
    %v2568 = vpack.c.b16 %v2556, %v2554
    %v2569 = vpack.c.b16 %v2559, %v2557
    %v2570 = vpack.c.b16 %v2560, %v2558
    %v2571 = vpack.c.b16 %v2563, %v2561
    %v2572 = vpack.c.b16 %v2564, %v2562
    %v2582 = vsel %vm125, %v2518, 0
    %2584 = vmatprep.subr.bf16.mxu0 %v2566
    %2585 = vmatpush1.bf16.msra.mxu0 %v2565
    %2586 = vmatprep.subr.bf16.mxu0 %v2568
    %2587 = vmatpush1.bf16.msra.mxu0 %v2567
    %2588 = vmatprep.subr.bf16.mxu0 %v2570
    %2589 = vmatpush1.bf16.msra.mxu0 %v2569
    %2590 = vmatprep.subr.bf16.mxu0 %v2572
    %2591 = vmatpush1.bf16.msra.mxu0 %v2571
    %2592 = vmatprep.subr.bf16.mxu0 0
    %2593 = vmatpush1.bf16.msra.mxu0 0
    %2594 = vmatprep.subr.bf16.mxu0 0
    %2595 = vmatpush1.bf16.msra.mxu0 0
    %2596 = vmatprep.subr.bf16.mxu0 0
    %2597 = vmatpush1.bf16.msra.mxu0 0
    %2598 = vmatprep.subr.bf16.mxu0 0
    %2599 = vmatpush1.bf16.msra.mxu0 0
    %2600 = vmatprep.subr.bf16.mxu0 0
    %2601 = vmatpush1.bf16.msra.mxu0 0
    %2602 = vmatprep.subr.bf16.mxu0 0
    %2603 = vmatpush1.bf16.msra.mxu0 0
    %2604 = vmatprep.subr.bf16.mxu0 0
    %2605 = vmatpush1.bf16.msra.mxu0 0
    %2606 = vmatprep.subr.bf16.mxu0 0
    %2607 = vmatpush1.bf16.msra.mxu0 0
    %2608 = vmatprep.subr.bf16.mxu0 0
    %2609 = vmatpush1.bf16.msra.mxu0 0
    %2610 = vmatprep.subr.bf16.mxu0 0
    %2611 = vmatpush1.bf16.msra.mxu0 0
    %2612 = vmatprep.subr.bf16.mxu0 0
    %2613 = vmatpush1.bf16.msra.mxu0 0
    %2614 = vmatprep.subr.bf16.mxu0 0
    %2615 = vmatpush1.bf16.msra.mxu0 0
    %2616 = vmatprep.mubr.bf16.mxu0 0
    %2617 = vmatmul.mubr.bf16.gmra.mrb[0].mxu0 %v2582
    %v2618 = vpop.f32.mrb[0].mxu0
    %v2619 = vadd.f32 %v2534, %v2618
    %v2620 = vpop.f32.mrb[0].mxu0
    %v2621 = vadd.f32 %v2538, %v2620
    %v2622 = vpop.f32.mrb[0].mxu0
    %v2623 = vadd.f32 %v2534, %v2622
    %v2624 = vpop.f32.mrb[0].mxu0
    %v2625 = vadd.f32 %v2538, %v2624
    %2626 = vdwg.mxu0
    %2629 = vrot.lane.b32.xlu0 %v2619, 96
    %v2630 = vpop.permute.xlu0 %2629
    %2631 = vrot.lane.b32.xlu0 %v2623, 96
    %v2632 = vpop.permute.xlu0 %2631
    %2635 = vrot.lane.b32.xlu0 %v2621, 96
    %v2636 = vpop.permute.xlu0 %2635
    %2637 = vrot.lane.b32.xlu0 %v2625, 96
    %v2638 = vpop.permute.xlu0 %2637
    %v2641 = vrot.slane %v2619, 7
    %2642 = vrot.lane.b32.xlu0 %v2619, 64
    %v2643 = vpop.permute.xlu0 %2642
    %v2645 = vrot.slane %v64, 7
    %v2647 = vsel %vm188, %v2641, 0
    %v2649 = vsel %vm188, %v2643, 0
    %2651 = vmatprep.subr.mxu0 0.0
    %2652 = vmatpush1.xpose.msra.mxu0 %v2649
    %2653 = vmatprep.subr.mxu0 0.0
    %2654 = vmatpush1.xpose.msra.mxu0 0.0
    %2655 = vmatprep.subr.mxu0 0.0
    %2656 = vmatpush1.xpose.msra.mxu0 0.0
    %2657 = vmatprep.subr.mxu0 0.0
    %2658 = vmatpush1.xpose.msra.mxu0 0.0
    %2659 = vmatprep.subr.mxu0 0.0
    %2660 = vmatpush1.xpose.msra.mxu0 0.0
    %2661 = vmatprep.subr.mxu0 0.0
    %2662 = vmatpush1.xpose.msra.mxu0 0.0
    %2663 = vmatprep.subr.mxu0 0.0
    %2664 = vmatpush1.xpose.msra.mxu0 0.0
    %2665 = vmatprep.subr.mxu0 0.0
    %2666 = vmatpush1.xpose.msra.mxu0 0.0
    %2667 = vmatprep.subr.mxu0 0.0
    %2668 = vmatpush1.xpose.msra.mxu0 0.0
    %2669 = vmatprep.subr.mxu0 0.0
    %2670 = vmatpush1.xpose.msra.mxu0 0.0
    %2671 = vmatprep.subr.mxu0 0.0
    %2672 = vmatpush1.xpose.msra.mxu0 0.0
    %2673 = vmatprep.subr.mxu0 0.0
    %2674 = vmatpush1.xpose.msra.mxu0 0.0
    %2675 = vmatprep.subr.mxu0 0.0
    %2676 = vmatpush1.xpose.msra.mxu0 0.0
    %2677 = vmatprep.subr.mxu0 0.0
    %2678 = vmatpush1.xpose.msra.mxu0 0.0
    %2679 = vmatprep.subr.mxu0 0.0
    %2680 = vmatpush1.xpose.msra.mxu0 0.0
    %2681 = vmatprep.subr.mxu0 0.0
    %2682 = vmatpush1.xpose.msra.mxu0 0.0
    %2683 = vmatprep.subr.mxu0 0.0
    %2684 = vmatpush1.xpose.msra.mxu0 0.0
    %2685 = vmatprep.subr.mxu0 0.0
    %2686 = vmatpush1.xpose.msra.mxu0 0.0
    %2687 = vmatprep.subr.mxu0 0.0
    %2688 = vmatpush1.xpose.msra.mxu0 0.0
    %2689 = vmatprep.subr.mxu0 0.0
    %2690 = vmatpush1.xpose.msra.mxu0 0.0
    %2691 = vmatprep.subr.mxu0 0.0
    %2692 = vmatpush1.xpose.msra.mxu0 0.0
    %2693 = vmatprep.subr.mxu0 0.0
    %2694 = vmatpush1.xpose.msra.mxu0 0.0
    %2695 = vmatprep.subr.mxu0 0.0
    %2696 = vmatpush1.xpose.msra.mxu0 0.0
    %2697 = vmatprep.subr.mxu0 0.0
    %2698 = vmatpush1.xpose.msra.mxu0 0.0
    %2699 = vmatprep.subr.mxu0 0.0
    %2700 = vmatpush1.xpose.msra.mxu0 0.0
    %2701 = vmatprep.subr.mxu0 0.0
    %2702 = vmatpush1.xpose.msra.mxu0 0.0
    %2703 = vmatprep.subr.mxu0 0.0
    %2704 = vmatpush1.xpose.msra.mxu0 0.0
    %2705 = vmatprep.subr.mxu0 0.0
    %2706 = vmatpush1.xpose.msra.mxu0 0.0
    %2707 = vmatprep.subr.mxu0 0.0
    %2708 = vmatpush1.xpose.msra.mxu0 0.0
    %2709 = vmatprep.subr.mxu0 0.0
    %2710 = vmatpush1.xpose.msra.mxu0 0.0
    %2711 = vmatprep.subr.mxu0 0.0
    %2712 = vmatpush1.xpose.msra.mxu0 0.0
    %2713 = vmatprep.subr.mxu0 0.0
    %2714 = vmatpush1.xpose.msra.mxu0 0.0
    %2715 = vmatprep.mubr.f32.mxu0 0.0
    %2716 = vmatmul.mubr.f32.gmra.mrb[0].mxu0 %v2647
    %v2717 = vpop.f32.mrb[0].mxu0
    %v2718 = vadd.f32 %v2645, %v2717
    %v2719 = vpop.f32.mrb[0].mxu0
    %2720 = vdwg.mxu0
    %v2721 = vrot.slane %v2623, 7
    %2722 = vrot.lane.b32.xlu0 %v2623, 64
    %v2723 = vpop.permute.xlu0 %2722
    %v2724 = vsel %vm188, %v2721, 0
    %v2726 = vsel %vm188, %v2723, 0
    %2728 = vmatprep.subr.mxu0 0.0
    %2729 = vmatpush1.xpose.msra.mxu0 %v2726
    %2730 = vmatprep.subr.mxu0 0.0
    %2731 = vmatpush1.xpose.msra.mxu0 0.0
    %2732 = vmatprep.subr.mxu0 0.0
    %2733 = vmatpush1.xpose.msra.mxu0 0.0
    %2734 = vmatprep.subr.mxu0 0.0
    %2735 = vmatpush1.xpose.msra.mxu0 0.0
    %2736 = vmatprep.subr.mxu0 0.0
    %2737 = vmatpush1.xpose.msra.mxu0 0.0
    %2738 = vmatprep.subr.mxu0 0.0
    %2739 = vmatpush1.xpose.msra.mxu0 0.0
    %2740 = vmatprep.subr.mxu0 0.0
    %2741 = vmatpush1.xpose.msra.mxu0 0.0
    %2742 = vmatprep.subr.mxu0 0.0
    %2743 = vmatpush1.xpose.msra.mxu0 0.0
    %2744 = vmatprep.subr.mxu0 0.0
    %2745 = vmatpush1.xpose.msra.mxu0 0.0
    %2746 = vmatprep.subr.mxu0 0.0
    %2747 = vmatpush1.xpose.msra.mxu0 0.0
    %2748 = vmatprep.subr.mxu0 0.0
    %2749 = vmatpush1.xpose.msra.mxu0 0.0
    %2750 = vmatprep.subr.mxu0 0.0
    %2751 = vmatpush1.xpose.msra.mxu0 0.0
    %2752 = vmatprep.subr.mxu0 0.0
    %2753 = vmatpush1.xpose.msra.mxu0 0.0
    %2754 = vmatprep.subr.mxu0 0.0
    %2755 = vmatpush1.xpose.msra.mxu0 0.0
    %2756 = vmatprep.subr.mxu0 0.0
    %2757 = vmatpush1.xpose.msra.mxu0 0.0
    %2758 = vmatprep.subr.mxu0 0.0
    %2759 = vmatpush1.xpose.msra.mxu0 0.0
    %2760 = vmatprep.subr.mxu0 0.0
    %2761 = vmatpush1.xpose.msra.mxu0 0.0
    %2762 = vmatprep.subr.mxu0 0.0
    %2763 = vmatpush1.xpose.msra.mxu0 0.0
    %2764 = vmatprep.subr.mxu0 0.0
    %2765 = vmatpush1.xpose.msra.mxu0 0.0
    %2766 = vmatprep.subr.mxu0 0.0
    %2767 = vmatpush1.xpose.msra.mxu0 0.0
    %2768 = vmatprep.subr.mxu0 0.0
    %2769 = vmatpush1.xpose.msra.mxu0 0.0
    %2770 = vmatprep.subr.mxu0 0.0
    %2771 = vmatpush1.xpose.msra.mxu0 0.0
    %2772 = vmatprep.subr.mxu0 0.0
    %2773 = vmatpush1.xpose.msra.mxu0 0.0
    %2774 = vmatprep.subr.mxu0 0.0
    %2775 = vmatpush1.xpose.msra.mxu0 0.0
    %2776 = vmatprep.subr.mxu0 0.0
    %2777 = vmatpush1.xpose.msra.mxu0 0.0
    %2778 = vmatprep.subr.mxu0 0.0
    %2779 = vmatpush1.xpose.msra.mxu0 0.0
    %2780 = vmatprep.subr.mxu0 0.0
    %2781 = vmatpush1.xpose.msra.mxu0 0.0
    %2782 = vmatprep.subr.mxu0 0.0
    %2783 = vmatpush1.xpose.msra.mxu0 0.0
    %2784 = vmatprep.subr.mxu0 0.0
    %2785 = vmatpush1.xpose.msra.mxu0 0.0
    %2786 = vmatprep.subr.mxu0 0.0
    %2787 = vmatpush1.xpose.msra.mxu0 0.0
    %2788 = vmatprep.subr.mxu0 0.0
    %2789 = vmatpush1.xpose.msra.mxu0 0.0
    %2790 = vmatprep.subr.mxu0 0.0
    %2791 = vmatpush1.xpose.msra.mxu0 0.0
    %2792 = vmatprep.mubr.f32.mxu0 0.0
    %2793 = vmatmul.mubr.f32.gmra.mrb[0].mxu0 %v2724
    %v2794 = vpop.f32.mrb[0].mxu0
    %v2795 = vadd.f32 %v2645, %v2794
    %v2796 = vpop.f32.mrb[0].mxu0
    %2797 = vdwg.mxu0
    %v2798 = vrot.slane %v2630, 7
    %2799 = vrot.lane.b32.xlu0 %v2630, 64
    %v2800 = vpop.permute.xlu0 %2799
    %v2801 = vsel %vm188, %v2798, 0
    %v2803 = vsel %vm188, %v2800, 0
    %2805 = vmatprep.subr.mxu0 0.0
    %2806 = vmatpush1.xpose.msra.mxu0 %v2803
    %2807 = vmatprep.subr.mxu0 0.0
    %2808 = vmatpush1.xpose.msra.mxu0 0.0
    %2809 = vmatprep.subr.mxu0 0.0
    %2810 = vmatpush1.xpose.msra.mxu0 0.0
    %2811 = vmatprep.subr.mxu0 0.0
    %2812 = vmatpush1.xpose.msra.mxu0 0.0
    %2813 = vmatprep.subr.mxu0 0.0
    %2814 = vmatpush1.xpose.msra.mxu0 0.0
    %2815 = vmatprep.subr.mxu0 0.0
    %2816 = vmatpush1.xpose.msra.mxu0 0.0
    %2817 = vmatprep.subr.mxu0 0.0
    %2818 = vmatpush1.xpose.msra.mxu0 0.0
    %2819 = vmatprep.subr.mxu0 0.0
    %2820 = vmatpush1.xpose.msra.mxu0 0.0
    %2821 = vmatprep.subr.mxu0 0.0
    %2822 = vmatpush1.xpose.msra.mxu0 0.0
    %2823 = vmatprep.subr.mxu0 0.0
    %2824 = vmatpush1.xpose.msra.mxu0 0.0
    %2825 = vmatprep.subr.mxu0 0.0
    %2826 = vmatpush1.xpose.msra.mxu0 0.0
    %2827 = vmatprep.subr.mxu0 0.0
    %2828 = vmatpush1.xpose.msra.mxu0 0.0
    %2829 = vmatprep.subr.mxu0 0.0
    %2830 = vmatpush1.xpose.msra.mxu0 0.0
    %2831 = vmatprep.subr.mxu0 0.0
    %2832 = vmatpush1.xpose.msra.mxu0 0.0
    %2833 = vmatprep.subr.mxu0 0.0
    %2834 = vmatpush1.xpose.msra.mxu0 0.0
    %2835 = vmatprep.subr.mxu0 0.0
    %2836 = vmatpush1.xpose.msra.mxu0 0.0
    %2837 = vmatprep.subr.mxu0 0.0
    %2838 = vmatpush1.xpose.msra.mxu0 0.0
    %2839 = vmatprep.subr.mxu0 0.0
    %2840 = vmatpush1.xpose.msra.mxu0 0.0
    %2841 = vmatprep.subr.mxu0 0.0
    %2842 = vmatpush1.xpose.msra.mxu0 0.0
    %2843 = vmatprep.subr.mxu0 0.0
    %2844 = vmatpush1.xpose.msra.mxu0 0.0
    %2845 = vmatprep.subr.mxu0 0.0
    %2846 = vmatpush1.xpose.msra.mxu0 0.0
    %2847 = vmatprep.subr.mxu0 0.0
    %2848 = vmatpush1.xpose.msra.mxu0 0.0
    %2849 = vmatprep.subr.mxu0 0.0
    %2850 = vmatpush1.xpose.msra.mxu0 0.0
    %2851 = vmatprep.subr.mxu0 0.0
    %2852 = vmatpush1.xpose.msra.mxu0 0.0
    %2853 = vmatprep.subr.mxu0 0.0
    %2854 = vmatpush1.xpose.msra.mxu0 0.0
    %2855 = vmatprep.subr.mxu0 0.0
    %2856 = vmatpush1.xpose.msra.mxu0 0.0
    %2857 = vmatprep.subr.mxu0 0.0
    %2858 = vmatpush1.xpose.msra.mxu0 0.0
    %2859 = vmatprep.subr.mxu0 0.0
    %2860 = vmatpush1.xpose.msra.mxu0 0.0
    %2861 = vmatprep.subr.mxu0 0.0
    %2862 = vmatpush1.xpose.msra.mxu0 0.0
    %2863 = vmatprep.subr.mxu0 0.0
    %2864 = vmatpush1.xpose.msra.mxu0 0.0
    %2865 = vmatprep.subr.mxu0 0.0
    %2866 = vmatpush1.xpose.msra.mxu0 0.0
    %2867 = vmatprep.subr.mxu0 0.0
    %2868 = vmatpush1.xpose.msra.mxu0 0.0
    %2869 = vmatprep.mubr.f32.mxu0 0.0
    %2870 = vmatmul.mubr.f32.gmra.mrb[0].mxu0 %v2801
    %v2871 = vpop.f32.mrb[0].mxu0
    %v2872 = vadd.f32 %v2645, %v2871
    %v2873 = vpop.f32.mrb[0].mxu0
    %2874 = vdwg.mxu0
    %v2875 = vrot.slane %v2632, 7
    %2876 = vrot.lane.b32.xlu0 %v2632, 64
    %v2877 = vpop.permute.xlu0 %2876
    %v2878 = vsel %vm188, %v2875, 0
    %v2880 = vsel %vm188, %v2877, 0
    %2882 = vmatprep.subr.mxu0 0.0
    %2883 = vmatpush1.xpose.msra.mxu0 %v2880
    %2884 = vmatprep.subr.mxu0 0.0
    %2885 = vmatpush1.xpose.msra.mxu0 0.0
    %2886 = vmatprep.subr.mxu0 0.0
    %2887 = vmatpush1.xpose.msra.mxu0 0.0
    %2888 = vmatprep.subr.mxu0 0.0
    %2889 = vmatpush1.xpose.msra.mxu0 0.0
    %2890 = vmatprep.subr.mxu0 0.0
    %2891 = vmatpush1.xpose.msra.mxu0 0.0
    %2892 = vmatprep.subr.mxu0 0.0
    %2893 = vmatpush1.xpose.msra.mxu0 0.0
    %2894 = vmatprep.subr.mxu0 0.0
    %2895 = vmatpush1.xpose.msra.mxu0 0.0
    %2896 = vmatprep.subr.mxu0 0.0
    %2897 = vmatpush1.xpose.msra.mxu0 0.0
    %2898 = vmatprep.subr.mxu0 0.0
    %2899 = vmatpush1.xpose.msra.mxu0 0.0
    %2900 = vmatprep.subr.mxu0 0.0
    %2901 = vmatpush1.xpose.msra.mxu0 0.0
    %2902 = vmatprep.subr.mxu0 0.0
    %2903 = vmatpush1.xpose.msra.mxu0 0.0
    %2904 = vmatprep.subr.mxu0 0.0
    %2905 = vmatpush1.xpose.msra.mxu0 0.0
    %2906 = vmatprep.subr.mxu0 0.0
    %2907 = vmatpush1.xpose.msra.mxu0 0.0
    %2908 = vmatprep.subr.mxu0 0.0
    %2909 = vmatpush1.xpose.msra.mxu0 0.0
    %2910 = vmatprep.subr.mxu0 0.0
    %2911 = vmatpush1.xpose.msra.mxu0 0.0
    %2912 = vmatprep.subr.mxu0 0.0
    %2913 = vmatpush1.xpose.msra.mxu0 0.0
    %2914 = vmatprep.subr.mxu0 0.0
    %2915 = vmatpush1.xpose.msra.mxu0 0.0
    %2916 = vmatprep.subr.mxu0 0.0
    %2917 = vmatpush1.xpose.msra.mxu0 0.0
    %2918 = vmatprep.subr.mxu0 0.0
    %2919 = vmatpush1.xpose.msra.mxu0 0.0
    %2920 = vmatprep.subr.mxu0 0.0
    %2921 = vmatpush1.xpose.msra.mxu0 0.0
    %2922 = vmatprep.subr.mxu0 0.0
    %2923 = vmatpush1.xpose.msra.mxu0 0.0
    %2924 = vmatprep.subr.mxu0 0.0
    %2925 = vmatpush1.xpose.msra.mxu0 0.0
    %2926 = vmatprep.subr.mxu0 0.0
    %2927 = vmatpush1.xpose.msra.mxu0 0.0
    %2928 = vmatprep.subr.mxu0 0.0
    %2929 = vmatpush1.xpose.msra.mxu0 0.0
    %2930 = vmatprep.subr.mxu0 0.0
    %2931 = vmatpush1.xpose.msra.mxu0 0.0
    %2932 = vmatprep.subr.mxu0 0.0
    %2933 = vmatpush1.xpose.msra.mxu0 0.0
    %2934 = vmatprep.subr.mxu0 0.0
    %2935 = vmatpush1.xpose.msra.mxu0 0.0
    %2936 = vmatprep.subr.mxu0 0.0
    %2937 = vmatpush1.xpose.msra.mxu0 0.0
    %2938 = vmatprep.subr.mxu0 0.0
    %2939 = vmatpush1.xpose.msra.mxu0 0.0
    %2940 = vmatprep.subr.mxu0 0.0
    %2941 = vmatpush1.xpose.msra.mxu0 0.0
    %2942 = vmatprep.subr.mxu0 0.0
    %2943 = vmatpush1.xpose.msra.mxu0 0.0
    %2944 = vmatprep.subr.mxu0 0.0
    %2945 = vmatpush1.xpose.msra.mxu0 0.0
    %2946 = vmatprep.mubr.f32.mxu0 0.0
    %2947 = vmatmul.mubr.f32.gmra.mrb[0].mxu0 %v2878
    %v2948 = vpop.f32.mrb[0].mxu0
    %v2949 = vadd.f32 %v2645, %v2948
    %v2950 = vpop.f32.mrb[0].mxu0
    %2951 = vdwg.mxu0
    %vm2952 = vcmask 57344
    %v2953 = vsel %vm2952, %v2718, -inf
    %2954 = vmax.xlane.f32.xlu0 %v2953
    %v2955 = vpop.xlane.xlu0 %2954
    %v2956 = vsel %vm2952, %v2795, -inf
    %2957 = vmax.xlane.f32.xlu0 %v2956
    %v2958 = vpop.xlane.xlu0 %2957
    %v2959 = vsel %vm2952, %v2872, -inf
    %2960 = vmax.xlane.f32.xlu0 %v2959
    %v2961 = vpop.xlane.xlu0 %2960
    %v2962 = vsel %vm2952, %v2949, -inf
    %2963 = vmax.xlane.f32.xlu0 %v2962
    %v2964 = vpop.xlane.xlu0 %2963
    %v2965 = vsub.f32 %v2718, %v2955
    %v2966 = vsub.f32 %v2795, %v2958
    %v2967 = vsub.f32 %v2872, %v2961
    %v2968 = vsub.f32 %v2949, %v2964
    %v2969 = vmul.f32 %v2965, 1.442695
    %v2970 = vpow.pop %v2969
    %v2971 = vmul.f32 %v2966, 1.442695
    %v2972 = vpow.pop %v2971
    %v2973 = vmul.f32 %v2967, 1.442695
    %v2974 = vpow.pop %v2973
    %v2975 = vmul.f32 %v2968, 1.442695
    %v2976 = vpow.pop %v2975
    %v2977 = vsel %vm2952, %v2970, 0.0
    %2978 = vadd.xlane.f32.xlu0 %v2977
    %v2979 = vpop.xlane.xlu0 %2978
    %v2980 = vsel %vm2952, %v2972, 0.0
    %2981 = vadd.xlane.f32.xlu0 %v2980
    %v2982 = vpop.xlane.xlu0 %2981
    %v2983 = vsel %vm2952, %v2974, 0.0
    %2984 = vadd.xlane.f32.xlu0 %v2983
    %v2985 = vpop.xlane.xlu0 %2984
    %v2986 = vsel %vm2952, %v2976, 0.0
    %2987 = vadd.xlane.f32.xlu0 %v2986
    %v2988 = vpop.xlane.xlu0 %2987
    %v2989 = vrcp.pop %v2979
    %v2990 = vrcp.pop %v2982
    %v2991 = vrcp.pop %v2985
    %v2992 = vrcp.pop %v2988
    %v2993 = vmul.f32 %v2970, %v2989
    %v2994 = vmul.f32 %v2972, %v2990
    %v2995 = vmul.f32 %v2974, %v2991
    %v2996 = vmul.f32 %v2976, %v2992
    %v2998 = vsel %vm491, %v2993, 0
    %3000 = vmatprep.subr.mxu0 0.0
    %3001 = vmatpush1.msra.mxu0 %v2621
    %3002 = vmatprep.subr.mxu0 0.0
    %3003 = vmatpush1.msra.mxu0 0.0
    %3004 = vmatprep.subr.mxu0 0.0
    %3005 = vmatpush1.msra.mxu0 0.0
    %3006 = vmatprep.subr.mxu0 0.0
    %3007 = vmatpush1.msra.mxu0 0.0
    %3008 = vmatprep.subr.mxu0 0.0
    %3009 = vmatpush1.msra.mxu0 0.0
    %3010 = vmatprep.subr.mxu0 0.0
    %3011 = vmatpush1.msra.mxu0 0.0
    %3012 = vmatprep.subr.mxu0 0.0
    %3013 = vmatpush1.msra.mxu0 0.0
    %3014 = vmatprep.subr.mxu0 0.0
    %3015 = vmatpush1.msra.mxu0 0.0
    %3016 = vmatprep.subr.mxu0 0.0
    %3017 = vmatpush1.msra.mxu0 0.0
    %3018 = vmatprep.subr.mxu0 0.0
    %3019 = vmatpush1.msra.mxu0 0.0
    %3020 = vmatprep.subr.mxu0 0.0
    %3021 = vmatpush1.msra.mxu0 0.0
    %3022 = vmatprep.subr.mxu0 0.0
    %3023 = vmatpush1.msra.mxu0 0.0
    %3024 = vmatprep.subr.mxu0 0.0
    %3025 = vmatpush1.msra.mxu0 0.0
    %3026 = vmatprep.subr.mxu0 0.0
    %3027 = vmatpush1.msra.mxu0 0.0
    %3028 = vmatprep.subr.mxu0 0.0
    %3029 = vmatpush1.msra.mxu0 0.0
    %3030 = vmatprep.subr.mxu0 0.0
    %3031 = vmatpush1.msra.mxu0 0.0
    %3032 = vmatprep.subr.mxu0 0.0
    %3033 = vmatpush1.msra.mxu0 0.0
    %3034 = vmatprep.subr.mxu0 0.0
    %3035 = vmatpush1.msra.mxu0 0.0
    %3036 = vmatprep.subr.mxu0 0.0
    %3037 = vmatpush1.msra.mxu0 0.0
    %3038 = vmatprep.subr.mxu0 0.0
    %3039 = vmatpush1.msra.mxu0 0.0
    %3040 = vmatprep.subr.mxu0 0.0
    %3041 = vmatpush1.msra.mxu0 0.0
    %3042 = vmatprep.subr.mxu0 0.0
    %3043 = vmatpush1.msra.mxu0 0.0
    %3044 = vmatprep.subr.mxu0 0.0
    %3045 = vmatpush1.msra.mxu0 0.0
    %3046 = vmatprep.subr.mxu0 0.0
    %3047 = vmatpush1.msra.mxu0 0.0
    %3048 = vmatprep.subr.mxu0 0.0
    %3049 = vmatpush1.msra.mxu0 0.0
    %3050 = vmatprep.subr.mxu0 0.0
    %3051 = vmatpush1.msra.mxu0 0.0
    %3052 = vmatprep.subr.mxu0 0.0
    %3053 = vmatpush1.msra.mxu0 0.0
    %3054 = vmatprep.subr.mxu0 0.0
    %3055 = vmatpush1.msra.mxu0 0.0
    %3056 = vmatprep.subr.mxu0 0.0
    %3057 = vmatpush1.msra.mxu0 0.0
    %3058 = vmatprep.subr.mxu0 0.0
    %3059 = vmatpush1.msra.mxu0 0.0
    %3060 = vmatprep.subr.mxu0 0.0
    %3061 = vmatpush1.msra.mxu0 0.0
    %3062 = vmatprep.subr.mxu0 0.0
    %3063 = vmatpush1.msra.mxu0 0.0
    %3064 = vmatprep.mubr.f32.mxu0 0.0
    %3065 = vmatmul.mubr.f32.gmra.mrb[0].mxu0 %v2998
    %v3066 = vpop.f32.mrb[0].mxu0
    %v3067 = vadd.f32 0.0, %v3066
    %v3068 = vpop.f32.mrb[0].mxu0
    %3069 = vdwg.mxu0
    %v3071 = vsel %vm491, %v2994, 0
    %3073 = vmatprep.subr.mxu0 0.0
    %3074 = vmatpush1.msra.mxu0 %v2625
    %3075 = vmatprep.subr.mxu0 0.0
    %3076 = vmatpush1.msra.mxu0 0.0
    %3077 = vmatprep.subr.mxu0 0.0
    %3078 = vmatpush1.msra.mxu0 0.0
    %3079 = vmatprep.subr.mxu0 0.0
    %3080 = vmatpush1.msra.mxu0 0.0
    %3081 = vmatprep.subr.mxu0 0.0
    %3082 = vmatpush1.msra.mxu0 0.0
    %3083 = vmatprep.subr.mxu0 0.0
    %3084 = vmatpush1.msra.mxu0 0.0
    %3085 = vmatprep.subr.mxu0 0.0
    %3086 = vmatpush1.msra.mxu0 0.0
    %3087 = vmatprep.subr.mxu0 0.0
    %3088 = vmatpush1.msra.mxu0 0.0
    %3089 = vmatprep.subr.mxu0 0.0
    %3090 = vmatpush1.msra.mxu0 0.0
    %3091 = vmatprep.subr.mxu0 0.0
    %3092 = vmatpush1.msra.mxu0 0.0
    %3093 = vmatprep.subr.mxu0 0.0
    %3094 = vmatpush1.msra.mxu0 0.0
    %3095 = vmatprep.subr.mxu0 0.0
    %3096 = vmatpush1.msra.mxu0 0.0
    %3097 = vmatprep.subr.mxu0 0.0
    %3098 = vmatpush1.msra.mxu0 0.0
    %3099 = vmatprep.subr.mxu0 0.0
    %3100 = vmatpush1.msra.mxu0 0.0
    %3101 = vmatprep.subr.mxu0 0.0
    %3102 = vmatpush1.msra.mxu0 0.0
    %3103 = vmatprep.subr.mxu0 0.0
    %3104 = vmatpush1.msra.mxu0 0.0
    %3105 = vmatprep.subr.mxu0 0.0
    %3106 = vmatpush1.msra.mxu0 0.0
    %3107 = vmatprep.subr.mxu0 0.0
    %3108 = vmatpush1.msra.mxu0 0.0
    %3109 = vmatprep.subr.mxu0 0.0
    %3110 = vmatpush1.msra.mxu0 0.0
    %3111 = vmatprep.subr.mxu0 0.0
    %3112 = vmatpush1.msra.mxu0 0.0
    %3113 = vmatprep.subr.mxu0 0.0
    %3114 = vmatpush1.msra.mxu0 0.0
    %3115 = vmatprep.subr.mxu0 0.0
    %3116 = vmatpush1.msra.mxu0 0.0
    %3117 = vmatprep.subr.mxu0 0.0
    %3118 = vmatpush1.msra.mxu0 0.0
    %3119 = vmatprep.subr.mxu0 0.0
    %3120 = vmatpush1.msra.mxu0 0.0
    %3121 = vmatprep.subr.mxu0 0.0
    %3122 = vmatpush1.msra.mxu0 0.0
    %3123 = vmatprep.subr.mxu0 0.0
    %3124 = vmatpush1.msra.mxu0 0.0
    %3125 = vmatprep.subr.mxu0 0.0
    %3126 = vmatpush1.msra.mxu0 0.0
    %3127 = vmatprep.subr.mxu0 0.0
    %3128 = vmatpush1.msra.mxu0 0.0
    %3129 = vmatprep.subr.mxu0 0.0
    %3130 = vmatpush1.msra.mxu0 0.0
    %3131 = vmatprep.subr.mxu0 0.0
    %3132 = vmatpush1.msra.mxu0 0.0
    %3133 = vmatprep.subr.mxu0 0.0
    %3134 = vmatpush1.msra.mxu0 0.0
    %3135 = vmatprep.subr.mxu0 0.0
    %3136 = vmatpush1.msra.mxu0 0.0
    %3137 = vmatprep.mubr.f32.mxu0 0.0
    %3138 = vmatmul.mubr.f32.gmra.mrb[0].mxu0 %v3071
    %v3139 = vpop.f32.mrb[0].mxu0
    %v3140 = vadd.f32 0.0, %v3139
    %v3141 = vpop.f32.mrb[0].mxu0
    %3142 = vdwg.mxu0
    %v3144 = vsel %vm491, %v2995, 0
    %3146 = vmatprep.subr.mxu0 0.0
    %3147 = vmatpush1.msra.mxu0 %v2636
    %3148 = vmatprep.subr.mxu0 0.0
    %3149 = vmatpush1.msra.mxu0 0.0
    %3150 = vmatprep.subr.mxu0 0.0
    %3151 = vmatpush1.msra.mxu0 0.0
    %3152 = vmatprep.subr.mxu0 0.0
    %3153 = vmatpush1.msra.mxu0 0.0
    %3154 = vmatprep.subr.mxu0 0.0
    %3155 = vmatpush1.msra.mxu0 0.0
    %3156 = vmatprep.subr.mxu0 0.0
    %3157 = vmatpush1.msra.mxu0 0.0
    %3158 = vmatprep.subr.mxu0 0.0
    %3159 = vmatpush1.msra.mxu0 0.0
    %3160 = vmatprep.subr.mxu0 0.0
    %3161 = vmatpush1.msra.mxu0 0.0
    %3162 = vmatprep.subr.mxu0 0.0
    %3163 = vmatpush1.msra.mxu0 0.0
    %3164 = vmatprep.subr.mxu0 0.0
    %3165 = vmatpush1.msra.mxu0 0.0
    %3166 = vmatprep.subr.mxu0 0.0
    %3167 = vmatpush1.msra.mxu0 0.0
    %3168 = vmatprep.subr.mxu0 0.0
    %3169 = vmatpush1.msra.mxu0 0.0
    %3170 = vmatprep.subr.mxu0 0.0
    %3171 = vmatpush1.msra.mxu0 0.0
    %3172 = vmatprep.subr.mxu0 0.0
    %3173 = vmatpush1.msra.mxu0 0.0
    %3174 = vmatprep.subr.mxu0 0.0
    %3175 = vmatpush1.msra.mxu0 0.0
    %3176 = vmatprep.subr.mxu0 0.0
    %3177 = vmatpush1.msra.mxu0 0.0
    %3178 = vmatprep.subr.mxu0 0.0
    %3179 = vmatpush1.msra.mxu0 0.0
    %3180 = vmatprep.subr.mxu0 0.0
    %3181 = vmatpush1.msra.mxu0 0.0
    %3182 = vmatprep.subr.mxu0 0.0
    %3183 = vmatpush1.msra.mxu0 0.0
    %3184 = vmatprep.subr.mxu0 0.0
    %3185 = vmatpush1.msra.mxu0 0.0
    %3186 = vmatprep.subr.mxu0 0.0
    %3187 = vmatpush1.msra.mxu0 0.0
    %3188 = vmatprep.subr.mxu0 0.0
    %3189 = vmatpush1.msra.mxu0 0.0
    %3190 = vmatprep.subr.mxu0 0.0
    %3191 = vmatpush1.msra.mxu0 0.0
    %3192 = vmatprep.subr.mxu0 0.0
    %3193 = vmatpush1.msra.mxu0 0.0
    %3194 = vmatprep.subr.mxu0 0.0
    %3195 = vmatpush1.msra.mxu0 0.0
    %3196 = vmatprep.subr.mxu0 0.0
    %3197 = vmatpush1.msra.mxu0 0.0
    %3198 = vmatprep.subr.mxu0 0.0
    %3199 = vmatpush1.msra.mxu0 0.0
    %3200 = vmatprep.subr.mxu0 0.0
    %3201 = vmatpush1.msra.mxu0 0.0
    %3202 = vmatprep.subr.mxu0 0.0
    %3203 = vmatpush1.msra.mxu0 0.0
    %3204 = vmatprep.subr.mxu0 0.0
    %3205 = vmatpush1.msra.mxu0 0.0
    %3206 = vmatprep.subr.mxu0 0.0
    %3207 = vmatpush1.msra.mxu0 0.0
    %3208 = vmatprep.subr.mxu0 0.0
    %3209 = vmatpush1.msra.mxu0 0.0
    %3210 = vmatprep.mubr.f32.mxu0 0.0
    %3211 = vmatmul.mubr.f32.gmra.mrb[0].mxu0 %v3144
    %v3212 = vpop.f32.mrb[0].mxu0
    %v3213 = vadd.f32 0.0, %v3212
    %v3214 = vpop.f32.mrb[0].mxu0
    %3215 = vdwg.mxu0
    %v3217 = vsel %vm491, %v2996, 0
    %3219 = vmatprep.subr.mxu0 0.0
    %3220 = vmatpush1.msra.mxu0 %v2638
    %3221 = vmatprep.subr.mxu0 0.0
    %3222 = vmatpush1.msra.mxu0 0.0
    %3223 = vmatprep.subr.mxu0 0.0
    %3224 = vmatpush1.msra.mxu0 0.0
    %3225 = vmatprep.subr.mxu0 0.0
    %3226 = vmatpush1.msra.mxu0 0.0
    %3227 = vmatprep.subr.mxu0 0.0
    %3228 = vmatpush1.msra.mxu0 0.0
    %3229 = vmatprep.subr.mxu0 0.0
    %3230 = vmatpush1.msra.mxu0 0.0
    %3231 = vmatprep.subr.mxu0 0.0
    %3232 = vmatpush1.msra.mxu0 0.0
    %3233 = vmatprep.subr.mxu0 0.0
    %3234 = vmatpush1.msra.mxu0 0.0
    %3235 = vmatprep.subr.mxu0 0.0
    %3236 = vmatpush1.msra.mxu0 0.0
    %3237 = vmatprep.subr.mxu0 0.0
    %3238 = vmatpush1.msra.mxu0 0.0
    %3239 = vmatprep.subr.mxu0 0.0
    %3240 = vmatpush1.msra.mxu0 0.0
    %3241 = vmatprep.subr.mxu0 0.0
    %3242 = vmatpush1.msra.mxu0 0.0
    %3243 = vmatprep.subr.mxu0 0.0
    %3244 = vmatpush1.msra.mxu0 0.0
    %3245 = vmatprep.subr.mxu0 0.0
    %3246 = vmatpush1.msra.mxu0 0.0
    %3247 = vmatprep.subr.mxu0 0.0
    %3248 = vmatpush1.msra.mxu0 0.0
    %3249 = vmatprep.subr.mxu0 0.0
    %3250 = vmatpush1.msra.mxu0 0.0
    %3251 = vmatprep.subr.mxu0 0.0
    %3252 = vmatpush1.msra.mxu0 0.0
    %3253 = vmatprep.subr.mxu0 0.0
    %3254 = vmatpush1.msra.mxu0 0.0
    %3255 = vmatprep.subr.mxu0 0.0
    %3256 = vmatpush1.msra.mxu0 0.0
    %3257 = vmatprep.subr.mxu0 0.0
    %3258 = vmatpush1.msra.mxu0 0.0
    %3259 = vmatprep.subr.mxu0 0.0
    %3260 = vmatpush1.msra.mxu0 0.0
    %3261 = vmatprep.subr.mxu0 0.0
    %3262 = vmatpush1.msra.mxu0 0.0
    %3263 = vmatprep.subr.mxu0 0.0
    %3264 = vmatpush1.msra.mxu0 0.0
    %3265 = vmatprep.subr.mxu0 0.0
    %3266 = vmatpush1.msra.mxu0 0.0
    %3267 = vmatprep.subr.mxu0 0.0
    %3268 = vmatpush1.msra.mxu0 0.0
    %3269 = vmatprep.subr.mxu0 0.0
    %3270 = vmatpush1.msra.mxu0 0.0
    %3271 = vmatprep.subr.mxu0 0.0
    %3272 = vmatpush1.msra.mxu0 0.0
    %3273 = vmatprep.subr.mxu0 0.0
    %3274 = vmatpush1.msra.mxu0 0.0
    %3275 = vmatprep.subr.mxu0 0.0
    %3276 = vmatpush1.msra.mxu0 0.0
    %3277 = vmatprep.subr.mxu0 0.0
    %3278 = vmatpush1.msra.mxu0 0.0
    %3279 = vmatprep.subr.mxu0 0.0
    %3280 = vmatpush1.msra.mxu0 0.0
    %3281 = vmatprep.subr.mxu0 0.0
    %3282 = vmatpush1.msra.mxu0 0.0
    %3283 = vmatprep.mubr.f32.mxu0 0.0
    %3284 = vmatmul.mubr.f32.gmra.mrb[0].mxu0 %v3217
    %v3285 = vpop.f32.mrb[0].mxu0
    %v3286 = vadd.f32 0.0, %v3285
    %v3287 = vpop.f32.mrb[0].mxu0
    %3288 = vdwg.mxu0
    %3291 = vrot.lane.b32.xlu0 %v3213, 32
    %v3292 = vpop.permute.xlu0 %3291
    %3293 = vrot.lane.b32.xlu0 %v3286, 32
    %v3294 = vpop.permute.xlu0 %3293
    %v3297 = vsel %vm188, %v3067, %v3292
    %v3298 = vsel %vm188, %v3140, %v3294
    %v3299 = vpack.c.bf16 %v3297, %v3297
    %v3300 = vpack.c.bf16 %v3298, %v3298
    %s3301 = scalar_lea.vmem %s4, 32
    %v3302 = vld [vmem:[%s3301] sm:$0xf]
    %v3303 = vld [vmem:[%s3301 + $0x4] sm:$0xf]
    %v3304 = vld [vmem:[%s3301 + $0x8] sm:$0xf]
    %v3305 = vld [vmem:[%s3301 + $0xc] sm:$0xf]
    %v3306 = vld [vmem:[%s3301 + $0x10] sm:$0xf]
    %v3307 = vld [vmem:[%s3301 + $0x14] sm:$0xf]
    %v3308 = vld [vmem:[%s3301 + $0x18] sm:$0xf]
    %v3309 = vld [vmem:[%s3301 + $0x1c] sm:$0xf]
    %v3310 = vld [vmem:[%s5 + $0x1] sm:$0x1]
    %v3311 = vlaneseq
    %v3312 = vshrl.u32 %v3311, 7
    %v3313 = vsub.s32 0, %v3312
    %v3314 = vrot.slane %v3310, %v3313
    %v3317 = vunpack.c.l.b16 %v3299
    %v3318 = vunpack.c.l.b16 %v3300
    %v3319 = vrot.slane %v3318, 7
    %vm3320 = vcmask 1041409
    %v3321 = vsel %vm3320, %v3319, %v3317
    %v3322 = vpack.c.b16 %v3321, %v3321
    %v3331 = vunpack.c.l.b16 %v3302
    %v3332 = vunpack.c.l.b16 %v3303
    %v3333 = vunpack.c.l.b16 %v3304
    %v3334 = vunpack.c.l.b16 %v3305
    %v3335 = vunpack.c.l.b16 %v3306
    %v3336 = vunpack.c.l.b16 %v3307
    %v3337 = vunpack.c.l.b16 %v3308
    %v3338 = vunpack.c.l.b16 %v3309
    %v3339 = vpack.c.b16 %v3332, %v3331
    %v3340 = vpack.c.b16 %v3334, %v3333
    %v3341 = vpack.c.b16 %v3336, %v3335
    %v3342 = vpack.c.b16 %v3338, %v3337
    %v3348 = vsel %vm125, %v3322, 0
    %3350 = vmatprep.subr.bf16.mxu0 0
    %3351 = vmatpush1.bf16.msra.mxu0 %v3339
    %3352 = vmatprep.subr.bf16.mxu0 0
    %3353 = vmatpush1.bf16.msra.mxu0 %v3340
    %3354 = vmatprep.subr.bf16.mxu0 0
    %3355 = vmatpush1.bf16.msra.mxu0 %v3341
    %3356 = vmatprep.subr.bf16.mxu0 0
    %3357 = vmatpush1.bf16.msra.mxu0 %v3342
    %3358 = vmatprep.subr.bf16.mxu0 0
    %3359 = vmatpush1.bf16.msra.mxu0 0
    %3360 = vmatprep.subr.bf16.mxu0 0
    %3361 = vmatpush1.bf16.msra.mxu0 0
    %3362 = vmatprep.subr.bf16.mxu0 0
    %3363 = vmatpush1.bf16.msra.mxu0 0
    %3364 = vmatprep.subr.bf16.mxu0 0
    %3365 = vmatpush1.bf16.msra.mxu0 0
    %3366 = vmatprep.subr.bf16.mxu0 0
    %3367 = vmatpush1.bf16.msra.mxu0 0
    %3368 = vmatprep.subr.bf16.mxu0 0
    %3369 = vmatpush1.bf16.msra.mxu0 0
    %3370 = vmatprep.subr.bf16.mxu0 0
    %3371 = vmatpush1.bf16.msra.mxu0 0
    %3372 = vmatprep.subr.bf16.mxu0 0
    %3373 = vmatpush1.bf16.msra.mxu0 0
    %3374 = vmatprep.subr.bf16.mxu0 0
    %3375 = vmatpush1.bf16.msra.mxu0 0
    %3376 = vmatprep.subr.bf16.mxu0 0
    %3377 = vmatpush1.bf16.msra.mxu0 0
    %3378 = vmatprep.subr.bf16.mxu0 0
    %3379 = vmatpush1.bf16.msra.mxu0 0
    %3380 = vmatprep.subr.bf16.mxu0 0
    %3381 = vmatpush1.bf16.msra.mxu0 0
    %3382 = vmatprep.mubr.bf16.mxu0 0
    %3383 = vmatmul.mubr.bf16.gmra.mrb[0].mxu0 %v3348
    %v3384 = vpop.f32.mrb[0].mxu0
    %v3385 = vadd.f32 %v3314, %v3384
    %v3386 = vpop.f32.mrb[0].mxu0
    %v3387 = vpop.f32.mrb[0].mxu0
    %v3388 = vpop.f32.mrb[0].mxu0
    %3389 = vdwg.mxu0
    %v3391 = vrot.slane %v3385, 1
    %v3392 = vrot.slane %v3385, 2
    %v3395 = vadd.f32 %v2516, %v3391
    %v3396 = vadd.f32 %v2517, %v3392
    %s3397 = scalar_lea.vmem %s16, 4
    %v3398 = vld [vmem:[%s3397] sm:$0x1]
    %s3399 = scalar_lea.vmem %s17, 4
    %v3400 = vld [vmem:[%s3399] sm:$0x1]
    %v3403 = vrot.slane %v3396, 7
    %vm3406 = vcmask 523271
    %v3407 = vsel %vm3406, %v3395, 0.0
    %3408 = vadd.xlane.f32.xlu0 %v3407
    %v3409 = vpop.xlane.xlu0 %3408
    %vm3410 = vcmask 516096
    %v3411 = vsel %vm3410, %v3403, 0.0
    %3412 = vadd.xlane.f32.xlu0 %v3411
    %v3413 = vpop.xlane.xlu0 %3412
    %v3414 = vmul.f32 %v3409, %v930
    %v3415 = vmul.f32 %v3413, %v930
    %v3418 = vrot.slane %v3415, 1
    %v3421 = vsub.f32 %v3395, %v3414
    %v3422 = vsub.f32 %v3396, %v3418
    %v3423 = vmul.f32 %v3421, %v3421
    %v3424 = vmul.f32 %v3422, %v3422
    %v3427 = vrot.slane %v3424, 7
    %v3430 = vsel %vm3406, %v3423, 0.0
    %3431 = vadd.xlane.f32.xlu0 %v3430
    %v3432 = vpop.xlane.xlu0 %3431
    %v3433 = vsel %vm3410, %v3427, 0.0
    %3434 = vadd.xlane.f32.xlu0 %v3433
    %v3435 = vpop.xlane.xlu0 %3434
    %v3436 = vmul.f32 %v3432, %v930
    %v3437 = vmul.f32 %v3435, %v930
    %v3438 = vadd.f32 %v3436, 1e-05
    %v3439 = vadd.f32 %v3437, 1e-05
    %v3440 = vrsqrt.pop %v3438
    %v3441 = vrsqrt.pop %v3439
    %v3444 = vrot.slane %v3441, 1
    %v3447 = vmul.f32 %v3421, %v3440
    %v3448 = vmul.f32 %v3422, %v3444
    %v3449 = vlaneseq
    %v3450 = vshrl.u32 %v3449, 7
    %v3451 = vsub.s32 0, %v3450
    %v3452 = vrot.slane %v3398, %v3451
    %v3453 = vmul.f32 %v3447, %v3452
    %v3454 = vmul.f32 %v3448, %v3452
    %v3455 = vlaneseq
    %v3456 = vshrl.u32 %v3455, 7
    %v3457 = vsub.s32 0, %v3456
    %v3458 = vrot.slane %v3400, %v3457
    %v3459 = vadd.f32 %v3453, %v3458
    %v3460 = vadd.f32 %v3454, %v3458
    %s3461 = scalar_lea.vmem %s8, 32
    %v3462 = vld [vmem:[%s3461] sm:$0xf]
    %v3463 = vld [vmem:[%s3461 + $0x4] sm:$0xf]
    %v3464 = vld [vmem:[%s3461 + $0x8] sm:$0xf]
    %v3465 = vld [vmem:[%s3461 + $0xc] sm:$0xf]
    %v3466 = vld [vmem:[%s3461 + $0x10] sm:$0xf]
    %v3467 = vld [vmem:[%s3461 + $0x14] sm:$0xf]
    %v3468 = vld [vmem:[%s3461 + $0x18] sm:$0xf]
    %v3469 = vld [vmem:[%s3461 + $0x1c] sm:$0xf]
    %v3470 = vld [vmem:[%s9 + $0x1] sm:$0x1]
    %v3471 = vlaneseq
    %v3472 = vshrl.u32 %v3471, 7
    %v3473 = vsub.s32 0, %v3472
    %v3474 = vrot.slane %v3470, %v3473
    %v3483 = vunpack.c.l.b16 %v3462
    %v3484 = vunpack.c.l.b16 %v3463
    %v3485 = vunpack.c.l.b16 %v3464
    %v3486 = vunpack.c.l.b16 %v3465
    %v3487 = vunpack.c.l.b16 %v3466
    %v3488 = vunpack.c.l.b16 %v3467
    %v3489 = vunpack.c.l.b16 %v3468
    %v3490 = vunpack.c.l.b16 %v3469
    %v3491 = vpack.c.b16 %v3484, %v3483
    %v3492 = vpack.c.b16 %v3486, %v3485
    %v3493 = vpack.c.b16 %v3488, %v3487
    %v3494 = vpack.c.b16 %v3490, %v3489
    %3499 = vmatprep.subr.bf16.mxu0 0
    %3500 = vmatpush1.bf16.msra.mxu0 %v3491
    %3501 = vmatprep.subr.bf16.mxu0 0
    %3502 = vmatpush1.bf16.msra.mxu0 %v3492
    %3503 = vmatprep.subr.bf16.mxu0 0
    %3504 = vmatpush1.bf16.msra.mxu0 %v3493
    %3505 = vmatprep.subr.bf16.mxu0 0
    %3506 = vmatpush1.bf16.msra.mxu0 %v3494
    %3507 = vmatprep.subr.bf16.mxu0 0
    %3508 = vmatpush1.bf16.msra.mxu0 0
    %3509 = vmatprep.subr.bf16.mxu0 0
    %3510 = vmatpush1.bf16.msra.mxu0 0
    %3511 = vmatprep.subr.bf16.mxu0 0
    %3512 = vmatpush1.bf16.msra.mxu0 0
    %3513 = vmatprep.subr.bf16.mxu0 0
    %3514 = vmatpush1.bf16.msra.mxu0 0
    %3515 = vmatprep.subr.bf16.mxu0 0
    %3516 = vmatpush1.bf16.msra.mxu0 0
    %3517 = vmatprep.subr.bf16.mxu0 0
    %3518 = vmatpush1.bf16.msra.mxu0 0
    %3519 = vmatprep.subr.bf16.mxu0 0
    %3520 = vmatpush1.bf16.msra.mxu0 0
    %3521 = vmatprep.subr.bf16.mxu0 0
    %3522 = vmatpush1.bf16.msra.mxu0 0
    %3523 = vmatprep.subr.bf16.mxu0 0
    %3524 = vmatpush1.bf16.msra.mxu0 0
    %3525 = vmatprep.subr.bf16.mxu0 0
    %3526 = vmatpush1.bf16.msra.mxu0 0
    %3527 = vmatprep.subr.bf16.mxu0 0
    %3528 = vmatpush1.bf16.msra.mxu0 0
    %3529 = vmatprep.subr.bf16.mxu0 0
    %3530 = vmatpush1.bf16.msra.mxu0 0
    %3531 = vmatprep.mubr.bf16.mxu0 0
    %3532 = vmatmul.mubr.bf16.gmra.mrb[0].mxu0 %v127
    %v3533 = vpop.f32.mrb[0].mxu0
    %v3534 = vadd.f32 %v3474, %v3533
    %v3535 = vpop.f32.mrb[0].mxu0
    %v3536 = vpop.f32.mrb[0].mxu0
    %v3537 = vadd.f32 %v3474, %v3536
    %v3538 = vpop.f32.mrb[0].mxu0
    %3539 = vdwg.mxu0
    %3542 = vrot.lane.b32.xlu0 %v3534, 96
    %v3543 = vpop.permute.xlu0 %3542
    %3544 = vrot.lane.b32.xlu0 %v3537, 96
    %v3545 = vpop.permute.xlu0 %3544
    %v3546 = vpack.c.bf16 %v3459, %v3459
    %v3547 = vpack.c.bf16 %v3460, %v3460
    %s3548 = scalar_lea.vmem %s6, 32
    %v3549 = vld [vmem:[%s3548] sm:$0xf]
    %v3550 = vld [vmem:[%s3548 + $0x4] sm:$0xf]
    %v3551 = vld [vmem:[%s3548 + $0x8] sm:$0xf]
    %v3552 = vld [vmem:[%s3548 + $0xc] sm:$0xf]
    %v3553 = vld [vmem:[%s3548 + $0x10] sm:$0xf]
    %v3554 = vld [vmem:[%s3548 + $0x14] sm:$0xf]
    %v3555 = vld [vmem:[%s3548 + $0x18] sm:$0xf]
    %v3556 = vld [vmem:[%s3548 + $0x1c] sm:$0xf]
    %v3557 = vld [vmem:[%s7 + $0x1] sm:$0x1]
    %v3558 = vlaneseq
    %v3559 = vshrl.u32 %v3558, 7
    %v3560 = vsub.s32 0, %v3559
    %v3561 = vrot.slane %v3557, %v3560
    %v3564 = vunpack.c.l.b16 %v3546
    %v3565 = vunpack.c.l.b16 %v3547
    %v3566 = vrot.slane %v3564, 7
    %v3567 = vrot.slane %v3565, 6
    %v3568 = vsel %vm3320, %v3567, %v3566
    %v3569 = vpack.c.b16 %v3568, %v3568
    %v3578 = vunpack.c.l.b16 %v3549
    %v3579 = vunpack.c.l.b16 %v3550
    %v3580 = vunpack.c.l.b16 %v3551
    %v3581 = vunpack.c.l.b16 %v3552
    %v3582 = vunpack.c.l.b16 %v3553
    %v3583 = vunpack.c.l.b16 %v3554
    %v3584 = vunpack.c.l.b16 %v3555
    %v3585 = vunpack.c.l.b16 %v3556
    %v3586 = vpack.c.b16 %v3579, %v3578
    %v3587 = vpack.c.b16 %v3581, %v3580
    %v3588 = vpack.c.b16 %v3583, %v3582
    %v3589 = vpack.c.b16 %v3585, %v3584
    %v3595 = vsel %vm125, %v3569, 0
    %3597 = vmatprep.subr.bf16.mxu0 0
    %3598 = vmatpush1.bf16.msra.mxu0 %v3586
    %3599 = vmatprep.subr.bf16.mxu0 0
    %3600 = vmatpush1.bf16.msra.mxu0 %v3587
    %3601 = vmatprep.subr.bf16.mxu0 0
    %3602 = vmatpush1.bf16.msra.mxu0 %v3588
    %3603 = vmatprep.subr.bf16.mxu0 0
    %3604 = vmatpush1.bf16.msra.mxu0 %v3589
    %3605 = vmatprep.subr.bf16.mxu0 0
    %3606 = vmatpush1.bf16.msra.mxu0 0
    %3607 = vmatprep.subr.bf16.mxu0 0
    %3608 = vmatpush1.bf16.msra.mxu0 0
    %3609 = vmatprep.subr.bf16.mxu0 0
    %3610 = vmatpush1.bf16.msra.mxu0 0
    %3611 = vmatprep.subr.bf16.mxu0 0
    %3612 = vmatpush1.bf16.msra.mxu0 0
    %3613 = vmatprep.subr.bf16.mxu0 0
    %3614 = vmatpush1.bf16.msra.mxu0 0
    %3615 = vmatprep.subr.bf16.mxu0 0
    %3616 = vmatpush1.bf16.msra.mxu0 0
    %3617 = vmatprep.subr.bf16.mxu0 0
    %3618 = vmatpush1.bf16.msra.mxu0 0
    %3619 = vmatprep.subr.bf16.mxu0 0
    %3620 = vmatpush1.bf16.msra.mxu0 0
    %3621 = vmatprep.subr.bf16.mxu0 0
    %3622 = vmatpush1.bf16.msra.mxu0 0
    %3623 = vmatprep.subr.bf16.mxu0 0
    %3624 = vmatpush1.bf16.msra.mxu0 0
    %3625 = vmatprep.subr.bf16.mxu0 0
    %3626 = vmatpush1.bf16.msra.mxu0 0
    %3627 = vmatprep.subr.bf16.mxu0 0
    %3628 = vmatpush1.bf16.msra.mxu0 0
    %3629 = vmatprep.mubr.bf16.mxu0 0
    %3630 = vmatmul.mubr.bf16.gmra.mrb[0].mxu0 %v3595
    %v3631 = vpop.f32.mrb[0].mxu0
    %v3632 = vadd.f32 %v3561, %v3631
    %v3633 = vpop.f32.mrb[0].mxu0
    %v3634 = vpop.f32.mrb[0].mxu0
    %v3635 = vpop.f32.mrb[0].mxu0
    %3636 = vdwg.mxu0
    %v3639 = vunpack.c.l.s4 1966171168
    %v3640 = vunpack.c.0.s8 %v3639
    %v3641 = vlaneseq
    %v3642 = vshrl.u32 %v3641, 7
    %v3643 = vsub.s32 %v3640, %v3642
    %v3644 = vrot.slane %v3632, %v3643
    %v3645 = vcombine.high %v3644, %v3644
    %v3647 = vunpack.c.l.s4 1966171168
    %v3648 = vunpack.c.0.s8 %v3647
    %v3649 = vlaneseq
    %v3650 = vshrl.u32 %v3649, 7
    %v3651 = vsub.s32 %v3648, %v3650
    %v3652 = vrot.slane %v3644, %v3651
    %v3654 = vunpack.c.l.s4 1966171168
    %v3655 = vunpack.c.0.s8 %v3654
    %v3656 = vlaneseq
    %v3657 = vshrl.u32 %v3656, 7
    %v3658 = vsub.s32 %v3655, %v3657
    %v3659 = vrot.slane %v3645, %v3658
    %3660 = vrot.lane.b32.xlu0 %v3652, 96
    %v3661 = vpop.permute.xlu0 %3660
    %3662 = vrot.lane.b32.xlu0 %v3659, 96
    %v3663 = vpop.permute.xlu0 %3662
    %v3664 = vsel %vm188, %v3652, 0
    %v3666 = vsel %vm188, %v3534, 0
    %3668 = vmatprep.subr.mxu0 0.0
    %3669 = vmatpush1.xpose.msra.mxu0 %v3666
    %3670 = vmatprep.subr.mxu0 0.0
    %3671 = vmatpush1.xpose.msra.mxu0 0.0
    %3672 = vmatprep.subr.mxu0 0.0
    %3673 = vmatpush1.xpose.msra.mxu0 0.0
    %3674 = vmatprep.subr.mxu0 0.0
    %3675 = vmatpush1.xpose.msra.mxu0 0.0
    %3676 = vmatprep.subr.mxu0 0.0
    %3677 = vmatpush1.xpose.msra.mxu0 0.0
    %3678 = vmatprep.subr.mxu0 0.0
    %3679 = vmatpush1.xpose.msra.mxu0 0.0
    %3680 = vmatprep.subr.mxu0 0.0
    %3681 = vmatpush1.xpose.msra.mxu0 0.0
    %3682 = vmatprep.subr.mxu0 0.0
    %3683 = vmatpush1.xpose.msra.mxu0 0.0
    %3684 = vmatprep.subr.mxu0 0.0
    %3685 = vmatpush1.xpose.msra.mxu0 0.0
    %3686 = vmatprep.subr.mxu0 0.0
    %3687 = vmatpush1.xpose.msra.mxu0 0.0
    %3688 = vmatprep.subr.mxu0 0.0
    %3689 = vmatpush1.xpose.msra.mxu0 0.0
    %3690 = vmatprep.subr.mxu0 0.0
    %3691 = vmatpush1.xpose.msra.mxu0 0.0
    %3692 = vmatprep.subr.mxu0 0.0
    %3693 = vmatpush1.xpose.msra.mxu0 0.0
    %3694 = vmatprep.subr.mxu0 0.0
    %3695 = vmatpush1.xpose.msra.mxu0 0.0
    %3696 = vmatprep.subr.mxu0 0.0
    %3697 = vmatpush1.xpose.msra.mxu0 0.0
    %3698 = vmatprep.subr.mxu0 0.0
    %3699 = vmatpush1.xpose.msra.mxu0 0.0
    %3700 = vmatprep.subr.mxu0 0.0
    %3701 = vmatpush1.xpose.msra.mxu0 0.0
    %3702 = vmatprep.subr.mxu0 0.0
    %3703 = vmatpush1.xpose.msra.mxu0 0.0
    %3704 = vmatprep.subr.mxu0 0.0
    %3705 = vmatpush1.xpose.msra.mxu0 0.0
    %3706 = vmatprep.subr.mxu0 0.0
    %3707 = vmatpush1.xpose.msra.mxu0 0.0
    %3708 = vmatprep.subr.mxu0 0.0
    %3709 = vmatpush1.xpose.msra.mxu0 0.0
    %3710 = vmatprep.subr.mxu0 0.0
    %3711 = vmatpush1.xpose.msra.mxu0 0.0
    %3712 = vmatprep.subr.mxu0 0.0
    %3713 = vmatpush1.xpose.msra.mxu0 0.0
    %3714 = vmatprep.subr.mxu0 0.0
    %3715 = vmatpush1.xpose.msra.mxu0 0.0
    %3716 = vmatprep.subr.mxu0 0.0
    %3717 = vmatpush1.xpose.msra.mxu0 0.0
    %3718 = vmatprep.subr.mxu0 0.0
    %3719 = vmatpush1.xpose.msra.mxu0 0.0
    %3720 = vmatprep.subr.mxu0 0.0
    %3721 = vmatpush1.xpose.msra.mxu0 0.0
    %3722 = vmatprep.subr.mxu0 0.0
    %3723 = vmatpush1.xpose.msra.mxu0 0.0
    %3724 = vmatprep.subr.mxu0 0.0
    %3725 = vmatpush1.xpose.msra.mxu0 0.0
    %3726 = vmatprep.subr.mxu0 0.0
    %3727 = vmatpush1.xpose.msra.mxu0 0.0
    %3728 = vmatprep.subr.mxu0 0.0
    %3729 = vmatpush1.xpose.msra.mxu0 0.0
    %3730 = vmatprep.subr.mxu0 0.0
    %3731 = vmatpush1.xpose.msra.mxu0 0.0
    %3732 = vmatprep.mubr.f32.mxu0 0.0
    %3733 = vmatmul.mubr.f32.gmra.mrb[0].mxu0 %v3664
    %v3734 = vpop.f32.mrb[0].mxu0
    %v3735 = vadd.f32 0.0, %v3734
    %v3736 = vpop.f32.mrb[0].mxu0
    %3737 = vdwg.mxu0
    %v3738 = vsel %vm188, %v3659, 0
    %v3740 = vsel %vm188, %v3537, 0
    %3742 = vmatprep.subr.mxu0 0.0
    %3743 = vmatpush1.xpose.msra.mxu0 %v3740
    %3744 = vmatprep.subr.mxu0 0.0
    %3745 = vmatpush1.xpose.msra.mxu0 0.0
    %3746 = vmatprep.subr.mxu0 0.0
    %3747 = vmatpush1.xpose.msra.mxu0 0.0
    %3748 = vmatprep.subr.mxu0 0.0
    %3749 = vmatpush1.xpose.msra.mxu0 0.0
    %3750 = vmatprep.subr.mxu0 0.0
    %3751 = vmatpush1.xpose.msra.mxu0 0.0
    %3752 = vmatprep.subr.mxu0 0.0
    %3753 = vmatpush1.xpose.msra.mxu0 0.0
    %3754 = vmatprep.subr.mxu0 0.0
    %3755 = vmatpush1.xpose.msra.mxu0 0.0
    %3756 = vmatprep.subr.mxu0 0.0
    %3757 = vmatpush1.xpose.msra.mxu0 0.0
    %3758 = vmatprep.subr.mxu0 0.0
    %3759 = vmatpush1.xpose.msra.mxu0 0.0
    %3760 = vmatprep.subr.mxu0 0.0
    %3761 = vmatpush1.xpose.msra.mxu0 0.0
    %3762 = vmatprep.subr.mxu0 0.0
    %3763 = vmatpush1.xpose.msra.mxu0 0.0
    %3764 = vmatprep.subr.mxu0 0.0
    %3765 = vmatpush1.xpose.msra.mxu0 0.0
    %3766 = vmatprep.subr.mxu0 0.0
    %3767 = vmatpush1.xpose.msra.mxu0 0.0
    %3768 = vmatprep.subr.mxu0 0.0
    %3769 = vmatpush1.xpose.msra.mxu0 0.0
    %3770 = vmatprep.subr.mxu0 0.0
    %3771 = vmatpush1.xpose.msra.mxu0 0.0
    %3772 = vmatprep.subr.mxu0 0.0
    %3773 = vmatpush1.xpose.msra.mxu0 0.0
    %3774 = vmatprep.subr.mxu0 0.0
    %3775 = vmatpush1.xpose.msra.mxu0 0.0
    %3776 = vmatprep.subr.mxu0 0.0
    %3777 = vmatpush1.xpose.msra.mxu0 0.0
    %3778 = vmatprep.subr.mxu0 0.0
    %3779 = vmatpush1.xpose.msra.mxu0 0.0
    %3780 = vmatprep.subr.mxu0 0.0
    %3781 = vmatpush1.xpose.msra.mxu0 0.0
    %3782 = vmatprep.subr.mxu0 0.0
    %3783 = vmatpush1.xpose.msra.mxu0 0.0
    %3784 = vmatprep.subr.mxu0 0.0
    %3785 = vmatpush1.xpose.msra.mxu0 0.0
    %3786 = vmatprep.subr.mxu0 0.0
    %3787 = vmatpush1.xpose.msra.mxu0 0.0
    %3788 = vmatprep.subr.mxu0 0.0
    %3789 = vmatpush1.xpose.msra.mxu0 0.0
    %3790 = vmatprep.subr.mxu0 0.0
    %3791 = vmatpush1.xpose.msra.mxu0 0.0
    %3792 = vmatprep.subr.mxu0 0.0
    %3793 = vmatpush1.xpose.msra.mxu0 0.0
    %3794 = vmatprep.subr.mxu0 0.0
    %3795 = vmatpush1.xpose.msra.mxu0 0.0
    %3796 = vmatprep.subr.mxu0 0.0
    %3797 = vmatpush1.xpose.msra.mxu0 0.0
    %3798 = vmatprep.subr.mxu0 0.0
    %3799 = vmatpush1.xpose.msra.mxu0 0.0
    %3800 = vmatprep.subr.mxu0 0.0
    %3801 = vmatpush1.xpose.msra.mxu0 0.0
    %3802 = vmatprep.subr.mxu0 0.0
    %3803 = vmatpush1.xpose.msra.mxu0 0.0
    %3804 = vmatprep.subr.mxu0 0.0
    %3805 = vmatpush1.xpose.msra.mxu0 0.0
    %3806 = vmatprep.mubr.f32.mxu0 0.0
    %3807 = vmatmul.mubr.f32.gmra.mrb[0].mxu0 %v3738
    %v3808 = vpop.f32.mrb[0].mxu0
    %v3809 = vadd.f32 0.0, %v3808
    %v3810 = vpop.f32.mrb[0].mxu0
    %3811 = vdwg.mxu0
    %v3812 = vsel %vm188, %v3661, 0
    %v3814 = vsel %vm188, %v3543, 0
    %3816 = vmatprep.subr.mxu0 0.0
    %3817 = vmatpush1.xpose.msra.mxu0 %v3814
    %3818 = vmatprep.subr.mxu0 0.0
    %3819 = vmatpush1.xpose.msra.mxu0 0.0
    %3820 = vmatprep.subr.mxu0 0.0
    %3821 = vmatpush1.xpose.msra.mxu0 0.0
    %3822 = vmatprep.subr.mxu0 0.0
    %3823 = vmatpush1.xpose.msra.mxu0 0.0
    %3824 = vmatprep.subr.mxu0 0.0
    %3825 = vmatpush1.xpose.msra.mxu0 0.0
    %3826 = vmatprep.subr.mxu0 0.0
    %3827 = vmatpush1.xpose.msra.mxu0 0.0
    %3828 = vmatprep.subr.mxu0 0.0
    %3829 = vmatpush1.xpose.msra.mxu0 0.0
    %3830 = vmatprep.subr.mxu0 0.0
    %3831 = vmatpush1.xpose.msra.mxu0 0.0
    %3832 = vmatprep.subr.mxu0 0.0
    %3833 = vmatpush1.xpose.msra.mxu0 0.0
    %3834 = vmatprep.subr.mxu0 0.0
    %3835 = vmatpush1.xpose.msra.mxu0 0.0
    %3836 = vmatprep.subr.mxu0 0.0
    %3837 = vmatpush1.xpose.msra.mxu0 0.0
    %3838 = vmatprep.subr.mxu0 0.0
    %3839 = vmatpush1.xpose.msra.mxu0 0.0
    %3840 = vmatprep.subr.mxu0 0.0
    %3841 = vmatpush1.xpose.msra.mxu0 0.0
    %3842 = vmatprep.subr.mxu0 0.0
    %3843 = vmatpush1.xpose.msra.mxu0 0.0
    %3844 = vmatprep.subr.mxu0 0.0
    %3845 = vmatpush1.xpose.msra.mxu0 0.0
    %3846 = vmatprep.subr.mxu0 0.0
    %3847 = vmatpush1.xpose.msra.mxu0 0.0
    %3848 = vmatprep.subr.mxu0 0.0
    %3849 = vmatpush1.xpose.msra.mxu0 0.0
    %3850 = vmatprep.subr.mxu0 0.0
    %3851 = vmatpush1.xpose.msra.mxu0 0.0
    %3852 = vmatprep.subr.mxu0 0.0
    %3853 = vmatpush1.xpose.msra.mxu0 0.0
    %3854 = vmatprep.subr.mxu0 0.0
    %3855 = vmatpush1.xpose.msra.mxu0 0.0
    %3856 = vmatprep.subr.mxu0 0.0
    %3857 = vmatpush1.xpose.msra.mxu0 0.0
    %3858 = vmatprep.subr.mxu0 0.0
    %3859 = vmatpush1.xpose.msra.mxu0 0.0
    %3860 = vmatprep.subr.mxu0 0.0
    %3861 = vmatpush1.xpose.msra.mxu0 0.0
    %3862 = vmatprep.subr.mxu0 0.0
    %3863 = vmatpush1.xpose.msra.mxu0 0.0
    %3864 = vmatprep.subr.mxu0 0.0
    %3865 = vmatpush1.xpose.msra.mxu0 0.0
    %3866 = vmatprep.subr.mxu0 0.0
    %3867 = vmatpush1.xpose.msra.mxu0 0.0
    %3868 = vmatprep.subr.mxu0 0.0
    %3869 = vmatpush1.xpose.msra.mxu0 0.0
    %3870 = vmatprep.subr.mxu0 0.0
    %3871 = vmatpush1.xpose.msra.mxu0 0.0
    %3872 = vmatprep.subr.mxu0 0.0
    %3873 = vmatpush1.xpose.msra.mxu0 0.0
    %3874 = vmatprep.subr.mxu0 0.0
    %3875 = vmatpush1.xpose.msra.mxu0 0.0
    %3876 = vmatprep.subr.mxu0 0.0
    %3877 = vmatpush1.xpose.msra.mxu0 0.0
    %3878 = vmatprep.subr.mxu0 0.0
    %3879 = vmatpush1.xpose.msra.mxu0 0.0
    %3880 = vmatprep.mubr.f32.mxu0 0.0
    %3881 = vmatmul.mubr.f32.gmra.mrb[0].mxu0 %v3812
    %v3882 = vpop.f32.mrb[0].mxu0
    %v3883 = vadd.f32 0.0, %v3882
    %v3884 = vpop.f32.mrb[0].mxu0
    %3885 = vdwg.mxu0
    %v3886 = vsel %vm188, %v3663, 0
    %v3888 = vsel %vm188, %v3545, 0
    %3890 = vmatprep.subr.mxu0 0.0
    %3891 = vmatpush1.xpose.msra.mxu0 %v3888
    %3892 = vmatprep.subr.mxu0 0.0
    %3893 = vmatpush1.xpose.msra.mxu0 0.0
    %3894 = vmatprep.subr.mxu0 0.0
    %3895 = vmatpush1.xpose.msra.mxu0 0.0
    %3896 = vmatprep.subr.mxu0 0.0
    %3897 = vmatpush1.xpose.msra.mxu0 0.0
    %3898 = vmatprep.subr.mxu0 0.0
    %3899 = vmatpush1.xpose.msra.mxu0 0.0
    %3900 = vmatprep.subr.mxu0 0.0
    %3901 = vmatpush1.xpose.msra.mxu0 0.0
    %3902 = vmatprep.subr.mxu0 0.0
    %3903 = vmatpush1.xpose.msra.mxu0 0.0
    %3904 = vmatprep.subr.mxu0 0.0
    %3905 = vmatpush1.xpose.msra.mxu0 0.0
    %3906 = vmatprep.subr.mxu0 0.0
    %3907 = vmatpush1.xpose.msra.mxu0 0.0
    %3908 = vmatprep.subr.mxu0 0.0
    %3909 = vmatpush1.xpose.msra.mxu0 0.0
    %3910 = vmatprep.subr.mxu0 0.0
    %3911 = vmatpush1.xpose.msra.mxu0 0.0
    %3912 = vmatprep.subr.mxu0 0.0
    %3913 = vmatpush1.xpose.msra.mxu0 0.0
    %3914 = vmatprep.subr.mxu0 0.0
    %3915 = vmatpush1.xpose.msra.mxu0 0.0
    %3916 = vmatprep.subr.mxu0 0.0
    %3917 = vmatpush1.xpose.msra.mxu0 0.0
    %3918 = vmatprep.subr.mxu0 0.0
    %3919 = vmatpush1.xpose.msra.mxu0 0.0
    %3920 = vmatprep.subr.mxu0 0.0
    %3921 = vmatpush1.xpose.msra.mxu0 0.0
    %3922 = vmatprep.subr.mxu0 0.0
    %3923 = vmatpush1.xpose.msra.mxu0 0.0
    %3924 = vmatprep.subr.mxu0 0.0
    %3925 = vmatpush1.xpose.msra.mxu0 0.0
    %3926 = vmatprep.subr.mxu0 0.0
    %3927 = vmatpush1.xpose.msra.mxu0 0.0
    %3928 = vmatprep.subr.mxu0 0.0
    %3929 = vmatpush1.xpose.msra.mxu0 0.0
    %3930 = vmatprep.subr.mxu0 0.0
    %3931 = vmatpush1.xpose.msra.mxu0 0.0
    %3932 = vmatprep.subr.mxu0 0.0
    %3933 = vmatpush1.xpose.msra.mxu0 0.0
    %3934 = vmatprep.subr.mxu0 0.0
    %3935 = vmatpush1.xpose.msra.mxu0 0.0
    %3936 = vmatprep.subr.mxu0 0.0
    %3937 = vmatpush1.xpose.msra.mxu0 0.0
    %3938 = vmatprep.subr.mxu0 0.0
    %3939 = vmatpush1.xpose.msra.mxu0 0.0
    %3940 = vmatprep.subr.mxu0 0.0
    %3941 = vmatpush1.xpose.msra.mxu0 0.0
    %3942 = vmatprep.subr.mxu0 0.0
    %3943 = vmatpush1.xpose.msra.mxu0 0.0
    %3944 = vmatprep.subr.mxu0 0.0
    %3945 = vmatpush1.xpose.msra.mxu0 0.0
    %3946 = vmatprep.subr.mxu0 0.0
    %3947 = vmatpush1.xpose.msra.mxu0 0.0
    %3948 = vmatprep.subr.mxu0 0.0
    %3949 = vmatpush1.xpose.msra.mxu0 0.0
    %3950 = vmatprep.subr.mxu0 0.0
    %3951 = vmatpush1.xpose.msra.mxu0 0.0
    %3952 = vmatprep.subr.mxu0 0.0
    %3953 = vmatpush1.xpose.msra.mxu0 0.0
    %3954 = vmatprep.mubr.f32.mxu0 0.0
    %3955 = vmatmul.mubr.f32.gmra.mrb[0].mxu0 %v3886
    %v3956 = vpop.f32.mrb[0].mxu0
    %v3957 = vadd.f32 0.0, %v3956
    %v3958 = vpop.f32.mrb[0].mxu0
    %3959 = vdwg.mxu0
    %v3960 = vsel %vm2952, %v3735, -inf
    %3961 = vmax.xlane.f32.xlu0 %v3960
    %v3962 = vpop.xlane.xlu0 %3961
    %v3963 = vsel %vm2952, %v3809, -inf
    %3964 = vmax.xlane.f32.xlu0 %v3963
    %v3965 = vpop.xlane.xlu0 %3964
    %v3966 = vsel %vm2952, %v3883, -inf
    %3967 = vmax.xlane.f32.xlu0 %v3966
    %v3968 = vpop.xlane.xlu0 %3967
    %v3969 = vsel %vm2952, %v3957, -inf
    %3970 = vmax.xlane.f32.xlu0 %v3969
    %v3971 = vpop.xlane.xlu0 %3970
    %v3972 = vsub.f32 %v3735, %v3962
    %v3973 = vsub.f32 %v3809, %v3965
    %v3974 = vsub.f32 %v3883, %v3968
    %v3975 = vsub.f32 %v3957, %v3971
    %v3976 = vmul.f32 %v3972, 1.442695
    %v3977 = vpow.pop %v3976
    %v3978 = vmul.f32 %v3973, 1.442695
    %v3979 = vpow.pop %v3978
    %v3980 = vmul.f32 %v3974, 1.442695
    %v3981 = vpow.pop %v3980
    %v3982 = vmul.f32 %v3975, 1.442695
    %v3983 = vpow.pop %v3982
    %v3984 = vsel %vm2952, %v3977, 0.0
    %3985 = vadd.xlane.f32.xlu0 %v3984
    %v3986 = vpop.xlane.xlu0 %3985
    %v3987 = vsel %vm2952, %v3979, 0.0
    %3988 = vadd.xlane.f32.xlu0 %v3987
    %v3989 = vpop.xlane.xlu0 %3988
    %v3990 = vsel %vm2952, %v3981, 0.0
    %3991 = vadd.xlane.f32.xlu0 %v3990
    %v3992 = vpop.xlane.xlu0 %3991
    %v3993 = vsel %vm2952, %v3983, 0.0
    %3994 = vadd.xlane.f32.xlu0 %v3993
    %v3995 = vpop.xlane.xlu0 %3994
    %v3996 = vrcp.pop %v3986
    %v3997 = vrcp.pop %v3989
    %v3998 = vrcp.pop %v3992
    %v3999 = vrcp.pop %v3995
    %v4000 = vmul.f32 %v3977, %v3996
    %v4001 = vmul.f32 %v3979, %v3997
    %v4002 = vmul.f32 %v3981, %v3998
    %v4003 = vmul.f32 %v3983, %v3999
    %4004 = vrot.lane.b32.xlu0 %v3534, 64
    %v4005 = vpop.permute.xlu0 %4004
    %v4008 = vsel %vm491, %v4000, 0
    %4010 = vmatprep.subr.mxu0 0.0
    %4011 = vmatpush1.msra.mxu0 %v4005
    %4012 = vmatprep.subr.mxu0 0.0
    %4013 = vmatpush1.msra.mxu0 0.0
    %4014 = vmatprep.subr.mxu0 0.0
    %4015 = vmatpush1.msra.mxu0 0.0
    %4016 = vmatprep.subr.mxu0 0.0
    %4017 = vmatpush1.msra.mxu0 0.0
    %4018 = vmatprep.subr.mxu0 0.0
    %4019 = vmatpush1.msra.mxu0 0.0
    %4020 = vmatprep.subr.mxu0 0.0
    %4021 = vmatpush1.msra.mxu0 0.0
    %4022 = vmatprep.subr.mxu0 0.0
    %4023 = vmatpush1.msra.mxu0 0.0
    %4024 = vmatprep.subr.mxu0 0.0
    %4025 = vmatpush1.msra.mxu0 0.0
    %4026 = vmatprep.subr.mxu0 0.0
    %4027 = vmatpush1.msra.mxu0 0.0
    %4028 = vmatprep.subr.mxu0 0.0
    %4029 = vmatpush1.msra.mxu0 0.0
    %4030 = vmatprep.subr.mxu0 0.0
    %4031 = vmatpush1.msra.mxu0 0.0
    %4032 = vmatprep.subr.mxu0 0.0
    %4033 = vmatpush1.msra.mxu0 0.0
    %4034 = vmatprep.subr.mxu0 0.0
    %4035 = vmatpush1.msra.mxu0 0.0
    %4036 = vmatprep.subr.mxu0 0.0
    %4037 = vmatpush1.msra.mxu0 0.0
    %4038 = vmatprep.subr.mxu0 0.0
    %4039 = vmatpush1.msra.mxu0 0.0
    %4040 = vmatprep.subr.mxu0 0.0
    %4041 = vmatpush1.msra.mxu0 0.0
    %4042 = vmatprep.subr.mxu0 0.0
    %4043 = vmatpush1.msra.mxu0 0.0
    %4044 = vmatprep.subr.mxu0 0.0
    %4045 = vmatpush1.msra.mxu0 0.0
    %4046 = vmatprep.subr.mxu0 0.0
    %4047 = vmatpush1.msra.mxu0 0.0
    %4048 = vmatprep.subr.mxu0 0.0
    %4049 = vmatpush1.msra.mxu0 0.0
    %4050 = vmatprep.subr.mxu0 0.0
    %4051 = vmatpush1.msra.mxu0 0.0
    %4052 = vmatprep.subr.mxu0 0.0
    %4053 = vmatpush1.msra.mxu0 0.0
    %4054 = vmatprep.subr.mxu0 0.0
    %4055 = vmatpush1.msra.mxu0 0.0
    %4056 = vmatprep.subr.mxu0 0.0
    %4057 = vmatpush1.msra.mxu0 0.0
    %4058 = vmatprep.subr.mxu0 0.0
    %4059 = vmatpush1.msra.mxu0 0.0
    %4060 = vmatprep.subr.mxu0 0.0
    %4061 = vmatpush1.msra.mxu0 0.0
    %4062 = vmatprep.subr.mxu0 0.0
    %4063 = vmatpush1.msra.mxu0 0.0
    %4064 = vmatprep.subr.mxu0 0.0
    %4065 = vmatpush1.msra.mxu0 0.0
    %4066 = vmatprep.subr.mxu0 0.0
    %4067 = vmatpush1.msra.mxu0 0.0
    %4068 = vmatprep.subr.mxu0 0.0
    %4069 = vmatpush1.msra.mxu0 0.0
    %4070 = vmatprep.subr.mxu0 0.0
    %4071 = vmatpush1.msra.mxu0 0.0
    %4072 = vmatprep.subr.mxu0 0.0
    %4073 = vmatpush1.msra.mxu0 0.0
    %4074 = vmatprep.mubr.f32.mxu0 0.0
    %4075 = vmatmul.mubr.f32.gmra.mrb[0].mxu0 %v4008
    %v4076 = vpop.f32.mrb[0].mxu0
    %v4077 = vadd.f32 0.0, %v4076
    %v4078 = vpop.f32.mrb[0].mxu0
    %4079 = vdwg.mxu0
    %4080 = vrot.lane.b32.xlu0 %v3537, 64
    %v4081 = vpop.permute.xlu0 %4080
    %v4084 = vsel %vm491, %v4001, 0
    %4086 = vmatprep.subr.mxu0 0.0
    %4087 = vmatpush1.msra.mxu0 %v4081
    %4088 = vmatprep.subr.mxu0 0.0
    %4089 = vmatpush1.msra.mxu0 0.0
    %4090 = vmatprep.subr.mxu0 0.0
    %4091 = vmatpush1.msra.mxu0 0.0
    %4092 = vmatprep.subr.mxu0 0.0
    %4093 = vmatpush1.msra.mxu0 0.0
    %4094 = vmatprep.subr.mxu0 0.0
    %4095 = vmatpush1.msra.mxu0 0.0
    %4096 = vmatprep.subr.mxu0 0.0
    %4097 = vmatpush1.msra.mxu0 0.0
    %4098 = vmatprep.subr.mxu0 0.0
    %4099 = vmatpush1.msra.mxu0 0.0
    %4100 = vmatprep.subr.mxu0 0.0
    %4101 = vmatpush1.msra.mxu0 0.0
    %4102 = vmatprep.subr.mxu0 0.0
    %4103 = vmatpush1.msra.mxu0 0.0
    %4104 = vmatprep.subr.mxu0 0.0
    %4105 = vmatpush1.msra.mxu0 0.0
    %4106 = vmatprep.subr.mxu0 0.0
    %4107 = vmatpush1.msra.mxu0 0.0
    %4108 = vmatprep.subr.mxu0 0.0
    %4109 = vmatpush1.msra.mxu0 0.0
    %4110 = vmatprep.subr.mxu0 0.0
    %4111 = vmatpush1.msra.mxu0 0.0
    %4112 = vmatprep.subr.mxu0 0.0
    %4113 = vmatpush1.msra.mxu0 0.0
    %4114 = vmatprep.subr.mxu0 0.0
    %4115 = vmatpush1.msra.mxu0 0.0
    %4116 = vmatprep.subr.mxu0 0.0
    %4117 = vmatpush1.msra.mxu0 0.0
    %4118 = vmatprep.subr.mxu0 0.0
    %4119 = vmatpush1.msra.mxu0 0.0
    %4120 = vmatprep.subr.mxu0 0.0
    %4121 = vmatpush1.msra.mxu0 0.0
    %4122 = vmatprep.subr.mxu0 0.0
    %4123 = vmatpush1.msra.mxu0 0.0
    %4124 = vmatprep.subr.mxu0 0.0
    %4125 = vmatpush1.msra.mxu0 0.0
    %4126 = vmatprep.subr.mxu0 0.0
    %4127 = vmatpush1.msra.mxu0 0.0
    %4128 = vmatprep.subr.mxu0 0.0
    %4129 = vmatpush1.msra.mxu0 0.0
    %4130 = vmatprep.subr.mxu0 0.0
    %4131 = vmatpush1.msra.mxu0 0.0
    %4132 = vmatprep.subr.mxu0 0.0
    %4133 = vmatpush1.msra.mxu0 0.0
    %4134 = vmatprep.subr.mxu0 0.0
    %4135 = vmatpush1.msra.mxu0 0.0
    %4136 = vmatprep.subr.mxu0 0.0
    %4137 = vmatpush1.msra.mxu0 0.0
    %4138 = vmatprep.subr.mxu0 0.0
    %4139 = vmatpush1.msra.mxu0 0.0
    %4140 = vmatprep.subr.mxu0 0.0
    %4141 = vmatpush1.msra.mxu0 0.0
    %4142 = vmatprep.subr.mxu0 0.0
    %4143 = vmatpush1.msra.mxu0 0.0
    %4144 = vmatprep.subr.mxu0 0.0
    %4145 = vmatpush1.msra.mxu0 0.0
    %4146 = vmatprep.subr.mxu0 0.0
    %4147 = vmatpush1.msra.mxu0 0.0
    %4148 = vmatprep.subr.mxu0 0.0
    %4149 = vmatpush1.msra.mxu0 0.0
    %4150 = vmatprep.mubr.f32.mxu0 0.0
    %4151 = vmatmul.mubr.f32.gmra.mrb[0].mxu0 %v4084
    %v4152 = vpop.f32.mrb[0].mxu0
    %v4153 = vadd.f32 0.0, %v4152
    %v4154 = vpop.f32.mrb[0].mxu0
    %4155 = vdwg.mxu0
    %4156 = vrot.lane.b32.xlu0 %v3543, 64
    %v4157 = vpop.permute.xlu0 %4156
    %v4160 = vsel %vm491, %v4002, 0
    %4162 = vmatprep.subr.mxu0 0.0
    %4163 = vmatpush1.msra.mxu0 %v4157
    %4164 = vmatprep.subr.mxu0 0.0
    %4165 = vmatpush1.msra.mxu0 0.0
    %4166 = vmatprep.subr.mxu0 0.0
    %4167 = vmatpush1.msra.mxu0 0.0
    %4168 = vmatprep.subr.mxu0 0.0
    %4169 = vmatpush1.msra.mxu0 0.0
    %4170 = vmatprep.subr.mxu0 0.0
    %4171 = vmatpush1.msra.mxu0 0.0
    %4172 = vmatprep.subr.mxu0 0.0
    %4173 = vmatpush1.msra.mxu0 0.0
    %4174 = vmatprep.subr.mxu0 0.0
    %4175 = vmatpush1.msra.mxu0 0.0
    %4176 = vmatprep.subr.mxu0 0.0
    %4177 = vmatpush1.msra.mxu0 0.0
    %4178 = vmatprep.subr.mxu0 0.0
    %4179 = vmatpush1.msra.mxu0 0.0
    %4180 = vmatprep.subr.mxu0 0.0
    %4181 = vmatpush1.msra.mxu0 0.0
    %4182 = vmatprep.subr.mxu0 0.0
    %4183 = vmatpush1.msra.mxu0 0.0
    %4184 = vmatprep.subr.mxu0 0.0
    %4185 = vmatpush1.msra.mxu0 0.0
    %4186 = vmatprep.subr.mxu0 0.0
    %4187 = vmatpush1.msra.mxu0 0.0
    %4188 = vmatprep.subr.mxu0 0.0
    %4189 = vmatpush1.msra.mxu0 0.0
    %4190 = vmatprep.subr.mxu0 0.0
    %4191 = vmatpush1.msra.mxu0 0.0
    %4192 = vmatprep.subr.mxu0 0.0
    %4193 = vmatpush1.msra.mxu0 0.0
    %4194 = vmatprep.subr.mxu0 0.0
    %4195 = vmatpush1.msra.mxu0 0.0
    %4196 = vmatprep.subr.mxu0 0.0
    %4197 = vmatpush1.msra.mxu0 0.0
    %4198 = vmatprep.subr.mxu0 0.0
    %4199 = vmatpush1.msra.mxu0 0.0
    %4200 = vmatprep.subr.mxu0 0.0
    %4201 = vmatpush1.msra.mxu0 0.0
    %4202 = vmatprep.subr.mxu0 0.0
    %4203 = vmatpush1.msra.mxu0 0.0
    %4204 = vmatprep.subr.mxu0 0.0
    %4205 = vmatpush1.msra.mxu0 0.0
    %4206 = vmatprep.subr.mxu0 0.0
    %4207 = vmatpush1.msra.mxu0 0.0
    %4208 = vmatprep.subr.mxu0 0.0
    %4209 = vmatpush1.msra.mxu0 0.0
    %4210 = vmatprep.subr.mxu0 0.0
    %4211 = vmatpush1.msra.mxu0 0.0
    %4212 = vmatprep.subr.mxu0 0.0
    %4213 = vmatpush1.msra.mxu0 0.0
    %4214 = vmatprep.subr.mxu0 0.0
    %4215 = vmatpush1.msra.mxu0 0.0
    %4216 = vmatprep.subr.mxu0 0.0
    %4217 = vmatpush1.msra.mxu0 0.0
    %4218 = vmatprep.subr.mxu0 0.0
    %4219 = vmatpush1.msra.mxu0 0.0
    %4220 = vmatprep.subr.mxu0 0.0
    %4221 = vmatpush1.msra.mxu0 0.0
    %4222 = vmatprep.subr.mxu0 0.0
    %4223 = vmatpush1.msra.mxu0 0.0
    %4224 = vmatprep.subr.mxu0 0.0
    %4225 = vmatpush1.msra.mxu0 0.0
    %4226 = vmatprep.mubr.f32.mxu0 0.0
    %4227 = vmatmul.mubr.f32.gmra.mrb[0].mxu0 %v4160
    %v4228 = vpop.f32.mrb[0].mxu0
    %v4229 = vadd.f32 0.0, %v4228
    %v4230 = vpop.f32.mrb[0].mxu0
    %4231 = vdwg.mxu0
    %4232 = vrot.lane.b32.xlu0 %v3545, 64
    %v4233 = vpop.permute.xlu0 %4232
    %v4236 = vsel %vm491, %v4003, 0
    %4238 = vmatprep.subr.mxu0 0.0
    %4239 = vmatpush1.msra.mxu0 %v4233
    %4240 = vmatprep.subr.mxu0 0.0
    %4241 = vmatpush1.msra.mxu0 0.0
    %4242 = vmatprep.subr.mxu0 0.0
    %4243 = vmatpush1.msra.mxu0 0.0
    %4244 = vmatprep.subr.mxu0 0.0
    %4245 = vmatpush1.msra.mxu0 0.0
    %4246 = vmatprep.subr.mxu0 0.0
    %4247 = vmatpush1.msra.mxu0 0.0
    %4248 = vmatprep.subr.mxu0 0.0
    %4249 = vmatpush1.msra.mxu0 0.0
    %4250 = vmatprep.subr.mxu0 0.0
    %4251 = vmatpush1.msra.mxu0 0.0
    %4252 = vmatprep.subr.mxu0 0.0
    %4253 = vmatpush1.msra.mxu0 0.0
    %4254 = vmatprep.subr.mxu0 0.0
    %4255 = vmatpush1.msra.mxu0 0.0
    %4256 = vmatprep.subr.mxu0 0.0
    %4257 = vmatpush1.msra.mxu0 0.0
    %4258 = vmatprep.subr.mxu0 0.0
    %4259 = vmatpush1.msra.mxu0 0.0
    %4260 = vmatprep.subr.mxu0 0.0
    %4261 = vmatpush1.msra.mxu0 0.0
    %4262 = vmatprep.subr.mxu0 0.0
    %4263 = vmatpush1.msra.mxu0 0.0
    %4264 = vmatprep.subr.mxu0 0.0
    %4265 = vmatpush1.msra.mxu0 0.0
    %4266 = vmatprep.subr.mxu0 0.0
    %4267 = vmatpush1.msra.mxu0 0.0
    %4268 = vmatprep.subr.mxu0 0.0
    %4269 = vmatpush1.msra.mxu0 0.0
    %4270 = vmatprep.subr.mxu0 0.0
    %4271 = vmatpush1.msra.mxu0 0.0
    %4272 = vmatprep.subr.mxu0 0.0
    %4273 = vmatpush1.msra.mxu0 0.0
    %4274 = vmatprep.subr.mxu0 0.0
    %4275 = vmatpush1.msra.mxu0 0.0
    %4276 = vmatprep.subr.mxu0 0.0
    %4277 = vmatpush1.msra.mxu0 0.0
    %4278 = vmatprep.subr.mxu0 0.0
    %4279 = vmatpush1.msra.mxu0 0.0
    %4280 = vmatprep.subr.mxu0 0.0
    %4281 = vmatpush1.msra.mxu0 0.0
    %4282 = vmatprep.subr.mxu0 0.0
    %4283 = vmatpush1.msra.mxu0 0.0
    %4284 = vmatprep.subr.mxu0 0.0
    %4285 = vmatpush1.msra.mxu0 0.0
    %4286 = vmatprep.subr.mxu0 0.0
    %4287 = vmatpush1.msra.mxu0 0.0
    %4288 = vmatprep.subr.mxu0 0.0
    %4289 = vmatpush1.msra.mxu0 0.0
    %4290 = vmatprep.subr.mxu0 0.0
    %4291 = vmatpush1.msra.mxu0 0.0
    %4292 = vmatprep.subr.mxu0 0.0
    %4293 = vmatpush1.msra.mxu0 0.0
    %4294 = vmatprep.subr.mxu0 0.0
    %4295 = vmatpush1.msra.mxu0 0.0
    %4296 = vmatprep.subr.mxu0 0.0
    %4297 = vmatpush1.msra.mxu0 0.0
    %4298 = vmatprep.subr.mxu0 0.0
    %4299 = vmatpush1.msra.mxu0 0.0
    %4300 = vmatprep.subr.mxu0 0.0
    %4301 = vmatpush1.msra.mxu0 0.0
    %4302 = vmatprep.mubr.f32.mxu0 0.0
    %4303 = vmatmul.mubr.f32.gmra.mrb[0].mxu0 %v4236
    %v4304 = vpop.f32.mrb[0].mxu0
    %v4305 = vadd.f32 0.0, %v4304
    %v4306 = vpop.f32.mrb[0].mxu0
    %4307 = vdwg.mxu0
    %4310 = vrot.lane.b32.xlu0 %v4229, 32
    %v4311 = vpop.permute.xlu0 %4310
    %4312 = vrot.lane.b32.xlu0 %v4305, 32
    %v4313 = vpop.permute.xlu0 %4312
    %v4316 = vsel %vm188, %v4077, %v4311
    %v4317 = vsel %vm188, %v4153, %v4313
    %v4318 = vpack.c.bf16 %v4316, %v4316
    %v4319 = vpack.c.bf16 %v4317, %v4317
    %s4320 = scalar_lea.vmem %s10, 32
    %v4321 = vld [vmem:[%s4320] sm:$0xf]
    %v4322 = vld [vmem:[%s4320 + $0x4] sm:$0xf]
    %v4323 = vld [vmem:[%s4320 + $0x8] sm:$0xf]
    %v4324 = vld [vmem:[%s4320 + $0xc] sm:$0xf]
    %v4325 = vld [vmem:[%s4320 + $0x10] sm:$0xf]
    %v4326 = vld [vmem:[%s4320 + $0x14] sm:$0xf]
    %v4327 = vld [vmem:[%s4320 + $0x18] sm:$0xf]
    %v4328 = vld [vmem:[%s4320 + $0x1c] sm:$0xf]
    %v4329 = vld [vmem:[%s11 + $0x1] sm:$0x1]
    %v4330 = vlaneseq
    %v4331 = vshrl.u32 %v4330, 7
    %v4332 = vsub.s32 0, %v4331
    %v4333 = vrot.slane %v4329, %v4332
    %v4336 = vunpack.c.l.b16 %v4318
    %v4337 = vunpack.c.l.b16 %v4319
    %v4338 = vrot.slane %v4337, 7
    %v4339 = vsel %vm3320, %v4338, %v4336
    %v4340 = vpack.c.b16 %v4339, %v4339
    %v4349 = vunpack.c.l.b16 %v4321
    %v4350 = vunpack.c.l.b16 %v4322
    %v4351 = vunpack.c.l.b16 %v4323
    %v4352 = vunpack.c.l.b16 %v4324
    %v4353 = vunpack.c.l.b16 %v4325
    %v4354 = vunpack.c.l.b16 %v4326
    %v4355 = vunpack.c.l.b16 %v4327
    %v4356 = vunpack.c.l.b16 %v4328
    %v4357 = vpack.c.b16 %v4350, %v4349
    %v4358 = vpack.c.b16 %v4352, %v4351
    %v4359 = vpack.c.b16 %v4354, %v4353
    %v4360 = vpack.c.b16 %v4356, %v4355
    %v4366 = vsel %vm125, %v4340, 0
    %4368 = vmatprep.subr.bf16.mxu0 0
    %4369 = vmatpush1.bf16.msra.mxu0 %v4357
    %4370 = vmatprep.subr.bf16.mxu0 0
    %4371 = vmatpush1.bf16.msra.mxu0 %v4358
    %4372 = vmatprep.subr.bf16.mxu0 0
    %4373 = vmatpush1.bf16.msra.mxu0 %v4359
    %4374 = vmatprep.subr.bf16.mxu0 0
    %4375 = vmatpush1.bf16.msra.mxu0 %v4360
    %4376 = vmatprep.subr.bf16.mxu0 0
    %4377 = vmatpush1.bf16.msra.mxu0 0
    %4378 = vmatprep.subr.bf16.mxu0 0
    %4379 = vmatpush1.bf16.msra.mxu0 0
    %4380 = vmatprep.subr.bf16.mxu0 0
    %4381 = vmatpush1.bf16.msra.mxu0 0
    %4382 = vmatprep.subr.bf16.mxu0 0
    %4383 = vmatpush1.bf16.msra.mxu0 0
    %4384 = vmatprep.subr.bf16.mxu0 0
    %4385 = vmatpush1.bf16.msra.mxu0 0
    %4386 = vmatprep.subr.bf16.mxu0 0
    %4387 = vmatpush1.bf16.msra.mxu0 0
    %4388 = vmatprep.subr.bf16.mxu0 0
    %4389 = vmatpush1.bf16.msra.mxu0 0
    %4390 = vmatprep.subr.bf16.mxu0 0
    %4391 = vmatpush1.bf16.msra.mxu0 0
    %4392 = vmatprep.subr.bf16.mxu0 0
    %4393 = vmatpush1.bf16.msra.mxu0 0
    %4394 = vmatprep.subr.bf16.mxu0 0
    %4395 = vmatpush1.bf16.msra.mxu0 0
    %4396 = vmatprep.subr.bf16.mxu0 0
    %4397 = vmatpush1.bf16.msra.mxu0 0
    %4398 = vmatprep.subr.bf16.mxu0 0
    %4399 = vmatpush1.bf16.msra.mxu0 0
    %4400 = vmatprep.mubr.bf16.mxu0 0
    %4401 = vmatmul.mubr.bf16.gmra.mrb[0].mxu0 %v4366
    %v4402 = vpop.f32.mrb[0].mxu0
    %v4403 = vadd.f32 %v4333, %v4402
    %v4404 = vpop.f32.mrb[0].mxu0
    %v4405 = vpop.f32.mrb[0].mxu0
    %v4406 = vpop.f32.mrb[0].mxu0
    %4407 = vdwg.mxu0
    %v4409 = vrot.slane %v4403, 1
    %v4410 = vrot.slane %v4403, 2
    %v4413 = vadd.f32 %v3459, %v4409
    %v4414 = vadd.f32 %v3460, %v4410
    %v4415 = vld [vmem:[%s3397 + $0x1] sm:$0x1]
    %v4416 = vld [vmem:[%s3399 + $0x1] sm:$0x1]
    %v4419 = vrot.slane %v4414, 7
    %v4422 = vsel %vm3406, %v4413, 0.0
    %4423 = vadd.xlane.f32.xlu0 %v4422
    %v4424 = vpop.xlane.xlu0 %4423
    %v4425 = vsel %vm3410, %v4419, 0.0
    %4426 = vadd.xlane.f32.xlu0 %v4425
    %v4427 = vpop.xlane.xlu0 %4426
    %v4428 = vmul.f32 %v4424, %v930
    %v4429 = vmul.f32 %v4427, %v930
    %v4432 = vrot.slane %v4429, 1
    %v4435 = vsub.f32 %v4413, %v4428
    %v4436 = vsub.f32 %v4414, %v4432
    %v4437 = vmul.f32 %v4435, %v4435
    %v4438 = vmul.f32 %v4436, %v4436
    %v4441 = vrot.slane %v4438, 7
    %v4444 = vsel %vm3406, %v4437, 0.0
    %4445 = vadd.xlane.f32.xlu0 %v4444
    %v4446 = vpop.xlane.xlu0 %4445
    %v4447 = vsel %vm3410, %v4441, 0.0
    %4448 = vadd.xlane.f32.xlu0 %v4447
    %v4449 = vpop.xlane.xlu0 %4448
    %v4450 = vmul.f32 %v4446, %v930
    %v4451 = vmul.f32 %v4449, %v930
    %v4452 = vadd.f32 %v4450, 1e-05
    %v4453 = vadd.f32 %v4451, 1e-05
    %v4454 = vrsqrt.pop %v4452
    %v4455 = vrsqrt.pop %v4453
    %v4458 = vrot.slane %v4455, 1
    %v4461 = vmul.f32 %v4435, %v4454
    %v4462 = vmul.f32 %v4436, %v4458
    %v4463 = vlaneseq
    %v4464 = vshrl.u32 %v4463, 7
    %v4465 = vsub.s32 0, %v4464
    %v4466 = vrot.slane %v4415, %v4465
    %v4467 = vmul.f32 %v4461, %v4466
    %v4468 = vmul.f32 %v4462, %v4466
    %v4469 = vlaneseq
    %v4470 = vshrl.u32 %v4469, 7
    %v4471 = vsub.s32 0, %v4470
    %v4472 = vrot.slane %v4416, %v4471
    %v4473 = vadd.f32 %v4467, %v4472
    %v4474 = vadd.f32 %v4468, %v4472
    %v4475 = vpack.c.bf16 %v4473, %v4473
    %v4476 = vpack.c.bf16 %v4474, %v4474
    %s4477 = scalar_lea.vmem %s12, 128
    %v4478 = vld [vmem:[%s4477] sm:$0xff]
    %v4479 = vld [vmem:[%s4477 + $0x8] sm:$0xff]
    %v4480 = vld [vmem:[%s4477 + $0x10] sm:$0xff]
    %v4481 = vld [vmem:[%s4477 + $0x18] sm:$0xff]
    %v4482 = vld [vmem:[%s4477 + $0x20] sm:$0xff]
    %v4483 = vld [vmem:[%s4477 + $0x28] sm:$0xff]
    %v4484 = vld [vmem:[%s4477 + $0x30] sm:$0xff]
    %v4485 = vld [vmem:[%s4477 + $0x38] sm:$0xff]
    %v4486 = vld [vmem:[%s4477 + $0x40] sm:$0xff]
    %v4487 = vld [vmem:[%s4477 + $0x48] sm:$0xff]
    %v4488 = vld [vmem:[%s4477 + $0x50] sm:$0xff]
    %v4489 = vld [vmem:[%s4477 + $0x58] sm:$0xff]
    %v4490 = vld [vmem:[%s4477 + $0x60] sm:$0xff]
    %v4491 = vld [vmem:[%s4477 + $0x68] sm:$0xff]
    %v4492 = vld [vmem:[%s4477 + $0x70] sm:$0xff]
    %v4493 = vld [vmem:[%s4477 + $0x78] sm:$0xff]
    %s4494 = scalar_lea.vmem %s13, 1
    %v4495 = vld [vmem:[%s4494] ss:$2 sm:$0xf]
    %v4497 = vlaneseq
    %v4498 = vshrl.u32 %v4497, 7
    %v4499 = vsub.s32 0, %v4498
    %v4500 = vrot.slane %v4495, %v4499
    %v4501 = vlaneseq
    %v4502 = vshrl.u32 %v4501, 7
    %v4503 = vsub.s32 1, %v4502
    %v4504 = vrot.slane %v4495, %v4503
    %v4505 = vlaneseq
    %v4506 = vshrl.u32 %v4505, 7
    %v4507 = vsub.s32 2, %v4506
    %v4508 = vrot.slane %v4495, %v4507
    %v4509 = vlaneseq
    %v4510 = vshrl.u32 %v4509, 7
    %v4511 = vsub.s32 3, %v4510
    %v4512 = vrot.slane %v4495, %v4511
    %v4519 = vunpack.c.l.b16 %v4475
    %v4520 = vunpack.c.l.b16 %v4476
    %v4521 = vrot.slane %v4519, 7
    %v4522 = vrot.slane %v4520, 6
    %v4523 = vsel %vm3320, %v4522, %v4521
    %v4524 = vpack.c.b16 %v4523, %v4523
    %v4541 = vunpack.c.l.b16 %v4478
    %v4542 = vunpack.c.h.b16 %v4478
    %v4543 = vunpack.c.l.b16 %v4479
    %v4544 = vunpack.c.h.b16 %v4479
    %v4545 = vunpack.c.l.b16 %v4480
    %v4546 = vunpack.c.h.b16 %v4480
    %v4547 = vunpack.c.l.b16 %v4481
    %v4548 = vunpack.c.h.b16 %v4481
    %v4549 = vunpack.c.l.b16 %v4482
    %v4550 = vunpack.c.h.b16 %v4482
    %v4551 = vunpack.c.l.b16 %v4483
    %v4552 = vunpack.c.h.b16 %v4483
    %v4553 = vunpack.c.l.b16 %v4484
    %v4554 = vunpack.c.h.b16 %v4484
    %v4555 = vunpack.c.l.b16 %v4485
    %v4556 = vunpack.c.h.b16 %v4485
    %v4557 = vunpack.c.l.b16 %v4486
    %v4558 = vunpack.c.h.b16 %v4486
    %v4559 = vunpack.c.l.b16 %v4487
    %v4560 = vunpack.c.h.b16 %v4487
    %v4561 = vunpack.c.l.b16 %v4488
    %v4562 = vunpack.c.h.b16 %v4488
    %v4563 = vunpack.c.l.b16 %v4489
    %v4564 = vunpack.c.h.b16 %v4489
    %v4565 = vunpack.c.l.b16 %v4490
    %v4566 = vunpack.c.h.b16 %v4490
    %v4567 = vunpack.c.l.b16 %v4491
    %v4568 = vunpack.c.h.b16 %v4491
    %v4569 = vunpack.c.l.b16 %v4492
    %v4570 = vunpack.c.h.b16 %v4492
    %v4571 = vunpack.c.l.b16 %v4493
    %v4572 = vunpack.c.h.b16 %v4493
    %v4573 = vpack.c.b16 %v4545, %v4541
    %v4574 = vpack.c.b16 %v4546, %v4542
    %v4575 = vpack.c.b16 %v4547, %v4543
    %v4576 = vpack.c.b16 %v4548, %v4544
    %v4577 = vpack.c.b16 %v4553, %v4549
    %v4578 = vpack.c.b16 %v4554, %v4550
    %v4579 = vpack.c.b16 %v4555, %v4551
    %v4580 = vpack.c.b16 %v4556, %v4552
    %v4581 = vpack.c.b16 %v4561, %v4557
    %v4582 = vpack.c.b16 %v4562, %v4558
    %v4583 = vpack.c.b16 %v4563, %v4559
    %v4584 = vpack.c.b16 %v4564, %v4560
    %v4585 = vpack.c.b16 %v4569, %v4565
    %v4586 = vpack.c.b16 %v4570, %v4566
    %v4587 = vpack.c.b16 %v4571, %v4567
    %v4588 = vpack.c.b16 %v4572, %v4568
    %v4606 = vsel %vm125, %v4524, 0
    %4608 = vmatprep.subr.bf16.mxu0 %v4574
    %4609 = vmatpush1.bf16.msra.mxu0 %v4573
    %4610 = vmatprep.subr.bf16.mxu0 %v4578
    %4611 = vmatpush1.bf16.msra.mxu0 %v4577
    %4612 = vmatprep.subr.bf16.mxu0 %v4582
    %4613 = vmatpush1.bf16.msra.mxu0 %v4581
    %4614 = vmatprep.subr.bf16.mxu0 %v4586
    %4615 = vmatpush1.bf16.msra.mxu0 %v4585
    %4616 = vmatprep.subr.bf16.mxu0 0
    %4617 = vmatpush1.bf16.msra.mxu0 0
    %4618 = vmatprep.subr.bf16.mxu0 0
    %4619 = vmatpush1.bf16.msra.mxu0 0
    %4620 = vmatprep.subr.bf16.mxu0 0
    %4621 = vmatpush1.bf16.msra.mxu0 0
    %4622 = vmatprep.subr.bf16.mxu0 0
    %4623 = vmatpush1.bf16.msra.mxu0 0
    %4624 = vmatprep.subr.bf16.mxu0 0
    %4625 = vmatpush1.bf16.msra.mxu0 0
    %4626 = vmatprep.subr.bf16.mxu0 0
    %4627 = vmatpush1.bf16.msra.mxu0 0
    %4628 = vmatprep.subr.bf16.mxu0 0
    %4629 = vmatpush1.bf16.msra.mxu0 0
    %4630 = vmatprep.subr.bf16.mxu0 0
    %4631 = vmatpush1.bf16.msra.mxu0 0
    %4632 = vmatprep.subr.bf16.mxu0 0
    %4633 = vmatpush1.bf16.msra.mxu0 0
    %4634 = vmatprep.subr.bf16.mxu0 0
    %4635 = vmatpush1.bf16.msra.mxu0 0
    %4636 = vmatprep.subr.bf16.mxu0 0
    %4637 = vmatpush1.bf16.msra.mxu0 0
    %4638 = vmatprep.subr.bf16.mxu0 0
    %4639 = vmatpush1.bf16.msra.mxu0 0
    %4640 = vmatprep.mubr.bf16.mxu0 0
    %4641 = vmatmul.mubr.bf16.gmra.mrb[0].mxu0 %v4606
    %v4642 = vpop.f32.mrb[0].mxu0
    %v4643 = vadd.f32 %v4500, %v4642
    %v4644 = vpop.f32.mrb[0].mxu0
    %v4645 = vadd.f32 %v4504, %v4644
    %v4646 = vpop.f32.mrb[0].mxu0
    %v4647 = vpop.f32.mrb[0].mxu0
    %4648 = vdwg.mxu0
    %4649 = vmatprep.subr.bf16.mxu0 %v4576
    %4650 = vmatpush1.bf16.msra.mxu0 %v4575
    %4651 = vmatprep.subr.bf16.mxu0 %v4580
    %4652 = vmatpush1.bf16.msra.mxu0 %v4579
    %4653 = vmatprep.subr.bf16.mxu0 %v4584
    %4654 = vmatpush1.bf16.msra.mxu0 %v4583
    %4655 = vmatprep.subr.bf16.mxu0 %v4588
    %4656 = vmatpush1.bf16.msra.mxu0 %v4587
    %4657 = vmatprep.subr.bf16.mxu0 0
    %4658 = vmatpush1.bf16.msra.mxu0 0
    %4659 = vmatprep.subr.bf16.mxu0 0
    %4660 = vmatpush1.bf16.msra.mxu0 0
    %4661 = vmatprep.subr.bf16.mxu0 0
    %4662 = vmatpush1.bf16.msra.mxu0 0
    %4663 = vmatprep.subr.bf16.mxu0 0
    %4664 = vmatpush1.bf16.msra.mxu0 0
    %4665 = vmatprep.subr.bf16.mxu0 0
    %4666 = vmatpush1.bf16.msra.mxu0 0
    %4667 = vmatprep.subr.bf16.mxu0 0
    %4668 = vmatpush1.bf16.msra.mxu0 0
    %4669 = vmatprep.subr.bf16.mxu0 0
    %4670 = vmatpush1.bf16.msra.mxu0 0
    %4671 = vmatprep.subr.bf16.mxu0 0
    %4672 = vmatpush1.bf16.msra.mxu0 0
    %4673 = vmatprep.subr.bf16.mxu0 0
    %4674 = vmatpush1.bf16.msra.mxu0 0
    %4675 = vmatprep.subr.bf16.mxu0 0
    %4676 = vmatpush1.bf16.msra.mxu0 0
    %4677 = vmatprep.subr.bf16.mxu0 0
    %4678 = vmatpush1.bf16.msra.mxu0 0
    %4679 = vmatprep.subr.bf16.mxu0 0
    %4680 = vmatpush1.bf16.msra.mxu0 0
    %4681 = vmatprep.mubr.bf16.mxu0 0
    %4682 = vmatmul.mubr.bf16.gmra.mrb[0].mxu0 %v4606
    %v4683 = vpop.f32.mrb[0].mxu0
    %v4684 = vadd.f32 %v4508, %v4683
    %v4685 = vpop.f32.mrb[0].mxu0
    %v4686 = vadd.f32 %v4512, %v4685
    %v4687 = vpop.f32.mrb[0].mxu0
    %v4688 = vpop.f32.mrb[0].mxu0
    %4689 = vdwg.mxu0
    %v4690 = vmax.f32 %v4643, 0.0
    %v4691 = vmax.f32 %v4645, 0.0
    %v4692 = vmax.f32 %v4684, 0.0
    %v4693 = vmax.f32 %v4686, 0.0
    %v4694 = vpack.c.bf16 %v4690, %v4690
    %v4695 = vpack.c.bf16 %v4691, %v4691
    %v4696 = vpack.c.bf16 %v4692, %v4692
    %v4697 = vpack.c.bf16 %v4693, %v4693
    %s4698 = scalar_lea.vmem %s14, 256
    %v4699 = vld [vmem:[%s4698] sm:$0xf]
    %v4700 = vld [vmem:[%s4698 + $0x4] sm:$0xf]
    %v4701 = vld [vmem:[%s4698 + $0x8] sm:$0xf]
    %v4702 = vld [vmem:[%s4698 + $0xc] sm:$0xf]
    %v4703 = vld [vmem:[%s4698 + $0x10] sm:$0xf]
    %v4704 = vld [vmem:[%s4698 + $0x14] sm:$0xf]
    %v4705 = vld [vmem:[%s4698 + $0x18] sm:$0xf]
    %v4706 = vld [vmem:[%s4698 + $0x1c] sm:$0xf]
    %v4707 = vld [vmem:[%s4698 + $0x20] sm:$0xf]
    %v4708 = vld [vmem:[%s4698 + $0x24] sm:$0xf]
    %v4709 = vld [vmem:[%s4698 + $0x28] sm:$0xf]
    %v4710 = vld [vmem:[%s4698 + $0x2c] sm:$0xf]
    %v4711 = vld [vmem:[%s4698 + $0x30] sm:$0xf]
    %v4712 = vld [vmem:[%s4698 + $0x34] sm:$0xf]
    %v4713 = vld [vmem:[%s4698 + $0x38] sm:$0xf]
    %v4714 = vld [vmem:[%s4698 + $0x3c] sm:$0xf]
    %v4715 = vld [vmem:[%s4698 + $0x40] sm:$0xf]
    %v4716 = vld [vmem:[%s4698 + $0x44] sm:$0xf]
    %v4717 = vld [vmem:[%s4698 + $0x48] sm:$0xf]
    %v4718 = vld [vmem:[%s4698 + $0x4c] sm:$0xf]
    %v4719 = vld [vmem:[%s4698 + $0x50] sm:$0xf]
    %v4720 = vld [vmem:[%s4698 + $0x54] sm:$0xf]
    %v4721 = vld [vmem:[%s4698 + $0x58] sm:$0xf]
    %v4722 = vld [vmem:[%s4698 + $0x5c] sm:$0xf]
    %v4723 = vld [vmem:[%s4698 + $0x60] sm:$0xf]
    %v4724 = vld [vmem:[%s4698 + $0x64] sm:$0xf]
    %v4725 = vld [vmem:[%s4698 + $0x68] sm:$0xf]
    %v4726 = vld [vmem:[%s4698 + $0x6c] sm:$0xf]
    %v4727 = vld [vmem:[%s4698 + $0x70] sm:$0xf]
    %v4728 = vld [vmem:[%s4698 + $0x74] sm:$0xf]
    %v4729 = vld [vmem:[%s4698 + $0x78] sm:$0xf]
    %v4730 = vld [vmem:[%s4698 + $0x7c] sm:$0xf]
    %v4731 = vld [vmem:[%s4698 + $0x80] sm:$0xf]
    %v4732 = vld [vmem:[%s4698 + $0x84] sm:$0xf]
    %v4733 = vld [vmem:[%s4698 + $0x88] sm:$0xf]
    %v4734 = vld [vmem:[%s4698 + $0x8c] sm:$0xf]
    %v4735 = vld [vmem:[%s4698 + $0x90] sm:$0xf]
    %v4736 = vld [vmem:[%s4698 + $0x94] sm:$0xf]
    %v4737 = vld [vmem:[%s4698 + $0x98] sm:$0xf]
    %v4738 = vld [vmem:[%s4698 + $0x9c] sm:$0xf]
    %v4739 = vld [vmem:[%s4698 + $0xa0] sm:$0xf]
    %v4740 = vld [vmem:[%s4698 + $0xa4] sm:$0xf]
    %v4741 = vld [vmem:[%s4698 + $0xa8] sm:$0xf]
    %v4742 = vld [vmem:[%s4698 + $0xac] sm:$0xf]
    %v4743 = vld [vmem:[%s4698 + $0xb0] sm:$0xf]
    %v4744 = vld [vmem:[%s4698 + $0xb4] sm:$0xf]
    %v4745 = vld [vmem:[%s4698 + $0xb8] sm:$0xf]
    %v4746 = vld [vmem:[%s4698 + $0xbc] sm:$0xf]
    %v4747 = vld [vmem:[%s4698 + $0xc0] sm:$0xf]
    %v4748 = vld [vmem:[%s4698 + $0xc4] sm:$0xf]
    %v4749 = vld [vmem:[%s4698 + $0xc8] sm:$0xf]
    %v4750 = vld [vmem:[%s4698 + $0xcc] sm:$0xf]
    %v4751 = vld [vmem:[%s4698 + $0xd0] sm:$0xf]
    %v4752 = vld [vmem:[%s4698 + $0xd4] sm:$0xf]
    %v4753 = vld [vmem:[%s4698 + $0xd8] sm:$0xf]
    %v4754 = vld [vmem:[%s4698 + $0xdc] sm:$0xf]
    %v4755 = vld [vmem:[%s4698 + $0xe0] sm:$0xf]
    %v4756 = vld [vmem:[%s4698 + $0xe4] sm:$0xf]
    %v4757 = vld [vmem:[%s4698 + $0xe8] sm:$0xf]
    %v4758 = vld [vmem:[%s4698 + $0xec] sm:$0xf]
    %v4759 = vld [vmem:[%s4698 + $0xf0] sm:$0xf]
    %v4760 = vld [vmem:[%s4698 + $0xf4] sm:$0xf]
    %v4761 = vld [vmem:[%s4698 + $0xf8] sm:$0xf]
    %v4762 = vld [vmem:[%s4698 + $0xfc] sm:$0xf]
    %v4763 = vld [vmem:[%s15 + $0x1] sm:$0x1]
    %v4764 = vlaneseq
    %v4765 = vshrl.u32 %v4764, 7
    %v4766 = vsub.s32 0, %v4765
    %v4767 = vrot.slane %v4763, %v4766
    %v4832 = vunpack.c.l.b16 %v4699
    %v4833 = vunpack.c.l.b16 %v4700
    %v4834 = vunpack.c.l.b16 %v4701
    %v4835 = vunpack.c.l.b16 %v4702
    %v4836 = vunpack.c.l.b16 %v4703
    %v4837 = vunpack.c.l.b16 %v4704
    %v4838 = vunpack.c.l.b16 %v4705
    %v4839 = vunpack.c.l.b16 %v4706
    %v4840 = vunpack.c.l.b16 %v4707
    %v4841 = vunpack.c.l.b16 %v4708
    %v4842 = vunpack.c.l.b16 %v4709
    %v4843 = vunpack.c.l.b16 %v4710
    %v4844 = vunpack.c.l.b16 %v4711
    %v4845 = vunpack.c.l.b16 %v4712
    %v4846 = vunpack.c.l.b16 %v4713
    %v4847 = vunpack.c.l.b16 %v4714
    %v4848 = vunpack.c.l.b16 %v4715
    %v4849 = vunpack.c.l.b16 %v4716
    %v4850 = vunpack.c.l.b16 %v4717
    %v4851 = vunpack.c.l.b16 %v4718
    %v4852 = vunpack.c.l.b16 %v4719
    %v4853 = vunpack.c.l.b16 %v4720
    %v4854 = vunpack.c.l.b16 %v4721
    %v4855 = vunpack.c.l.b16 %v4722
    %v4856 = vunpack.c.l.b16 %v4723
    %v4857 = vunpack.c.l.b16 %v4724
    %v4858 = vunpack.c.l.b16 %v4725
    %v4859 = vunpack.c.l.b16 %v4726
    %v4860 = vunpack.c.l.b16 %v4727
    %v4861 = vunpack.c.l.b16 %v4728
    %v4862 = vunpack.c.l.b16 %v4729
    %v4863 = vunpack.c.l.b16 %v4730
    %v4864 = vunpack.c.l.b16 %v4731
    %v4865 = vunpack.c.l.b16 %v4732
    %v4866 = vunpack.c.l.b16 %v4733
    %v4867 = vunpack.c.l.b16 %v4734
    %v4868 = vunpack.c.l.b16 %v4735
    %v4869 = vunpack.c.l.b16 %v4736
    %v4870 = vunpack.c.l.b16 %v4737
    %v4871 = vunpack.c.l.b16 %v4738
    %v4872 = vunpack.c.l.b16 %v4739
    %v4873 = vunpack.c.l.b16 %v4740
    %v4874 = vunpack.c.l.b16 %v4741
    %v4875 = vunpack.c.l.b16 %v4742
    %v4876 = vunpack.c.l.b16 %v4743
    %v4877 = vunpack.c.l.b16 %v4744
    %v4878 = vunpack.c.l.b16 %v4745
    %v4879 = vunpack.c.l.b16 %v4746
    %v4880 = vunpack.c.l.b16 %v4747
    %v4881 = vunpack.c.l.b16 %v4748
    %v4882 = vunpack.c.l.b16 %v4749
    %v4883 = vunpack.c.l.b16 %v4750
    %v4884 = vunpack.c.l.b16 %v4751
    %v4885 = vunpack.c.l.b16 %v4752
    %v4886 = vunpack.c.l.b16 %v4753
    %v4887 = vunpack.c.l.b16 %v4754
    %v4888 = vunpack.c.l.b16 %v4755
    %v4889 = vunpack.c.l.b16 %v4756
    %v4890 = vunpack.c.l.b16 %v4757
    %v4891 = vunpack.c.l.b16 %v4758
    %v4892 = vunpack.c.l.b16 %v4759
    %v4893 = vunpack.c.l.b16 %v4760
    %v4894 = vunpack.c.l.b16 %v4761
    %v4895 = vunpack.c.l.b16 %v4762
    %v4896 = vpack.c.b16 %v4833, %v4832
    %v4897 = vpack.c.b16 %v4835, %v4834
    %v4898 = vpack.c.b16 %v4837, %v4836
    %v4899 = vpack.c.b16 %v4839, %v4838
    %v4900 = vpack.c.b16 %v4841, %v4840
    %v4901 = vpack.c.b16 %v4843, %v4842
    %v4902 = vpack.c.b16 %v4845, %v4844
    %v4903 = vpack.c.b16 %v4847, %v4846
    %v4904 = vpack.c.b16 %v4849, %v4848
    %v4905 = vpack.c.b16 %v4851, %v4850
    %v4906 = vpack.c.b16 %v4853, %v4852
    %v4907 = vpack.c.b16 %v4855, %v4854
    %v4908 = vpack.c.b16 %v4857, %v4856
    %v4909 = vpack.c.b16 %v4859, %v4858
    %v4910 = vpack.c.b16 %v4861, %v4860
    %v4911 = vpack.c.b16 %v4863, %v4862
    %v4912 = vpack.c.b16 %v4865, %v4864
    %v4913 = vpack.c.b16 %v4867, %v4866
    %v4914 = vpack.c.b16 %v4869, %v4868
    %v4915 = vpack.c.b16 %v4871, %v4870
    %v4916 = vpack.c.b16 %v4873, %v4872
    %v4917 = vpack.c.b16 %v4875, %v4874
    %v4918 = vpack.c.b16 %v4877, %v4876
    %v4919 = vpack.c.b16 %v4879, %v4878
    %v4920 = vpack.c.b16 %v4881, %v4880
    %v4921 = vpack.c.b16 %v4883, %v4882
    %v4922 = vpack.c.b16 %v4885, %v4884
    %v4923 = vpack.c.b16 %v4887, %v4886
    %v4924 = vpack.c.b16 %v4889, %v4888
    %v4925 = vpack.c.b16 %v4891, %v4890
    %v4926 = vpack.c.b16 %v4893, %v4892
    %v4927 = vpack.c.b16 %v4895, %v4894
    %4960 = vmatprep.subr.bf16.mxu0 0
    %4961 = vmatpush1.bf16.msra.mxu0 %v4896
    %4962 = vmatprep.subr.bf16.mxu0 0
    %4963 = vmatpush1.bf16.msra.mxu0 %v4897
    %4964 = vmatprep.subr.bf16.mxu0 0
    %4965 = vmatpush1.bf16.msra.mxu0 %v4898
    %4966 = vmatprep.subr.bf16.mxu0 0
    %4967 = vmatpush1.bf16.msra.mxu0 %v4899
    %4968 = vmatprep.subr.bf16.mxu0 0
    %4969 = vmatpush1.bf16.msra.mxu0 %v4900
    %4970 = vmatprep.subr.bf16.mxu0 0
    %4971 = vmatpush1.bf16.msra.mxu0 %v4901
    %4972 = vmatprep.subr.bf16.mxu0 0
    %4973 = vmatpush1.bf16.msra.mxu0 %v4902
    %4974 = vmatprep.subr.bf16.mxu0 0
    %4975 = vmatpush1.bf16.msra.mxu0 %v4903
    %4976 = vmatprep.subr.bf16.mxu0 0
    %4977 = vmatpush1.bf16.msra.mxu0 %v4904
    %4978 = vmatprep.subr.bf16.mxu0 0
    %4979 = vmatpush1.bf16.msra.mxu0 %v4905
    %4980 = vmatprep.subr.bf16.mxu0 0
    %4981 = vmatpush1.bf16.msra.mxu0 %v4906
    %4982 = vmatprep.subr.bf16.mxu0 0
    %4983 = vmatpush1.bf16.msra.mxu0 %v4907
    %4984 = vmatprep.subr.bf16.mxu0 0
    %4985 = vmatpush1.bf16.msra.mxu0 %v4908
    %4986 = vmatprep.subr.bf16.mxu0 0
    %4987 = vmatpush1.bf16.msra.mxu0 %v4909
    %4988 = vmatprep.subr.bf16.mxu0 0
    %4989 = vmatpush1.bf16.msra.mxu0 %v4910
    %4990 = vmatprep.subr.bf16.mxu0 0
    %4991 = vmatpush1.bf16.msra.mxu0 %v4911
    %4992 = vmatprep.mubr.bf16.mxu0 %v4695
    %4993 = vmatmul.mubr.bf16.gmra.mrb[0].mxu0 %v4694
    %v4994 = vpop.f32.mrb[0].mxu0
    %v4995 = vadd.f32 %v4767, %v4994
    %v4996 = vpop.f32.mrb[0].mxu0
    %v4997 = vpop.f32.mrb[0].mxu0
    %v4998 = vpop.f32.mrb[0].mxu0
    %4999 = vdwg.mxu0
    %5000 = vmatprep.subr.bf16.mxu0 0
    %5001 = vmatpush1.bf16.msra.mxu0 %v4912
    %5002 = vmatprep.subr.bf16.mxu0 0
    %5003 = vmatpush1.bf16.msra.mxu0 %v4913
    %5004 = vmatprep.subr.bf16.mxu0 0
    %5005 = vmatpush1.bf16.msra.mxu0 %v4914
    %5006 = vmatprep.subr.bf16.mxu0 0
    %5007 = vmatpush1.bf16.msra.mxu0 %v4915
    %5008 = vmatprep.subr.bf16.mxu0 0
    %5009 = vmatpush1.bf16.msra.mxu0 %v4916
    %5010 = vmatprep.subr.bf16.mxu0 0
    %5011 = vmatpush1.bf16.msra.mxu0 %v4917
    %5012 = vmatprep.subr.bf16.mxu0 0
    %5013 = vmatpush1.bf16.msra.mxu0 %v4918
    %5014 = vmatprep.subr.bf16.mxu0 0
    %5015 = vmatpush1.bf16.msra.mxu0 %v4919
    %5016 = vmatprep.subr.bf16.mxu0 0
    %5017 = vmatpush1.bf16.msra.mxu0 %v4920
    %5018 = vmatprep.subr.bf16.mxu0 0
    %5019 = vmatpush1.bf16.msra.mxu0 %v4921
    %5020 = vmatprep.subr.bf16.mxu0 0
    %5021 = vmatpush1.bf16.msra.mxu0 %v4922
    %5022 = vmatprep.subr.bf16.mxu0 0
    %5023 = vmatpush1.bf16.msra.mxu0 %v4923
    %5024 = vmatprep.subr.bf16.mxu0 0
    %5025 = vmatpush1.bf16.msra.mxu0 %v4924
    %5026 = vmatprep.subr.bf16.mxu0 0
    %5027 = vmatpush1.bf16.msra.mxu0 %v4925
    %5028 = vmatprep.subr.bf16.mxu0 0
    %5029 = vmatpush1.bf16.msra.mxu0 %v4926
    %5030 = vmatprep.subr.bf16.mxu0 0
    %5031 = vmatpush1.bf16.msra.mxu0 %v4927
    %5032 = vmatprep.mubr.bf16.mxu0 %v4697
    %5033 = vmatmul.mubr.bf16.gmra.mrb[0].mxu0 %v4696
    %v5034 = vpop.f32.mrb[0].mxu0
    %v5035 = vadd.f32 %v4995, %v5034
    %v5036 = vpop.f32.mrb[0].mxu0
    %v5037 = vpop.f32.mrb[0].mxu0
    %v5038 = vpop.f32.mrb[0].mxu0
    %5039 = vdwg.mxu0
    %v5041 = vrot.slane %v5035, 1
    %v5042 = vrot.slane %v5035, 2
    %v5045 = vadd.f32 %v4473, %v5041
    %v5046 = vadd.f32 %v4474, %v5042
    %v5047 = vld [vmem:[%s3397 + $0x2] sm:$0x1]
    %v5048 = vld [vmem:[%s3399 + $0x2] sm:$0x1]
    %v5051 = vrot.slane %v5046, 7
    %v5054 = vsel %vm3406, %v5045, 0.0
    %5055 = vadd.xlane.f32.xlu0 %v5054
    %v5056 = vpop.xlane.xlu0 %5055
    %v5057 = vsel %vm3410, %v5051, 0.0
    %5058 = vadd.xlane.f32.xlu0 %v5057
    %v5059 = vpop.xlane.xlu0 %5058
    %v5060 = vmul.f32 %v5056, %v930
    %v5061 = vmul.f32 %v5059, %v930
    %v5064 = vrot.slane %v5061, 1
    %v5067 = vsub.f32 %v5045, %v5060
    %v5068 = vsub.f32 %v5046, %v5064
    %v5069 = vmul.f32 %v5067, %v5067
    %v5070 = vmul.f32 %v5068, %v5068
    %v5073 = vrot.slane %v5070, 7
    %v5076 = vsel %vm3406, %v5069, 0.0
    %5077 = vadd.xlane.f32.xlu0 %v5076
    %v5078 = vpop.xlane.xlu0 %5077
    %v5079 = vsel %vm3410, %v5073, 0.0
    %5080 = vadd.xlane.f32.xlu0 %v5079
    %v5081 = vpop.xlane.xlu0 %5080
    %v5082 = vmul.f32 %v5078, %v930
    %v5083 = vmul.f32 %v5081, %v930
    %v5084 = vadd.f32 %v5082, 1e-05
    %v5085 = vadd.f32 %v5083, 1e-05
    %v5086 = vrsqrt.pop %v5084
    %v5087 = vrsqrt.pop %v5085
    %v5090 = vrot.slane %v5087, 1
    %v5093 = vmul.f32 %v5067, %v5086
    %v5094 = vmul.f32 %v5068, %v5090
    %v5095 = vlaneseq
    %v5096 = vshrl.u32 %v5095, 7
    %v5097 = vsub.s32 0, %v5096
    %v5098 = vrot.slane %v5047, %v5097
    %v5099 = vmul.f32 %v5093, %v5098
    %v5100 = vmul.f32 %v5094, %v5098
    %v5101 = vlaneseq
    %v5102 = vshrl.u32 %v5101, 7
    %v5103 = vsub.s32 0, %v5102
    %v5104 = vrot.slane %v5048, %v5103
    %v5105 = vadd.f32 %v5099, %v5104
    %v5106 = vadd.f32 %v5100, %v5104
    %5107 = vst.msk [vmem:[#allocation2 - $0x7] sm:$0x80] %vm3406, %v5105
    %5108 = vst.msk [vmem:[#allocation2 - $0x6] sm:$0x80] %vm3406, %v5106
    // Predicated region
    $region74: #{tpu_custom_call.1} parent=1 // pred_check
      _
    $region75: #{tpu_custom_call.1} parent=1 // pred_check_branch
      %5110 = sbr.rel (0) target = $region77
    $region76: #{tpu_custom_call.1} parent=1 // pred_region
      %s5112 = ssub.s32 32, 32
      %5113 = vsyncadd [#allocation3], %s5112
      %s5114 = sshll.u32 [#allocation2], 4
      %s5115 = int_to_ptr.vmem [resolvable:$true] %s5114
      %5120 = dma.vmem_to_hbm [thread:$0]  %s5115, 32, %s18, [#allocation3], 16, 16, 1
    $region77: #{tpu_custom_call.1} parent=1 // pred_fallthru
      _
    // Predicated region
    $region78: #{tpu_custom_call.1} parent=1 // pred_check
      _
    $region79: #{tpu_custom_call.1} parent=1 // pred_check_branch
      %5122 = sbr.rel (0) target = $region81
    $region80: #{tpu_custom_call.1} parent=1 // pred_region
      %5123 = dma.done [#allocation3], 32
    $region81: #{tpu_custom_call.1} parent=1 // pred_fallthru
      _
    %5124 = vsyncpa [#allocation3], 1

</llo_original>
